<compile_context>
chip_gen: v5e
topology: v5e:2x2
jax: 0.10.0
libtpu: 0.0.40
codegen_flags: <defaults>
</compile_context>

<pallas_src>
import functools
import math

import jax
import jax.numpy as jnp
from jax.experimental import pallas as pl
from jax.experimental.pallas import tpu as pltpu

LANE = 128   # channel dims padded to a multiple of the 128-wide lane dim


def _round_up(x, m):
    return (x + m - 1) // m * m


# ---------------------------------------------------------------------------
# Fused conv-as-GEMM kernel.
# One grid step = one (image-group, cout-tile) output block; all k*k taps are
# unrolled inside (no reduction grid axis, no scratch accumulator needed).
# Optional extras: fused 1x1 shortcut (second output) and fused residual
# blend alpha*conv + beta*res in the epilogue.
# ---------------------------------------------------------------------------
def _conv_kernel(*refs, taps, ksize, stride, nb, oh, ow,
                 has_sc, has_res, alpha, beta):
    it = iter(refs)
    x_ref = next(it)                          # (nplanes, nb, hs, ow, cin_p)
    w_ref = next(it)                          # (taps, cin_p, tn)
    wsc_ref = next(it) if has_sc else None    # (1, cin_p, tn)
    res_ref = next(it) if has_res else None   # (nb, oh, ow, tn)
    o_ref = next(it)                          # (nb, oh, ow, tn)
    r_ref = next(it) if has_sc else None      # (nb, oh, ow, tn)

    cin_p = x_ref.shape[-1]
    m = nb * oh * ow

    def tap_window(ik, jk):
        # Tap (ik, jk) of the k x k stencil lives in row-parity plane
        # (ik % stride), column-shift plane jk, rows r0 .. r0+oh-1.  The
        # planes' width is exactly ow, so this is a contiguous row slice and
        # the reshape to (M, cin_p) is a flat view (no VMEM relayout copy).
        p = (ik % stride) * ksize + jk
        r0 = ik // stride
        return x_ref[p, :, r0:r0 + oh, :, :].reshape(m, cin_p)

    acc = None
    for tap in range(taps):        # fully unrolled: back-to-back MXU pushes
        ik, jk = divmod(tap, ksize)
        part = jnp.dot(tap_window(ik, jk), w_ref[tap],
                       preferred_element_type=jnp.float32)
        acc = part if acc is None else acc + part

    if has_res:                    # BasicBlock: out = 0.8*conv-path + 0.2*shortcut
        res = res_ref[...].reshape(m, -1).astype(jnp.float32)
        acc = alpha * acc + beta * res
    o_ref[...] = acc.reshape(nb, oh, ow, -1).astype(o_ref.dtype)

    if has_sc:
        # The 1x1 / stride-s / pad-0 shortcut reads exactly the center-tap
        # (1,1) window of the 3x3 / pad-1 conv -> reuse the resident planes.
        win = tap_window(1, 1)
        r_ref[...] = jnp.dot(win, wsc_ref[0], preferred_element_type=jnp.float32
                             ).reshape(nb, oh, ow, -1).astype(r_ref.dtype)


# ---------------------------------------------------------------------------
# Wrapper: plane construction + pallas_call
# ---------------------------------------------------------------------------
def _make_planes(x_nhwc, *, ksize, stride, pad, oh, ow):
    """Row-parity x column-shifted planes of the zero-padded input.

    Plane (pi, j) holds padded rows {pi, pi+s, ...} (first hs of them) and
    padded columns {j, j+s, ..., j+s*(ow-1)} (exactly ow of them), so tap
    (i, j) of the stencil is the contiguous row window
        planes[(i % s)*k + j, :, i//s : i//s + oh, :, :].
    HBM cost ~ (k/s) x the padded input (vs k*k x for im2col).
    """
    xp = jnp.pad(x_nhwc, ((0, 0), (pad, pad), (pad, pad), (0, 0))) if pad else x_nhwc
    npr = min(stride, ksize)                 # row parities actually used by taps
    hs = oh + (ksize - 1) // stride          # rows needed per parity plane
    planes = []
    for pi in range(npr):
        rows = xp[:, pi::stride, :, :][:, :hs, :, :]
        if rows.shape[1] < hs:               # filler rows (never read by a valid tap)
            rows = jnp.pad(rows, ((0, 0), (0, hs - rows.shape[1]), (0, 0), (0, 0)))
        for j in range(ksize):
            cols = rows[:, :, j::stride, :][:, :, :ow, :]
            if cols.shape[2] < ow:
                cols = jnp.pad(cols, ((0, 0), (0, 0), (0, ow - cols.shape[2]), (0, 0)))
            planes.append(cols)
    return jnp.stack(planes, axis=0)         # (npr*ksize, N, hs, ow, Cin_p)


def _conv_call(x_nhwc, w_taps, *, ksize, stride, pad, w_sc=None,
               residual=None, alpha=0.8, beta=0.2, out_dtype=jnp.bfloat16):
    """Bias-free NHWC conv (cross-correlation) as one pallas_call.

    x_nhwc  : (N, H, W, Cin_p)      bf16, Cin_p % 128 == 0
    w_taps  : (k*k, Cin_p, Cout_p)  bf16 (prepared in init)
    w_sc    : optional (1, Cin_p, Cout_p) -> fused 1x1/stride shortcut output
    residual: optional (N, OH, OW, Cout_p) -> fused alpha*conv + beta*res
    """
    n, h, w, cin_p = x_nhwc.shape
    taps, wcin, cout_p = w_taps.shape
    assert taps == ksize * ksize and wcin == cin_p
    oh = (h + 2 * pad - ksize) // stride + 1
    ow = (w + 2 * pad - ksize) // stride + 1

    tn = 256 if cout_p % 256 == 0 else LANE   # fill the 256-wide MXU on v6e/v7x
    # Fold a group of images into the GEMM M dim (target M ~ 128..512) to fill
    # MXU rows; also bounds the resident VMEM block per grid step.
    nb = 1
    for cand in range(1, n + 1):
        if n % cand == 0 and cand * oh * ow <= max(512, oh * ow):
            nb = cand
    n_groups = n // nb
    # TODO(synk): for ResNet-scale spatial sizes add an output-row (oh) tile
    # grid axis + explicit vmem_limit_bytes so the resident set fits v7x's
    # 64 MiB VMEM; the 8/16-pixel feature maps here fit comfortably.

    planes = _make_planes(x_nhwc, ksize=ksize, stride=stride, pad=pad, oh=oh, ow=ow)
    nplanes, _, hs, _, _ = planes.shape

    has_sc = w_sc is not None
    has_res = residual is not None
    kernel = functools.partial(_conv_kernel, taps=taps, ksize=ksize,
                               stride=stride, nb=nb, oh=oh, ow=ow,
                               has_sc=has_sc, has_res=has_res,
                               alpha=alpha, beta=beta)

    in_specs = [
        # All planes for one image group resident; indexed only by g -> DMA'd
        # once per group and reused across all cout tiles / taps.
        pl.BlockSpec((nplanes, nb, hs, ow, cin_p), lambda g, c: (0, g, 0, 0, 0)),
        # Whole weight slab for this cout tile resident; indexed only by c.
        pl.BlockSpec((taps, cin_p, tn), lambda g, c: (0, 0, c)),
    ]
    args = [planes, w_taps]
    if has_sc:
        in_specs.append(pl.BlockSpec((1, cin_p, tn), lambda g, c: (0, 0, c)))
        args.append(w_sc)
    if has_res:
        in_specs.append(pl.BlockSpec((nb, oh, ow, tn), lambda g, c: (g, 0, 0, c)))
        args.append(residual)

    out_spec = pl.BlockSpec((nb, oh, ow, tn), lambda g, c: (g, 0, 0, c))
    if has_sc:
        out_shape = (jax.ShapeDtypeStruct((n, oh, ow, cout_p), out_dtype),
                     jax.ShapeDtypeStruct((n, oh, ow, cout_p), jnp.bfloat16))
        out_specs = (out_spec, out_spec)
    else:
        out_shape = jax.ShapeDtypeStruct((n, oh, ow, cout_p), out_dtype)
        out_specs = out_spec

    return pl.pallas_call(
        kernel,
        out_shape=out_shape,
        grid=(n_groups, cout_p // tn),
        in_specs=in_specs,
        out_specs=out_specs,
        compiler_params=pltpu.CompilerParams(
            dimension_semantics=("parallel", "parallel")),
    )(*args)


# ---------------------------------------------------------------------------
# Parameters (deterministic kaiming init; lane-dense weight layout precomputed)
# ---------------------------------------------------------------------------
def _kaiming(key, cout, cin, kh, kw):
    std = math.sqrt(2.0 / (cout * kh * kw))        # fan_out, relu gain
    return (std * jax.random.normal(key, (cout, cin, kh, kw))).astype(jnp.float32)


def _prep_weight(w_oihw, cin_p, cout_p):
    """(Cout, Cin, kh, kw) -> lane-dense (kh*kw, Cin_p, Cout_p) bf16."""
    cout, cin, kh, kw = w_oihw.shape
    wt = jnp.transpose(w_oihw, (2, 3, 1, 0)).reshape(kh * kw, cin, cout)
    wt = jnp.pad(wt, ((0, 0), (0, cin_p - cin), (0, cout_p - cout)))
    return wt.astype(jnp.bfloat16)


def init_basic_block(key, in_planes, planes, stride):
    k1, k2, k3 = jax.random.split(key, 3)
    cin_p, cout_p = _round_up(in_planes, LANE), _round_up(planes, LANE)
    raw = {"w1": _kaiming(k1, planes, in_planes, 3, 3),
           "w2": _kaiming(k2, planes, planes, 3, 3)}
    if stride != 1 or in_planes != planes:          # expansion = 1
        raw["w_sc"] = _kaiming(k3, planes, in_planes, 1, 1)
    params = {"w1": _prep_weight(raw["w1"], cin_p, cout_p),
              "w2": _prep_weight(raw["w2"], cout_p, cout_p)}
    if "w_sc" in raw:
        params["w_sc"] = _prep_weight(raw["w_sc"], cin_p, cout_p)
    return params, raw


# ---------------------------------------------------------------------------
# BasicBlock forward
# ---------------------------------------------------------------------------
def basic_block_forward(params, x_nchw, lower=None, upper=None, *,
                        in_planes, planes, stride, out_dtype=jnp.float32):
    # TODO(synk): NormDistConv's l_inf-distance / mean_normalize internals are
    # external to the provided spec; each conv is a standard bias-free conv.
    # TODO(synk): only the lower=upper=None branch of BasicBlock.forward is
    # implemented (interval-bound propagation needs NormDistConv's bound rules).
    assert lower is None and upper is None
    cin_p = _round_up(in_planes, LANE)

    x = jnp.transpose(x_nchw, (0, 2, 3, 1))                         # NCHW->NHWC
    x = jnp.pad(x, ((0, 0), (0, 0), (0, 0), (0, cin_p - x.shape[-1])))
    x = x.astype(jnp.bfloat16)

    if "w_sc" in params:
        # conv1 and the 1x1 shortcut fused into one pallas_call (two outputs).
        h1, res = _conv_call(x, params["w1"], ksize=3, stride=stride, pad=1,
                             w_sc=params["w_sc"])
    else:
        h1 = _conv_call(x, params["w1"], ksize=3, stride=stride, pad=1)
        res = x                        # identity shortcut (stride==1, in==planes)

    # conv2 with the 0.8/0.2 blend fused into its epilogue.
    out = _conv_call(h1, params["w2"], ksize=3, stride=1, pad=1,
                     residual=res, alpha=0.8, beta=0.2, out_dtype=out_dtype)

    out = out[..., :planes]                                  # drop lane padding
    return jnp.transpose(out, (0, 3, 1, 2)), None, None      # back to NCHW


# ---------------------------------------------------------------------------
# Demo / self-check
# ---------------------------------------------------------------------------
def _ref_conv(x_nhwc, w_oihw, stride, pad):
    return jax.lax.conv_general_dilated(
        x_nhwc, jnp.transpose(w_oihw, (2, 3, 1, 0)),
        window_strides=(stride, stride), padding=[(pad, pad), (pad, pad)],
        dimension_numbers=("NHWC", "HWIO", "NHWC"))


def _check(in_planes, planes, stride, n, h, w):
    key = jax.random.PRNGKey(0)
    pkey, xkey = jax.random.split(key)
    params, raw = init_basic_block(pkey, in_planes, planes, stride)
    x = jax.random.normal(xkey, (n, in_planes, h, w), dtype=jnp.float32)

    block = jax.jit(functools.partial(
        basic_block_forward, in_planes=in_planes, planes=planes, stride=stride))
    out, lo, up = block(params, x)
    out = jax.block_until_ready(out)

    # Pure-JAX reference (f32 math on the same bf16-rounded operands/intermediates)
    rnd = lambda a: a.astype(jnp.bfloat16).astype(jnp.float32)
    xr = rnd(jnp.transpose(x, (0, 2, 3, 1)))
    h1r = rnd(_ref_conv(xr, rnd(raw["w1"]), stride, 1))
    o1 = _ref_conv(h1r, rnd(raw["w2"]), 1, 1)
    o2 = rnd(_ref_conv(xr, rnd(raw["w_sc"]), stride, 0)) if "w_sc" in raw else xr
    ref = jnp.transpose(0.8 * o1 + 0.2 * o2, (0, 3, 1, 2))

    oh = (h - 1) // stride + 1
    assert out.shape == (n, planes, oh, oh), out.shape
    assert lo is None and up is None
    assert bool(jnp.all(jnp.isfinite(out)))
    err = float(jnp.max(jnp.abs(out - ref)))
    assert err < 5e-2, f"max abs err vs reference: {err}"


if __name__ == "__main__":
    _check(64, 128, 2, n=2, h=16, w=16)    # transition block (fused 1x1 shortcut)
    _check(128, 128, 1, n=2, h=8, w=8)     # identity-shortcut block
    print("KERNEL_OK")
</pallas_src>

<mosaic_0001>
module attributes {stable_mosaic.version = 11 : i64} {
  func.func @_conv_kernel(%arg0: i32, %arg1: i32, %arg2: memref<6x2x9x8x128xbf16, #tpu.memory_space<vmem>>, %arg3: memref<9x128x128xbf16, #tpu.memory_space<vmem>>, %arg4: memref<1x128x128xbf16, #tpu.memory_space<vmem>>, %arg5: memref<2x8x8x128xbf16, #tpu.memory_space<vmem>>, %arg6: memref<2x8x8x128xbf16, #tpu.memory_space<vmem>>) attributes {dimension_semantics = [#tpu.dimension_semantics<parallel>, #tpu.dimension_semantics<parallel>], iteration_bounds = array<i64: 1, 1>, scalar_prefetch = 0 : i64, scratch_operands = 0 : i64, tpu.core_type = #tpu.core_type<tc>, window_params = [{transform_indices = @transform_0, window_bounds = array<i64: 6, 2, 9, 8, 128>}, {transform_indices = @transform_1, window_bounds = array<i64: 9, 128, 128>}, {transform_indices = @transform_2, window_bounds = array<i64: 1, 128, 128>}, {transform_indices = @transform_3, window_bounds = array<i64: 2, 8, 8, 128>}, {transform_indices = @transform_4, window_bounds = array<i64: 2, 8, 8, 128>}]} {
    %c0 = arith.constant 0 : index
    %c0_0 = arith.constant 0 : index
    %c0_1 = arith.constant 0 : index
    %c0_2 = arith.constant 0 : index
    %c0_3 = arith.constant 0 : index
    %0 = vector.load %arg2[%c0, %c0_0, %c0_1, %c0_2, %c0_3] : memref<6x2x9x8x128xbf16, #tpu.memory_space<vmem>>, vector<1x2x8x8x128xbf16>
    %1 = vector.shape_cast %0 : vector<1x2x8x8x128xbf16> to vector<2x8x8x128xbf16>
    %2 = vector.shape_cast %1 : vector<2x8x8x128xbf16> to vector<128x128xbf16>
    %c0_4 = arith.constant 0 : index
    %c0_5 = arith.constant 0 : index
    %c0_6 = arith.constant 0 : index
    %3 = vector.load %arg3[%c0_4, %c0_5, %c0_6] : memref<9x128x128xbf16, #tpu.memory_space<vmem>>, vector<1x128x128xbf16>
    %4 = vector.shape_cast %3 : vector<1x128x128xbf16> to vector<128x128xbf16>
    %cst = arith.constant dense<0.000000e+00> : vector<128x128xf32>
    %5 = tpu.matmul %2, %4, %cst {dimension_numbers = #tpu.dot_dimension_numbers<[1], [0], [0], [1], [0, 0, 1, 1], [], []>} : vector<128x128xbf16>, vector<128x128xbf16>, vector<128x128xf32> -> vector<128x128xf32>
    %c1 = arith.constant 1 : index
    %c0_7 = arith.constant 0 : index
    %c0_8 = arith.constant 0 : index
    %c0_9 = arith.constant 0 : index
    %c0_10 = arith.constant 0 : index
    %6 = vector.load %arg2[%c1, %c0_7, %c0_8, %c0_9, %c0_10] : memref<6x2x9x8x128xbf16, #tpu.memory_space<vmem>>, vector<1x2x8x8x128xbf16>
    %7 = vector.shape_cast %6 : vector<1x2x8x8x128xbf16> to vector<2x8x8x128xbf16>
    %8 = vector.shape_cast %7 : vector<2x8x8x128xbf16> to vector<128x128xbf16>
    %c1_11 = arith.constant 1 : index
    %c0_12 = arith.constant 0 : index
    %c0_13 = arith.constant 0 : index
    %9 = vector.load %arg3[%c1_11, %c0_12, %c0_13] : memref<9x128x128xbf16, #tpu.memory_space<vmem>>, vector<1x128x128xbf16>
    %10 = vector.shape_cast %9 : vector<1x128x128xbf16> to vector<128x128xbf16>
    %cst_14 = arith.constant dense<0.000000e+00> : vector<128x128xf32>
    %11 = tpu.matmul %8, %10, %cst_14 {dimension_numbers = #tpu.dot_dimension_numbers<[1], [0], [0], [1], [0, 0, 1, 1], [], []>} : vector<128x128xbf16>, vector<128x128xbf16>, vector<128x128xf32> -> vector<128x128xf32>
    %12 = arith.addf %5, %11 : vector<128x128xf32>
    %c2 = arith.constant 2 : index
    %c0_15 = arith.constant 0 : index
    %c0_16 = arith.constant 0 : index
    %c0_17 = arith.constant 0 : index
    %c0_18 = arith.constant 0 : index
    %13 = vector.load %arg2[%c2, %c0_15, %c0_16, %c0_17, %c0_18] : memref<6x2x9x8x128xbf16, #tpu.memory_space<vmem>>, vector<1x2x8x8x128xbf16>
    %14 = vector.shape_cast %13 : vector<1x2x8x8x128xbf16> to vector<2x8x8x128xbf16>
    %15 = vector.shape_cast %14 : vector<2x8x8x128xbf16> to vector<128x128xbf16>
    %c2_19 = arith.constant 2 : index
    %c0_20 = arith.constant 0 : index
    %c0_21 = arith.constant 0 : index
    %16 = vector.load %arg3[%c2_19, %c0_20, %c0_21] : memref<9x128x128xbf16, #tpu.memory_space<vmem>>, vector<1x128x128xbf16>
    %17 = vector.shape_cast %16 : vector<1x128x128xbf16> to vector<128x128xbf16>
    %cst_22 = arith.constant dense<0.000000e+00> : vector<128x128xf32>
    %18 = tpu.matmul %15, %17, %cst_22 {dimension_numbers = #tpu.dot_dimension_numbers<[1], [0], [0], [1], [0, 0, 1, 1], [], []>} : vector<128x128xbf16>, vector<128x128xbf16>, vector<128x128xf32> -> vector<128x128xf32>
    %19 = arith.addf %12, %18 : vector<128x128xf32>
    %c3 = arith.constant 3 : index
    %c0_23 = arith.constant 0 : index
    %c0_24 = arith.constant 0 : index
    %c0_25 = arith.constant 0 : index
    %c0_26 = arith.constant 0 : index
    %20 = vector.load %arg2[%c3, %c0_23, %c0_24, %c0_25, %c0_26] : memref<6x2x9x8x128xbf16, #tpu.memory_space<vmem>>, vector<1x2x8x8x128xbf16>
    %21 = vector.shape_cast %20 : vector<1x2x8x8x128xbf16> to vector<2x8x8x128xbf16>
    %22 = vector.shape_cast %21 : vector<2x8x8x128xbf16> to vector<128x128xbf16>
    %c3_27 = arith.constant 3 : index
    %c0_28 = arith.constant 0 : index
    %c0_29 = arith.constant 0 : index
    %23 = vector.load %arg3[%c3_27, %c0_28, %c0_29] : memref<9x128x128xbf16, #tpu.memory_space<vmem>>, vector<1x128x128xbf16>
    %24 = vector.shape_cast %23 : vector<1x128x128xbf16> to vector<128x128xbf16>
    %cst_30 = arith.constant dense<0.000000e+00> : vector<128x128xf32>
    %25 = tpu.matmul %22, %24, %cst_30 {dimension_numbers = #tpu.dot_dimension_numbers<[1], [0], [0], [1], [0, 0, 1, 1], [], []>} : vector<128x128xbf16>, vector<128x128xbf16>, vector<128x128xf32> -> vector<128x128xf32>
    %26 = arith.addf %19, %25 : vector<128x128xf32>
    %c4 = arith.constant 4 : index
    %c0_31 = arith.constant 0 : index
    %c0_32 = arith.constant 0 : index
    %c0_33 = arith.constant 0 : index
    %c0_34 = arith.constant 0 : index
    %27 = vector.load %arg2[%c4, %c0_31, %c0_32, %c0_33, %c0_34] : memref<6x2x9x8x128xbf16, #tpu.memory_space<vmem>>, vector<1x2x8x8x128xbf16>
    %28 = vector.shape_cast %27 : vector<1x2x8x8x128xbf16> to vector<2x8x8x128xbf16>
    %29 = vector.shape_cast %28 : vector<2x8x8x128xbf16> to vector<128x128xbf16>
    %c4_35 = arith.constant 4 : index
    %c0_36 = arith.constant 0 : index
    %c0_37 = arith.constant 0 : index
    %30 = vector.load %arg3[%c4_35, %c0_36, %c0_37] : memref<9x128x128xbf16, #tpu.memory_space<vmem>>, vector<1x128x128xbf16>
    %31 = vector.shape_cast %30 : vector<1x128x128xbf16> to vector<128x128xbf16>
    %cst_38 = arith.constant dense<0.000000e+00> : vector<128x128xf32>
    %32 = tpu.matmul %29, %31, %cst_38 {dimension_numbers = #tpu.dot_dimension_numbers<[1], [0], [0], [1], [0, 0, 1, 1], [], []>} : vector<128x128xbf16>, vector<128x128xbf16>, vector<128x128xf32> -> vector<128x128xf32>
    %33 = arith.addf %26, %32 : vector<128x128xf32>
    %c5 = arith.constant 5 : index
    %c0_39 = arith.constant 0 : index
    %c0_40 = arith.constant 0 : index
    %c0_41 = arith.constant 0 : index
    %c0_42 = arith.constant 0 : index
    %34 = vector.load %arg2[%c5, %c0_39, %c0_40, %c0_41, %c0_42] : memref<6x2x9x8x128xbf16, #tpu.memory_space<vmem>>, vector<1x2x8x8x128xbf16>
    %35 = vector.shape_cast %34 : vector<1x2x8x8x128xbf16> to vector<2x8x8x128xbf16>
    %36 = vector.shape_cast %35 : vector<2x8x8x128xbf16> to vector<128x128xbf16>
    %c5_43 = arith.constant 5 : index
    %c0_44 = arith.constant 0 : index
    %c0_45 = arith.constant 0 : index
    %37 = vector.load %arg3[%c5_43, %c0_44, %c0_45] : memref<9x128x128xbf16, #tpu.memory_space<vmem>>, vector<1x128x128xbf16>
    %38 = vector.shape_cast %37 : vector<1x128x128xbf16> to vector<128x128xbf16>
    %cst_46 = arith.constant dense<0.000000e+00> : vector<128x128xf32>
    %39 = tpu.matmul %36, %38, %cst_46 {dimension_numbers = #tpu.dot_dimension_numbers<[1], [0], [0], [1], [0, 0, 1, 1], [], []>} : vector<128x128xbf16>, vector<128x128xbf16>, vector<128x128xf32> -> vector<128x128xf32>
    %40 = arith.addf %33, %39 : vector<128x128xf32>
    %c0_47 = arith.constant 0 : index
    %c0_48 = arith.constant 0 : index
    %c1_49 = arith.constant 1 : index
    %c0_50 = arith.constant 0 : index
    %c0_51 = arith.constant 0 : index
    %41 = vector.load %arg2[%c0_47, %c0_48, %c1_49, %c0_50, %c0_51] : memref<6x2x9x8x128xbf16, #tpu.memory_space<vmem>>, vector<1x2x8x8x128xbf16>
    %42 = vector.shape_cast %41 : vector<1x2x8x8x128xbf16> to vector<2x8x8x128xbf16>
    %43 = vector.shape_cast %42 : vector<2x8x8x128xbf16> to vector<128x128xbf16>
    %c6 = arith.constant 6 : index
    %c0_52 = arith.constant 0 : index
    %c0_53 = arith.constant 0 : index
    %44 = vector.load %arg3[%c6, %c0_52, %c0_53] : memref<9x128x128xbf16, #tpu.memory_space<vmem>>, vector<1x128x128xbf16>
    %45 = vector.shape_cast %44 : vector<1x128x128xbf16> to vector<128x128xbf16>
    %cst_54 = arith.constant dense<0.000000e+00> : vector<128x128xf32>
    %46 = tpu.matmul %43, %45, %cst_54 {dimension_numbers = #tpu.dot_dimension_numbers<[1], [0], [0], [1], [0, 0, 1, 1], [], []>} : vector<128x128xbf16>, vector<128x128xbf16>, vector<128x128xf32> -> vector<128x128xf32>
    %47 = arith.addf %40, %46 : vector<128x128xf32>
    %c1_55 = arith.constant 1 : index
    %c0_56 = arith.constant 0 : index
    %c1_57 = arith.constant 1 : index
    %c0_58 = arith.constant 0 : index
    %c0_59 = arith.constant 0 : index
    %48 = vector.load %arg2[%c1_55, %c0_56, %c1_57, %c0_58, %c0_59] : memref<6x2x9x8x128xbf16, #tpu.memory_space<vmem>>, vector<1x2x8x8x128xbf16>
    %49 = vector.shape_cast %48 : vector<1x2x8x8x128xbf16> to vector<2x8x8x128xbf16>
    %50 = vector.shape_cast %49 : vector<2x8x8x128xbf16> to vector<128x128xbf16>
    %c7 = arith.constant 7 : index
    %c0_60 = arith.constant 0 : index
    %c0_61 = arith.constant 0 : index
    %51 = vector.load %arg3[%c7, %c0_60, %c0_61] : memref<9x128x128xbf16, #tpu.memory_space<vmem>>, vector<1x128x128xbf16>
    %52 = vector.shape_cast %51 : vector<1x128x128xbf16> to vector<128x128xbf16>
    %cst_62 = arith.constant dense<0.000000e+00> : vector<128x128xf32>
    %53 = tpu.matmul %50, %52, %cst_62 {dimension_numbers = #tpu.dot_dimension_numbers<[1], [0], [0], [1], [0, 0, 1, 1], [], []>} : vector<128x128xbf16>, vector<128x128xbf16>, vector<128x128xf32> -> vector<128x128xf32>
    %54 = arith.addf %47, %53 : vector<128x128xf32>
    %c2_63 = arith.constant 2 : index
    %c0_64 = arith.constant 0 : index
    %c1_65 = arith.constant 1 : index
    %c0_66 = arith.constant 0 : index
    %c0_67 = arith.constant 0 : index
    %55 = vector.load %arg2[%c2_63, %c0_64, %c1_65, %c0_66, %c0_67] : memref<6x2x9x8x128xbf16, #tpu.memory_space<vmem>>, vector<1x2x8x8x128xbf16>
    %56 = vector.shape_cast %55 : vector<1x2x8x8x128xbf16> to vector<2x8x8x128xbf16>
    %57 = vector.shape_cast %56 : vector<2x8x8x128xbf16> to vector<128x128xbf16>
    %c8 = arith.constant 8 : index
    %c0_68 = arith.constant 0 : index
    %c0_69 = arith.constant 0 : index
    %58 = vector.load %arg3[%c8, %c0_68, %c0_69] : memref<9x128x128xbf16, #tpu.memory_space<vmem>>, vector<1x128x128xbf16>
    %59 = vector.shape_cast %58 : vector<1x128x128xbf16> to vector<128x128xbf16>
    %cst_70 = arith.constant dense<0.000000e+00> : vector<128x128xf32>
    %60 = tpu.matmul %57, %59, %cst_70 {dimension_numbers = #tpu.dot_dimension_numbers<[1], [0], [0], [1], [0, 0, 1, 1], [], []>} : vector<128x128xbf16>, vector<128x128xbf16>, vector<128x128xf32> -> vector<128x128xf32>
    %61 = arith.addf %54, %60 : vector<128x128xf32>
    %62 = vector.shape_cast %61 : vector<128x128xf32> to vector<2x8x8x128xf32>
    %63 = arith.truncf %62 : vector<2x8x8x128xf32> to vector<2x8x8x128xbf16>
    %c0_71 = arith.constant 0 : index
    %c0_72 = arith.constant 0 : index
    %c0_73 = arith.constant 0 : index
    %c0_74 = arith.constant 0 : index
    %64 = vector.load %arg5[%c0_71, %c0_72, %c0_73, %c0_74] : memref<2x8x8x128xbf16, #tpu.memory_space<vmem>>, vector<2x8x8x128xbf16>
    tpu.vector_store %arg5[%c0_71, %c0_72, %c0_73, %c0_74], %63 {strides = array<i32>} : memref<2x8x8x128xbf16, #tpu.memory_space<vmem>>, vector<2x8x8x128xbf16>,
    %c4_75 = arith.constant 4 : index
    %c0_76 = arith.constant 0 : index
    %c0_77 = arith.constant 0 : index
    %c0_78 = arith.constant 0 : index
    %c0_79 = arith.constant 0 : index
    %65 = vector.load %arg2[%c4_75, %c0_76, %c0_77, %c0_78, %c0_79] : memref<6x2x9x8x128xbf16, #tpu.memory_space<vmem>>, vector<1x2x8x8x128xbf16>
    %66 = vector.shape_cast %65 : vector<1x2x8x8x128xbf16> to vector<2x8x8x128xbf16>
    %67 = vector.shape_cast %66 : vector<2x8x8x128xbf16> to vector<128x128xbf16>
    %c0_80 = arith.constant 0 : index
    %c0_81 = arith.constant 0 : index
    %c0_82 = arith.constant 0 : index
    %68 = vector.load %arg4[%c0_80, %c0_81, %c0_82] : memref<1x128x128xbf16, #tpu.memory_space<vmem>>, vector<1x128x128xbf16>
    %69 = vector.shape_cast %68 : vector<1x128x128xbf16> to vector<128x128xbf16>
    %cst_83 = arith.constant dense<0.000000e+00> : vector<128x128xf32>
    %70 = tpu.matmul %67, %69, %cst_83 {dimension_numbers = #tpu.dot_dimension_numbers<[1], [0], [0], [1], [0, 0, 1, 1], [], []>} : vector<128x128xbf16>, vector<128x128xbf16>, vector<128x128xf32> -> vector<128x128xf32>
    %71 = vector.shape_cast %70 : vector<128x128xf32> to vector<2x8x8x128xf32>
    %72 = arith.truncf %71 : vector<2x8x8x128xf32> to vector<2x8x8x128xbf16>
    %c0_84 = arith.constant 0 : index
    %c0_85 = arith.constant 0 : index
    %c0_86 = arith.constant 0 : index
    %c0_87 = arith.constant 0 : index
    %73 = vector.load %arg6[%c0_84, %c0_85, %c0_86, %c0_87] : memref<2x8x8x128xbf16, #tpu.memory_space<vmem>>, vector<2x8x8x128xbf16>
    tpu.vector_store %arg6[%c0_84, %c0_85, %c0_86, %c0_87], %72 {strides = array<i32>} : memref<2x8x8x128xbf16, #tpu.memory_space<vmem>>, vector<2x8x8x128xbf16>,
    return
  }
  func.func @transform_0(%arg0: i32, %arg1: i32) -> (i32, i32, i32, i32, i32) {
    %c0_i32 = arith.constant 0 : i32
    %c0_i32_0 = arith.constant 0 : i32
    %c0_i32_1 = arith.constant 0 : i32
    %c0_i32_2 = arith.constant 0 : i32
    %c0_i32_3 = arith.constant 0 : i32
    return %c0_i32, %arg0, %c0_i32_0, %c0_i32_1, %c0_i32_2 : i32, i32, i32, i32, i32
  }
  func.func @transform_1(%arg0: i32, %arg1: i32) -> (i32, i32, i32) {
    %c0_i32 = arith.constant 0 : i32
    %c0_i32_0 = arith.constant 0 : i32
    %c0_i32_1 = arith.constant 0 : i32
    return %c0_i32, %c0_i32_0, %arg1 : i32, i32, i32
  }
  func.func @transform_2(%arg0: i32, %arg1: i32) -> (i32, i32, i32) {
    %c0_i32 = arith.constant 0 : i32
    %c0_i32_0 = arith.constant 0 : i32
    %c0_i32_1 = arith.constant 0 : i32
    return %c0_i32, %c0_i32_0, %arg1 : i32, i32, i32
  }
  func.func @transform_3(%arg0: i32, %arg1: i32) -> (i32, i32, i32, i32) {
    %c0_i32 = arith.constant 0 : i32
    %c0_i32_0 = arith.constant 0 : i32
    %c0_i32_1 = arith.constant 0 : i32
    return %arg0, %c0_i32, %c0_i32_0, %arg1 : i32, i32, i32, i32
  }
  func.func @transform_4(%arg0: i32, %arg1: i32) -> (i32, i32, i32, i32) {
    %c0_i32 = arith.constant 0 : i32
    %c0_i32_0 = arith.constant 0 : i32
    %c0_i32_1 = arith.constant 0 : i32
    return %arg0, %c0_i32, %c0_i32_0, %arg1 : i32, i32, i32, i32
  }
}

module attributes {stable_mosaic.version = 11 : i64} {
  func.func @_conv_kernel(%arg0: i32, %arg1: i32, %arg2: memref<3x2x10x8x128xbf16, #tpu.memory_space<vmem>>, %arg3: memref<9x128x128xbf16, #tpu.memory_space<vmem>>, %arg4: memref<2x8x8x128xbf16, #tpu.memory_space<vmem>>, %arg5: memref<2x8x8x128xf32, #tpu.memory_space<vmem>>) attributes {dimension_semantics = [#tpu.dimension_semantics<parallel>, #tpu.dimension_semantics<parallel>], iteration_bounds = array<i64: 1, 1>, scalar_prefetch = 0 : i64, scratch_operands = 0 : i64, tpu.core_type = #tpu.core_type<tc>, window_params = [{transform_indices = @transform_0, window_bounds = array<i64: 3, 2, 10, 8, 128>}, {transform_indices = @transform_1, window_bounds = array<i64: 9, 128, 128>}, {transform_indices = @transform_2, window_bounds = array<i64: 2, 8, 8, 128>}, {transform_indices = @transform_3, window_bounds = array<i64: 2, 8, 8, 128>}]} {
    %c0 = arith.constant 0 : index
    %c0_0 = arith.constant 0 : index
    %c0_1 = arith.constant 0 : index
    %c0_2 = arith.constant 0 : index
    %c0_3 = arith.constant 0 : index
    %0 = vector.load %arg2[%c0, %c0_0, %c0_1, %c0_2, %c0_3] : memref<3x2x10x8x128xbf16, #tpu.memory_space<vmem>>, vector<1x2x8x8x128xbf16>
    %1 = vector.shape_cast %0 : vector<1x2x8x8x128xbf16> to vector<2x8x8x128xbf16>
    %2 = vector.shape_cast %1 : vector<2x8x8x128xbf16> to vector<128x128xbf16>
    %c0_4 = arith.constant 0 : index
    %c0_5 = arith.constant 0 : index
    %c0_6 = arith.constant 0 : index
    %3 = vector.load %arg3[%c0_4, %c0_5, %c0_6] : memref<9x128x128xbf16, #tpu.memory_space<vmem>>, vector<1x128x128xbf16>
    %4 = vector.shape_cast %3 : vector<1x128x128xbf16> to vector<128x128xbf16>
    %cst = arith.constant dense<0.000000e+00> : vector<128x128xf32>
    %5 = tpu.matmul %2, %4, %cst {dimension_numbers = #tpu.dot_dimension_numbers<[1], [0], [0], [1], [0, 0, 1, 1], [], []>} : vector<128x128xbf16>, vector<128x128xbf16>, vector<128x128xf32> -> vector<128x128xf32>
    %c1 = arith.constant 1 : index
    %c0_7 = arith.constant 0 : index
    %c0_8 = arith.constant 0 : index
    %c0_9 = arith.constant 0 : index
    %c0_10 = arith.constant 0 : index
    %6 = vector.load %arg2[%c1, %c0_7, %c0_8, %c0_9, %c0_10] : memref<3x2x10x8x128xbf16, #tpu.memory_space<vmem>>, vector<1x2x8x8x128xbf16>
    %7 = vector.shape_cast %6 : vector<1x2x8x8x128xbf16> to vector<2x8x8x128xbf16>
    %8 = vector.shape_cast %7 : vector<2x8x8x128xbf16> to vector<128x128xbf16>
    %c1_11 = arith.constant 1 : index
    %c0_12 = arith.constant 0 : index
    %c0_13 = arith.constant 0 : index
    %9 = vector.load %arg3[%c1_11, %c0_12, %c0_13] : memref<9x128x128xbf16, #tpu.memory_space<vmem>>, vector<1x128x128xbf16>
    %10 = vector.shape_cast %9 : vector<1x128x128xbf16> to vector<128x128xbf16>
    %cst_14 = arith.constant dense<0.000000e+00> : vector<128x128xf32>
    %11 = tpu.matmul %8, %10, %cst_14 {dimension_numbers = #tpu.dot_dimension_numbers<[1], [0], [0], [1], [0, 0, 1, 1], [], []>} : vector<128x128xbf16>, vector<128x128xbf16>, vector<128x128xf32> -> vector<128x128xf32>
    %12 = arith.addf %5, %11 : vector<128x128xf32>
    %c2 = arith.constant 2 : index
    %c0_15 = arith.constant 0 : index
    %c0_16 = arith.constant 0 : index
    %c0_17 = arith.constant 0 : index
    %c0_18 = arith.constant 0 : index
    %13 = vector.load %arg2[%c2, %c0_15, %c0_16, %c0_17, %c0_18] : memref<3x2x10x8x128xbf16, #tpu.memory_space<vmem>>, vector<1x2x8x8x128xbf16>
    %14 = vector.shape_cast %13 : vector<1x2x8x8x128xbf16> to vector<2x8x8x128xbf16>
    %15 = vector.shape_cast %14 : vector<2x8x8x128xbf16> to vector<128x128xbf16>
    %c2_19 = arith.constant 2 : index
    %c0_20 = arith.constant 0 : index
    %c0_21 = arith.constant 0 : index
    %16 = vector.load %arg3[%c2_19, %c0_20, %c0_21] : memref<9x128x128xbf16, #tpu.memory_space<vmem>>, vector<1x128x128xbf16>
    %17 = vector.shape_cast %16 : vector<1x128x128xbf16> to vector<128x128xbf16>
    %cst_22 = arith.constant dense<0.000000e+00> : vector<128x128xf32>
    %18 = tpu.matmul %15, %17, %cst_22 {dimension_numbers = #tpu.dot_dimension_numbers<[1], [0], [0], [1], [0, 0, 1, 1], [], []>} : vector<128x128xbf16>, vector<128x128xbf16>, vector<128x128xf32> -> vector<128x128xf32>
    %19 = arith.addf %12, %18 : vector<128x128xf32>
    %c0_23 = arith.constant 0 : index
    %c0_24 = arith.constant 0 : index
    %c1_25 = arith.constant 1 : index
    %c0_26 = arith.constant 0 : index
    %c0_27 = arith.constant 0 : index
    %20 = vector.load %arg2[%c0_23, %c0_24, %c1_25, %c0_26, %c0_27] : memref<3x2x10x8x128xbf16, #tpu.memory_space<vmem>>, vector<1x2x8x8x128xbf16>
    %21 = vector.shape_cast %20 : vector<1x2x8x8x128xbf16> to vector<2x8x8x128xbf16>
    %22 = vector.shape_cast %21 : vector<2x8x8x128xbf16> to vector<128x128xbf16>
    %c3 = arith.constant 3 : index
    %c0_28 = arith.constant 0 : index
    %c0_29 = arith.constant 0 : index
    %23 = vector.load %arg3[%c3, %c0_28, %c0_29] : memref<9x128x128xbf16, #tpu.memory_space<vmem>>, vector<1x128x128xbf16>
    %24 = vector.shape_cast %23 : vector<1x128x128xbf16> to vector<128x128xbf16>
    %cst_30 = arith.constant dense<0.000000e+00> : vector<128x128xf32>
    %25 = tpu.matmul %22, %24, %cst_30 {dimension_numbers = #tpu.dot_dimension_numbers<[1], [0], [0], [1], [0, 0, 1, 1], [], []>} : vector<128x128xbf16>, vector<128x128xbf16>, vector<128x128xf32> -> vector<128x128xf32>
    %26 = arith.addf %19, %25 : vector<128x128xf32>
    %c1_31 = arith.constant 1 : index
    %c0_32 = arith.constant 0 : index
    %c1_33 = arith.constant 1 : index
    %c0_34 = arith.constant 0 : index
    %c0_35 = arith.constant 0 : index
    %27 = vector.load %arg2[%c1_31, %c0_32, %c1_33, %c0_34, %c0_35] : memref<3x2x10x8x128xbf16, #tpu.memory_space<vmem>>, vector<1x2x8x8x128xbf16>
    %28 = vector.shape_cast %27 : vector<1x2x8x8x128xbf16> to vector<2x8x8x128xbf16>
    %29 = vector.shape_cast %28 : vector<2x8x8x128xbf16> to vector<128x128xbf16>
    %c4 = arith.constant 4 : index
    %c0_36 = arith.constant 0 : index
    %c0_37 = arith.constant 0 : index
    %30 = vector.load %arg3[%c4, %c0_36, %c0_37] : memref<9x128x128xbf16, #tpu.memory_space<vmem>>, vector<1x128x128xbf16>
    %31 = vector.shape_cast %30 : vector<1x128x128xbf16> to vector<128x128xbf16>
    %cst_38 = arith.constant dense<0.000000e+00> : vector<128x128xf32>
    %32 = tpu.matmul %29, %31, %cst_38 {dimension_numbers = #tpu.dot_dimension_numbers<[1], [0], [0], [1], [0, 0, 1, 1], [], []>} : vector<128x128xbf16>, vector<128x128xbf16>, vector<128x128xf32> -> vector<128x128xf32>
    %33 = arith.addf %26, %32 : vector<128x128xf32>
    %c2_39 = arith.constant 2 : index
    %c0_40 = arith.constant 0 : index
    %c1_41 = arith.constant 1 : index
    %c0_42 = arith.constant 0 : index
    %c0_43 = arith.constant 0 : index
    %34 = vector.load %arg2[%c2_39, %c0_40, %c1_41, %c0_42, %c0_43] : memref<3x2x10x8x128xbf16, #tpu.memory_space<vmem>>, vector<1x2x8x8x128xbf16>
    %35 = vector.shape_cast %34 : vector<1x2x8x8x128xbf16> to vector<2x8x8x128xbf16>
    %36 = vector.shape_cast %35 : vector<2x8x8x128xbf16> to vector<128x128xbf16>
    %c5 = arith.constant 5 : index
    %c0_44 = arith.constant 0 : index
    %c0_45 = arith.constant 0 : index
    %37 = vector.load %arg3[%c5, %c0_44, %c0_45] : memref<9x128x128xbf16, #tpu.memory_space<vmem>>, vector<1x128x128xbf16>
    %38 = vector.shape_cast %37 : vector<1x128x128xbf16> to vector<128x128xbf16>
    %cst_46 = arith.constant dense<0.000000e+00> : vector<128x128xf32>
    %39 = tpu.matmul %36, %38, %cst_46 {dimension_numbers = #tpu.dot_dimension_numbers<[1], [0], [0], [1], [0, 0, 1, 1], [], []>} : vector<128x128xbf16>, vector<128x128xbf16>, vector<128x128xf32> -> vector<128x128xf32>
    %40 = arith.addf %33, %39 : vector<128x128xf32>
    %c0_47 = arith.constant 0 : index
    %c0_48 = arith.constant 0 : index
    %c2_49 = arith.constant 2 : index
    %c0_50 = arith.constant 0 : index
    %c0_51 = arith.constant 0 : index
    %41 = vector.load %arg2[%c0_47, %c0_48, %c2_49, %c0_50, %c0_51] : memref<3x2x10x8x128xbf16, #tpu.memory_space<vmem>>, vector<1x2x8x8x128xbf16>
    %42 = vector.shape_cast %41 : vector<1x2x8x8x128xbf16> to vector<2x8x8x128xbf16>
    %43 = vector.shape_cast %42 : vector<2x8x8x128xbf16> to vector<128x128xbf16>
    %c6 = arith.constant 6 : index
    %c0_52 = arith.constant 0 : index
    %c0_53 = arith.constant 0 : index
    %44 = vector.load %arg3[%c6, %c0_52, %c0_53] : memref<9x128x128xbf16, #tpu.memory_space<vmem>>, vector<1x128x128xbf16>
    %45 = vector.shape_cast %44 : vector<1x128x128xbf16> to vector<128x128xbf16>
    %cst_54 = arith.constant dense<0.000000e+00> : vector<128x128xf32>
    %46 = tpu.matmul %43, %45, %cst_54 {dimension_numbers = #tpu.dot_dimension_numbers<[1], [0], [0], [1], [0, 0, 1, 1], [], []>} : vector<128x128xbf16>, vector<128x128xbf16>, vector<128x128xf32> -> vector<128x128xf32>
    %47 = arith.addf %40, %46 : vector<128x128xf32>
    %c1_55 = arith.constant 1 : index
    %c0_56 = arith.constant 0 : index
    %c2_57 = arith.constant 2 : index
    %c0_58 = arith.constant 0 : index
    %c0_59 = arith.constant 0 : index
    %48 = vector.load %arg2[%c1_55, %c0_56, %c2_57, %c0_58, %c0_59] : memref<3x2x10x8x128xbf16, #tpu.memory_space<vmem>>, vector<1x2x8x8x128xbf16>
    %49 = vector.shape_cast %48 : vector<1x2x8x8x128xbf16> to vector<2x8x8x128xbf16>
    %50 = vector.shape_cast %49 : vector<2x8x8x128xbf16> to vector<128x128xbf16>
    %c7 = arith.constant 7 : index
    %c0_60 = arith.constant 0 : index
    %c0_61 = arith.constant 0 : index
    %51 = vector.load %arg3[%c7, %c0_60, %c0_61] : memref<9x128x128xbf16, #tpu.memory_space<vmem>>, vector<1x128x128xbf16>
    %52 = vector.shape_cast %51 : vector<1x128x128xbf16> to vector<128x128xbf16>
    %cst_62 = arith.constant dense<0.000000e+00> : vector<128x128xf32>
    %53 = tpu.matmul %50, %52, %cst_62 {dimension_numbers = #tpu.dot_dimension_numbers<[1], [0], [0], [1], [0, 0, 1, 1], [], []>} : vector<128x128xbf16>, vector<128x128xbf16>, vector<128x128xf32> -> vector<128x128xf32>
    %54 = arith.addf %47, %53 : vector<128x128xf32>
    %c2_63 = arith.constant 2 : index
    %c0_64 = arith.constant 0 : index
    %c2_65 = arith.constant 2 : index
    %c0_66 = arith.constant 0 : index
    %c0_67 = arith.constant 0 : index
    %55 = vector.load %arg2[%c2_63, %c0_64, %c2_65, %c0_66, %c0_67] : memref<3x2x10x8x128xbf16, #tpu.memory_space<vmem>>, vector<1x2x8x8x128xbf16>
    %56 = vector.shape_cast %55 : vector<1x2x8x8x128xbf16> to vector<2x8x8x128xbf16>
    %57 = vector.shape_cast %56 : vector<2x8x8x128xbf16> to vector<128x128xbf16>
    %c8 = arith.constant 8 : index
    %c0_68 = arith.constant 0 : index
    %c0_69 = arith.constant 0 : index
    %58 = vector.load %arg3[%c8, %c0_68, %c0_69] : memref<9x128x128xbf16, #tpu.memory_space<vmem>>, vector<1x128x128xbf16>
    %59 = vector.shape_cast %58 : vector<1x128x128xbf16> to vector<128x128xbf16>
    %cst_70 = arith.constant dense<0.000000e+00> : vector<128x128xf32>
    %60 = tpu.matmul %57, %59, %cst_70 {dimension_numbers = #tpu.dot_dimension_numbers<[1], [0], [0], [1], [0, 0, 1, 1], [], []>} : vector<128x128xbf16>, vector<128x128xbf16>, vector<128x128xf32> -> vector<128x128xf32>
    %61 = arith.addf %54, %60 : vector<128x128xf32>
    %c0_71 = arith.constant 0 : index
    %c0_72 = arith.constant 0 : index
    %c0_73 = arith.constant 0 : index
    %c0_74 = arith.constant 0 : index
    %62 = vector.load %arg4[%c0_71, %c0_72, %c0_73, %c0_74] : memref<2x8x8x128xbf16, #tpu.memory_space<vmem>>, vector<2x8x8x128xbf16>
    %63 = vector.shape_cast %62 : vector<2x8x8x128xbf16> to vector<128x128xbf16>
    %64 = arith.extf %63 : vector<128x128xbf16> to vector<128x128xf32>
    %cst_75 = arith.constant 8.000000e-01 : f32
    %65 = vector.broadcast %cst_75 : f32 to vector<128x128xf32>
    %66 = arith.mulf %65, %61 : vector<128x128xf32>
    %cst_76 = arith.constant 2.000000e-01 : f32
    %67 = vector.broadcast %cst_76 : f32 to vector<128x128xf32>
    %68 = arith.mulf %67, %64 : vector<128x128xf32>
    %69 = arith.addf %66, %68 : vector<128x128xf32>
    %70 = vector.shape_cast %69 : vector<128x128xf32> to vector<2x8x8x128xf32>
    %c0_77 = arith.constant 0 : index
    %c0_78 = arith.constant 0 : index
    %c0_79 = arith.constant 0 : index
    %c0_80 = arith.constant 0 : index
    %71 = vector.load %arg5[%c0_77, %c0_78, %c0_79, %c0_80] : memref<2x8x8x128xf32, #tpu.memory_space<vmem>>, vector<2x8x8x128xf32>
    tpu.vector_store %arg5[%c0_77, %c0_78, %c0_79, %c0_80], %70 {strides = array<i32>} : memref<2x8x8x128xf32, #tpu.memory_space<vmem>>, vector<2x8x8x128xf32>,
    return
  }
  func.func @transform_0(%arg0: i32, %arg1: i32) -> (i32, i32, i32, i32, i32) {
    %c0_i32 = arith.constant 0 : i32
    %c0_i32_0 = arith.constant 0 : i32
    %c0_i32_1 = arith.constant 0 : i32
    %c0_i32_2 = arith.constant 0 : i32
    %c0_i32_3 = arith.constant 0 : i32
    return %c0_i32, %arg0, %c0_i32_0, %c0_i32_1, %c0_i32_2 : i32, i32, i32, i32, i32
  }
  func.func @transform_1(%arg0: i32, %arg1: i32) -> (i32, i32, i32) {
    %c0_i32 = arith.constant 0 : i32
    %c0_i32_0 = arith.constant 0 : i32
    %c0_i32_1 = arith.constant 0 : i32
    return %c0_i32, %c0_i32_0, %arg1 : i32, i32, i32
  }
  func.func @transform_2(%arg0: i32, %arg1: i32) -> (i32, i32, i32, i32) {
    %c0_i32 = arith.constant 0 : i32
    %c0_i32_0 = arith.constant 0 : i32
    %c0_i32_1 = arith.constant 0 : i32
    return %arg0, %c0_i32, %c0_i32_0, %arg1 : i32, i32, i32, i32
  }
  func.func @transform_3(%arg0: i32, %arg1: i32) -> (i32, i32, i32, i32) {
    %c0_i32 = arith.constant 0 : i32
    %c0_i32_0 = arith.constant 0 : i32
    %c0_i32_1 = arith.constant 0 : i32
    return %arg0, %c0_i32, %c0_i32_0, %arg1 : i32, i32, i32, i32
  }
}

</mosaic_0001>

<llo_original>
// kernel: basic_block_forward.2
$region0: #{basic_block_forward.2}
  #allocation0 [shape = 'u32[]', space=smem, size = 0x4, offset = 0x4, fixed_abs, tag = 'smem constant byte address 0x4 - core index']
  #allocation1 [shape = 'u32[72,128]{1,0:T(1,128)}', space=vmem, size = 0x9000, scoped, tag = 'internal scratch']
  %s0 = inlined_call_operand.vmem [shape: bf16[6,2,9,8,128], index: 0, kind: input, shape index: {}]
  %s1 = inlined_call_operand.vmem [shape: bf16[9,128,128], index: 1, kind: input, shape index: {}]
  %s2 = inlined_call_operand.vmem [shape: bf16[1,128,128], index: 2, kind: input, shape index: {}]
  %s3 = inlined_call_operand.vmem [shape: bf16[2,8,8,128], index: 3, kind: output, shape index: {0}]
  %s4 = inlined_call_operand.vmem [shape: bf16[2,8,8,128], index: 4, kind: output, shape index: {1}]
  %5 = xla_tuple %s3, %s4
  %s6 = sld [smem:[#allocation0]]
  $region30: #{basic_block_forward.2} parent=0
    _
  %s8 = ssub.s32 1, %s6
  %s9 = scalar_select 0, %s8, %s6
  // Predicated region
  $region2: #{basic_block_forward.2} parent=0 // pred_check
    _
  $region3: #{basic_block_forward.2} parent=0 // pred_check_branch
    %11 = sbr.rel (0) target = $region5
  $region4: #{basic_block_forward.2} parent=0 // pred_region
    _
  $region5: #{basic_block_forward.2} parent=0 // pred_fallthru
    _
  // Predicated region
  $region6: #{basic_block_forward.2} parent=0 // pred_check
    _
  $region7: #{basic_block_forward.2} parent=0 // pred_check_branch
    %13 = sbr.rel (0) target = $region9
  $region8: #{basic_block_forward.2} parent=0 // pred_region
    _
  $region9: #{basic_block_forward.2} parent=0 // pred_fallthru
    _
  // Predicated region
  $region10: #{basic_block_forward.2} parent=0 // pred_check
    _
  $region11: #{basic_block_forward.2} parent=0 // pred_check_branch
    %15 = sbr.rel (0) target = $region13
  $region12: #{basic_block_forward.2} parent=0 // pred_region
    _
  $region13: #{basic_block_forward.2} parent=0 // pred_fallthru
    _
  %v16 = vld [vmem:[%s0] sm:$0xf]
  %v17 = vld [vmem:[%s0 + $0x4] sm:$0xf]
  %v18 = vld [vmem:[%s0 + $0x8] sm:$0xf]
  %v19 = vld [vmem:[%s0 + $0xc] sm:$0xf]
  %v20 = vld [vmem:[%s0 + $0x10] sm:$0xf]
  %v21 = vld [vmem:[%s0 + $0x14] sm:$0xf]
  %v22 = vld [vmem:[%s0 + $0x18] sm:$0xf]
  %v23 = vld [vmem:[%s0 + $0x1c] sm:$0xf]
  %v24 = vld [vmem:[%s0 + $0x24] sm:$0xf]
  %v25 = vld [vmem:[%s0 + $0x28] sm:$0xf]
  %v26 = vld [vmem:[%s0 + $0x2c] sm:$0xf]
  %v27 = vld [vmem:[%s0 + $0x30] sm:$0xf]
  %v28 = vld [vmem:[%s0 + $0x34] sm:$0xf]
  %v29 = vld [vmem:[%s0 + $0x38] sm:$0xf]
  %v30 = vld [vmem:[%s0 + $0x3c] sm:$0xf]
  %v31 = vld [vmem:[%s0 + $0x40] sm:$0xf]
  %v32 = vld [vmem:[%s1] sm:$0xf]
  %v33 = vld [vmem:[%s1 + $0x4] sm:$0xf]
  %v34 = vld [vmem:[%s1 + $0x8] sm:$0xf]
  %v35 = vld [vmem:[%s1 + $0xc] sm:$0xf]
  %v36 = vld [vmem:[%s1 + $0x10] sm:$0xf]
  %v37 = vld [vmem:[%s1 + $0x14] sm:$0xf]
  %v38 = vld [vmem:[%s1 + $0x18] sm:$0xf]
  %v39 = vld [vmem:[%s1 + $0x1c] sm:$0xf]
  %v40 = vld [vmem:[%s1 + $0x20] sm:$0xf]
  %v41 = vld [vmem:[%s1 + $0x24] sm:$0xf]
  %v42 = vld [vmem:[%s1 + $0x28] sm:$0xf]
  %v43 = vld [vmem:[%s1 + $0x2c] sm:$0xf]
  %v44 = vld [vmem:[%s1 + $0x30] sm:$0xf]
  %v45 = vld [vmem:[%s1 + $0x34] sm:$0xf]
  %v46 = vld [vmem:[%s1 + $0x38] sm:$0xf]
  %v47 = vld [vmem:[%s1 + $0x3c] sm:$0xf]
  %s48 = scalar_lea.vmem %s0, 72
  %v49 = vld [vmem:[%s48] sm:$0xf]
  %v50 = vld [vmem:[%s48 + $0x4] sm:$0xf]
  %v51 = vld [vmem:[%s48 + $0x8] sm:$0xf]
  %v52 = vld [vmem:[%s48 + $0xc] sm:$0xf]
  %v53 = vld [vmem:[%s48 + $0x10] sm:$0xf]
  %v54 = vld [vmem:[%s48 + $0x14] sm:$0xf]
  %v55 = vld [vmem:[%s48 + $0x18] sm:$0xf]
  %v56 = vld [vmem:[%s48 + $0x1c] sm:$0xf]
  %v57 = vld [vmem:[%s48 + $0x24] sm:$0xf]
  %v58 = vld [vmem:[%s48 + $0x28] sm:$0xf]
  %v59 = vld [vmem:[%s48 + $0x2c] sm:$0xf]
  %v60 = vld [vmem:[%s48 + $0x30] sm:$0xf]
  %v61 = vld [vmem:[%s48 + $0x34] sm:$0xf]
  %v62 = vld [vmem:[%s48 + $0x38] sm:$0xf]
  %v63 = vld [vmem:[%s48 + $0x3c] sm:$0xf]
  %v64 = vld [vmem:[%s48 + $0x40] sm:$0xf]
  %s65 = scalar_lea.vmem %s1, 64
  %v66 = vld [vmem:[%s65] sm:$0xf]
  %v67 = vld [vmem:[%s65 + $0x4] sm:$0xf]
  %v68 = vld [vmem:[%s65 + $0x8] sm:$0xf]
  %v69 = vld [vmem:[%s65 + $0xc] sm:$0xf]
  %v70 = vld [vmem:[%s65 + $0x10] sm:$0xf]
  %v71 = vld [vmem:[%s65 + $0x14] sm:$0xf]
  %v72 = vld [vmem:[%s65 + $0x18] sm:$0xf]
  %v73 = vld [vmem:[%s65 + $0x1c] sm:$0xf]
  %v74 = vld [vmem:[%s65 + $0x20] sm:$0xf]
  %v75 = vld [vmem:[%s65 + $0x24] sm:$0xf]
  %v76 = vld [vmem:[%s65 + $0x28] sm:$0xf]
  %v77 = vld [vmem:[%s65 + $0x2c] sm:$0xf]
  %v78 = vld [vmem:[%s65 + $0x30] sm:$0xf]
  %v79 = vld [vmem:[%s65 + $0x34] sm:$0xf]
  %v80 = vld [vmem:[%s65 + $0x38] sm:$0xf]
  %v81 = vld [vmem:[%s65 + $0x3c] sm:$0xf]
  %v98 = vunpack.c.l.b16 %v49
  %v99 = vunpack.c.l.b16 %v50
  %v100 = vunpack.c.l.b16 %v51
  %v101 = vunpack.c.l.b16 %v52
  %v102 = vunpack.c.l.b16 %v53
  %v103 = vunpack.c.l.b16 %v54
  %v104 = vunpack.c.l.b16 %v55
  %v105 = vunpack.c.l.b16 %v56
  %v106 = vunpack.c.l.b16 %v57
  %v107 = vunpack.c.l.b16 %v58
  %v108 = vunpack.c.l.b16 %v59
  %v109 = vunpack.c.l.b16 %v60
  %v110 = vunpack.c.l.b16 %v61
  %v111 = vunpack.c.l.b16 %v62
  %v112 = vunpack.c.l.b16 %v63
  %v113 = vunpack.c.l.b16 %v64
  %v114 = vpack.c.b16 %v99, %v98
  %v115 = vpack.c.b16 %v101, %v100
  %v116 = vpack.c.b16 %v103, %v102
  %v117 = vpack.c.b16 %v105, %v104
  %v118 = vpack.c.b16 %v107, %v106
  %v119 = vpack.c.b16 %v109, %v108
  %v120 = vpack.c.b16 %v111, %v110
  %v121 = vpack.c.b16 %v113, %v112
  %v146 = vunpack.c.l.b16 %v66
  %v147 = vunpack.c.l.b16 %v67
  %v148 = vunpack.c.l.b16 %v68
  %v149 = vunpack.c.l.b16 %v69
  %v150 = vunpack.c.l.b16 %v70
  %v151 = vunpack.c.l.b16 %v71
  %v152 = vunpack.c.l.b16 %v72
  %v153 = vunpack.c.l.b16 %v73
  %v154 = vunpack.c.l.b16 %v74
  %v155 = vunpack.c.l.b16 %v75
  %v156 = vunpack.c.l.b16 %v76
  %v157 = vunpack.c.l.b16 %v77
  %v158 = vunpack.c.l.b16 %v78
  %v159 = vunpack.c.l.b16 %v79
  %v160 = vunpack.c.l.b16 %v80
  %v161 = vunpack.c.l.b16 %v81
  %v162 = vpack.c.b16 %v147, %v146
  %v163 = vpack.c.b16 %v149, %v148
  %v164 = vpack.c.b16 %v151, %v150
  %v165 = vpack.c.b16 %v153, %v152
  %v166 = vpack.c.b16 %v155, %v154
  %v167 = vpack.c.b16 %v157, %v156
  %v168 = vpack.c.b16 %v159, %v158
  %v169 = vpack.c.b16 %v161, %v160
  %178 = vmatpush.bf16.msra.mxu0 %v169
  %179 = vmatpush.bf16.msra.mxu0 %v168
  %180 = vmatpush.bf16.msra.mxu0 %v167
  %181 = vmatpush.bf16.msra.mxu0 %v166
  %182 = vmatpush.bf16.msra.mxu0 %v165
  %183 = vmatpush.bf16.msra.mxu0 %v164
  %184 = vmatpush.bf16.msra.mxu0 %v163
  %185 = vmatpush.bf16.msra.mxu0 %v162
  %186 = vmatmul.bf16.gmra.mxu0 %v114
  %v187 = vpop.f32.mrf.mxu0
  %v188 = vadd.f32 0.0, %v187
  %v189 = vpop.f32.mrf.mxu0
  %v190 = vadd.f32 0.0, %v189
  %191 = vmatmul.bf16.gmra.mxu0 %v115
  %v192 = vpop.f32.mrf.mxu0
  %v193 = vadd.f32 0.0, %v192
  %v194 = vpop.f32.mrf.mxu0
  %v195 = vadd.f32 0.0, %v194
  %196 = vmatmul.bf16.gmra.mxu0 %v116
  %v197 = vpop.f32.mrf.mxu0
  %v198 = vadd.f32 0.0, %v197
  %v199 = vpop.f32.mrf.mxu0
  %v200 = vadd.f32 0.0, %v199
  %201 = vmatmul.bf16.gmra.mxu0 %v117
  %v202 = vpop.f32.mrf.mxu0
  %v203 = vadd.f32 0.0, %v202
  %v204 = vpop.f32.mrf.mxu0
  %v205 = vadd.f32 0.0, %v204
  %206 = vmatmul.bf16.gmra.mxu0 %v118
  %v207 = vpop.f32.mrf.mxu0
  %v208 = vadd.f32 0.0, %v207
  %v209 = vpop.f32.mrf.mxu0
  %v210 = vadd.f32 0.0, %v209
  %211 = vmatmul.bf16.gmra.mxu0 %v119
  %v212 = vpop.f32.mrf.mxu0
  %v213 = vadd.f32 0.0, %v212
  %v214 = vpop.f32.mrf.mxu0
  %v215 = vadd.f32 0.0, %v214
  %216 = vmatmul.bf16.gmra.mxu0 %v120
  %v217 = vpop.f32.mrf.mxu0
  %v218 = vadd.f32 0.0, %v217
  %v219 = vpop.f32.mrf.mxu0
  %v220 = vadd.f32 0.0, %v219
  %221 = vmatmul.bf16.gmra.mxu0 %v121
  %v222 = vpop.f32.mrf.mxu0
  %v223 = vadd.f32 0.0, %v222
  %v224 = vpop.f32.mrf.mxu0
  %v225 = vadd.f32 0.0, %v224
  %226 = vdwg.mxu0
  %v243 = vunpack.c.l.b16 %v16
  %v244 = vunpack.c.l.b16 %v17
  %v245 = vunpack.c.l.b16 %v18
  %v246 = vunpack.c.l.b16 %v19
  %v247 = vunpack.c.l.b16 %v20
  %v248 = vunpack.c.l.b16 %v21
  %v249 = vunpack.c.l.b16 %v22
  %v250 = vunpack.c.l.b16 %v23
  %v251 = vunpack.c.l.b16 %v24
  %v252 = vunpack.c.l.b16 %v25
  %v253 = vunpack.c.l.b16 %v26
  %v254 = vunpack.c.l.b16 %v27
  %v255 = vunpack.c.l.b16 %v28
  %v256 = vunpack.c.l.b16 %v29
  %v257 = vunpack.c.l.b16 %v30
  %v258 = vunpack.c.l.b16 %v31
  %v259 = vpack.c.b16 %v244, %v243
  %v260 = vpack.c.b16 %v246, %v245
  %v261 = vpack.c.b16 %v248, %v247
  %v262 = vpack.c.b16 %v250, %v249
  %v263 = vpack.c.b16 %v252, %v251
  %v264 = vpack.c.b16 %v254, %v253
  %v265 = vpack.c.b16 %v256, %v255
  %v266 = vpack.c.b16 %v258, %v257
  %v291 = vunpack.c.l.b16 %v32
  %v292 = vunpack.c.l.b16 %v33
  %v293 = vunpack.c.l.b16 %v34
  %v294 = vunpack.c.l.b16 %v35
  %v295 = vunpack.c.l.b16 %v36
  %v296 = vunpack.c.l.b16 %v37
  %v297 = vunpack.c.l.b16 %v38
  %v298 = vunpack.c.l.b16 %v39
  %v299 = vunpack.c.l.b16 %v40
  %v300 = vunpack.c.l.b16 %v41
  %v301 = vunpack.c.l.b16 %v42
  %v302 = vunpack.c.l.b16 %v43
  %v303 = vunpack.c.l.b16 %v44
  %v304 = vunpack.c.l.b16 %v45
  %v305 = vunpack.c.l.b16 %v46
  %v306 = vunpack.c.l.b16 %v47
  %v307 = vpack.c.b16 %v292, %v291
  %v308 = vpack.c.b16 %v294, %v293
  %v309 = vpack.c.b16 %v296, %v295
  %v310 = vpack.c.b16 %v298, %v297
  %v311 = vpack.c.b16 %v300, %v299
  %v312 = vpack.c.b16 %v302, %v301
  %v313 = vpack.c.b16 %v304, %v303
  %v314 = vpack.c.b16 %v306, %v305
  %323 = vmatpush.bf16.msra.mxu0 %v314
  %324 = vmatpush.bf16.msra.mxu0 %v313
  %325 = vmatpush.bf16.msra.mxu0 %v312
  %326 = vmatpush.bf16.msra.mxu0 %v311
  %327 = vmatpush.bf16.msra.mxu0 %v310
  %328 = vmatpush.bf16.msra.mxu0 %v309
  %329 = vmatpush.bf16.msra.mxu0 %v308
  %330 = vmatpush.bf16.msra.mxu0 %v307
  %331 = vmatmul.bf16.gmra.mxu0 %v259
  %v332 = vpop.f32.mrf.mxu0
  %v333 = vadd.f32 %v188, %v332
  %v334 = vpop.f32.mrf.mxu0
  %v335 = vadd.f32 %v190, %v334
  %336 = vmatmul.bf16.gmra.mxu0 %v260
  %v337 = vpop.f32.mrf.mxu0
  %v338 = vadd.f32 %v193, %v337
  %v339 = vpop.f32.mrf.mxu0
  %v340 = vadd.f32 %v195, %v339
  %341 = vmatmul.bf16.gmra.mxu0 %v261
  %v342 = vpop.f32.mrf.mxu0
  %v343 = vadd.f32 %v198, %v342
  %v344 = vpop.f32.mrf.mxu0
  %v345 = vadd.f32 %v200, %v344
  %346 = vmatmul.bf16.gmra.mxu0 %v262
  %v347 = vpop.f32.mrf.mxu0
  %v348 = vadd.f32 %v203, %v347
  %v349 = vpop.f32.mrf.mxu0
  %v350 = vadd.f32 %v205, %v349
  %351 = vmatmul.bf16.gmra.mxu0 %v263
  %v352 = vpop.f32.mrf.mxu0
  %v353 = vadd.f32 %v208, %v352
  %v354 = vpop.f32.mrf.mxu0
  %v355 = vadd.f32 %v210, %v354
  %356 = vmatmul.bf16.gmra.mxu0 %v264
  %v357 = vpop.f32.mrf.mxu0
  %v358 = vadd.f32 %v213, %v357
  %v359 = vpop.f32.mrf.mxu0
  %v360 = vadd.f32 %v215, %v359
  %361 = vmatmul.bf16.gmra.mxu0 %v265
  %v362 = vpop.f32.mrf.mxu0
  %v363 = vadd.f32 %v218, %v362
  %v364 = vpop.f32.mrf.mxu0
  %v365 = vadd.f32 %v220, %v364
  %366 = vmatmul.bf16.gmra.mxu0 %v266
  %v367 = vpop.f32.mrf.mxu0
  %v368 = vadd.f32 %v223, %v367
  %v369 = vpop.f32.mrf.mxu0
  %v370 = vadd.f32 %v225, %v369
  %371 = vdwg.mxu0
  %s372 = scalar_lea.vmem %s0, 144
  %v373 = vld [vmem:[%s372] sm:$0xf]
  %v374 = vld [vmem:[%s372 + $0x4] sm:$0xf]
  %v375 = vld [vmem:[%s372 + $0x8] sm:$0xf]
  %v376 = vld [vmem:[%s372 + $0xc] sm:$0xf]
  %v377 = vld [vmem:[%s372 + $0x10] sm:$0xf]
  %v378 = vld [vmem:[%s372 + $0x14] sm:$0xf]
  %v379 = vld [vmem:[%s372 + $0x18] sm:$0xf]
  %v380 = vld [vmem:[%s372 + $0x1c] sm:$0xf]
  %v381 = vld [vmem:[%s372 + $0x24] sm:$0xf]
  %v382 = vld [vmem:[%s372 + $0x28] sm:$0xf]
  %v383 = vld [vmem:[%s372 + $0x2c] sm:$0xf]
  %v384 = vld [vmem:[%s372 + $0x30] sm:$0xf]
  %v385 = vld [vmem:[%s372 + $0x34] sm:$0xf]
  %v386 = vld [vmem:[%s372 + $0x38] sm:$0xf]
  %v387 = vld [vmem:[%s372 + $0x3c] sm:$0xf]
  %v388 = vld [vmem:[%s372 + $0x40] sm:$0xf]
  %s389 = scalar_lea.vmem %s1, 128
  %v390 = vld [vmem:[%s389] sm:$0xf]
  %v391 = vld [vmem:[%s389 + $0x4] sm:$0xf]
  %v392 = vld [vmem:[%s389 + $0x8] sm:$0xf]
  %v393 = vld [vmem:[%s389 + $0xc] sm:$0xf]
  %v394 = vld [vmem:[%s389 + $0x10] sm:$0xf]
  %v395 = vld [vmem:[%s389 + $0x14] sm:$0xf]
  %v396 = vld [vmem:[%s389 + $0x18] sm:$0xf]
  %v397 = vld [vmem:[%s389 + $0x1c] sm:$0xf]
  %v398 = vld [vmem:[%s389 + $0x20] sm:$0xf]
  %v399 = vld [vmem:[%s389 + $0x24] sm:$0xf]
  %v400 = vld [vmem:[%s389 + $0x28] sm:$0xf]
  %v401 = vld [vmem:[%s389 + $0x2c] sm:$0xf]
  %v402 = vld [vmem:[%s389 + $0x30] sm:$0xf]
  %v403 = vld [vmem:[%s389 + $0x34] sm:$0xf]
  %v404 = vld [vmem:[%s389 + $0x38] sm:$0xf]
  %v405 = vld [vmem:[%s389 + $0x3c] sm:$0xf]
  %v422 = vunpack.c.l.b16 %v373
  %v423 = vunpack.c.l.b16 %v374
  %v424 = vunpack.c.l.b16 %v375
  %v425 = vunpack.c.l.b16 %v376
  %v426 = vunpack.c.l.b16 %v377
  %v427 = vunpack.c.l.b16 %v378
  %v428 = vunpack.c.l.b16 %v379
  %v429 = vunpack.c.l.b16 %v380
  %v430 = vunpack.c.l.b16 %v381
  %v431 = vunpack.c.l.b16 %v382
  %v432 = vunpack.c.l.b16 %v383
  %v433 = vunpack.c.l.b16 %v384
  %v434 = vunpack.c.l.b16 %v385
  %v435 = vunpack.c.l.b16 %v386
  %v436 = vunpack.c.l.b16 %v387
  %v437 = vunpack.c.l.b16 %v388
  %v438 = vpack.c.b16 %v423, %v422
  %v439 = vpack.c.b16 %v425, %v424
  %v440 = vpack.c.b16 %v427, %v426
  %v441 = vpack.c.b16 %v429, %v428
  %v442 = vpack.c.b16 %v431, %v430
  %v443 = vpack.c.b16 %v433, %v432
  %v444 = vpack.c.b16 %v435, %v434
  %v445 = vpack.c.b16 %v437, %v436
  %v470 = vunpack.c.l.b16 %v390
  %v471 = vunpack.c.l.b16 %v391
  %v472 = vunpack.c.l.b16 %v392
  %v473 = vunpack.c.l.b16 %v393
  %v474 = vunpack.c.l.b16 %v394
  %v475 = vunpack.c.l.b16 %v395
  %v476 = vunpack.c.l.b16 %v396
  %v477 = vunpack.c.l.b16 %v397
  %v478 = vunpack.c.l.b16 %v398
  %v479 = vunpack.c.l.b16 %v399
  %v480 = vunpack.c.l.b16 %v400
  %v481 = vunpack.c.l.b16 %v401
  %v482 = vunpack.c.l.b16 %v402
  %v483 = vunpack.c.l.b16 %v403
  %v484 = vunpack.c.l.b16 %v404
  %v485 = vunpack.c.l.b16 %v405
  %v486 = vpack.c.b16 %v471, %v470
  %v487 = vpack.c.b16 %v473, %v472
  %v488 = vpack.c.b16 %v475, %v474
  %v489 = vpack.c.b16 %v477, %v476
  %v490 = vpack.c.b16 %v479, %v478
  %v491 = vpack.c.b16 %v481, %v480
  %v492 = vpack.c.b16 %v483, %v482
  %v493 = vpack.c.b16 %v485, %v484
  %502 = vmatpush.bf16.msra.mxu0 %v493
  %503 = vmatpush.bf16.msra.mxu0 %v492
  %504 = vmatpush.bf16.msra.mxu0 %v491
  %505 = vmatpush.bf16.msra.mxu0 %v490
  %506 = vmatpush.bf16.msra.mxu0 %v489
  %507 = vmatpush.bf16.msra.mxu0 %v488
  %508 = vmatpush.bf16.msra.mxu0 %v487
  %509 = vmatpush.bf16.msra.mxu0 %v486
  %510 = vmatmul.bf16.gmra.mxu0 %v438
  %v511 = vpop.f32.mrf.mxu0
  %v512 = vadd.f32 0.0, %v511
  %v513 = vpop.f32.mrf.mxu0
  %v514 = vadd.f32 0.0, %v513
  %515 = vmatmul.bf16.gmra.mxu0 %v439
  %v516 = vpop.f32.mrf.mxu0
  %v517 = vadd.f32 0.0, %v516
  %v518 = vpop.f32.mrf.mxu0
  %v519 = vadd.f32 0.0, %v518
  %520 = vmatmul.bf16.gmra.mxu0 %v440
  %v521 = vpop.f32.mrf.mxu0
  %v522 = vadd.f32 0.0, %v521
  %v523 = vpop.f32.mrf.mxu0
  %v524 = vadd.f32 0.0, %v523
  %525 = vmatmul.bf16.gmra.mxu0 %v441
  %v526 = vpop.f32.mrf.mxu0
  %v527 = vadd.f32 0.0, %v526
  %v528 = vpop.f32.mrf.mxu0
  %v529 = vadd.f32 0.0, %v528
  %530 = vmatmul.bf16.gmra.mxu0 %v442
  %v531 = vpop.f32.mrf.mxu0
  %v532 = vadd.f32 0.0, %v531
  %v533 = vpop.f32.mrf.mxu0
  %v534 = vadd.f32 0.0, %v533
  %535 = vmatmul.bf16.gmra.mxu0 %v443
  %v536 = vpop.f32.mrf.mxu0
  %v537 = vadd.f32 0.0, %v536
  %v538 = vpop.f32.mrf.mxu0
  %v539 = vadd.f32 0.0, %v538
  %540 = vmatmul.bf16.gmra.mxu0 %v444
  %v541 = vpop.f32.mrf.mxu0
  %v542 = vadd.f32 0.0, %v541
  %v543 = vpop.f32.mrf.mxu0
  %v544 = vadd.f32 0.0, %v543
  %545 = vmatmul.bf16.gmra.mxu0 %v445
  %v546 = vpop.f32.mrf.mxu0
  %v547 = vadd.f32 0.0, %v546
  %v548 = vpop.f32.mrf.mxu0
  %v549 = vadd.f32 0.0, %v548
  %550 = vdwg.mxu0
  %v551 = vadd.f32 %v333, %v512
  %v552 = vadd.f32 %v335, %v514
  %v553 = vadd.f32 %v338, %v517
  %v554 = vadd.f32 %v340, %v519
  %v555 = vadd.f32 %v343, %v522
  %v556 = vadd.f32 %v345, %v524
  %v557 = vadd.f32 %v348, %v527
  %v558 = vadd.f32 %v350, %v529
  %v559 = vadd.f32 %v353, %v532
  %v560 = vadd.f32 %v355, %v534
  %v561 = vadd.f32 %v358, %v537
  %v562 = vadd.f32 %v360, %v539
  %v563 = vadd.f32 %v363, %v542
  %v564 = vadd.f32 %v365, %v544
  %v565 = vadd.f32 %v368, %v547
  %v566 = vadd.f32 %v370, %v549
  %s567 = scalar_lea.vmem %s0, 216
  %v568 = vld [vmem:[%s567] sm:$0xf]
  %v569 = vld [vmem:[%s567 + $0x4] sm:$0xf]
  %v570 = vld [vmem:[%s567 + $0x8] sm:$0xf]
  %v571 = vld [vmem:[%s567 + $0xc] sm:$0xf]
  %v572 = vld [vmem:[%s567 + $0x10] sm:$0xf]
  %v573 = vld [vmem:[%s567 + $0x14] sm:$0xf]
  %v574 = vld [vmem:[%s567 + $0x18] sm:$0xf]
  %v575 = vld [vmem:[%s567 + $0x1c] sm:$0xf]
  %v576 = vld [vmem:[%s567 + $0x24] sm:$0xf]
  %v577 = vld [vmem:[%s567 + $0x28] sm:$0xf]
  %v578 = vld [vmem:[%s567 + $0x2c] sm:$0xf]
  %v579 = vld [vmem:[%s567 + $0x30] sm:$0xf]
  %v580 = vld [vmem:[%s567 + $0x34] sm:$0xf]
  %v581 = vld [vmem:[%s567 + $0x38] sm:$0xf]
  %v582 = vld [vmem:[%s567 + $0x3c] sm:$0xf]
  %v583 = vld [vmem:[%s567 + $0x40] sm:$0xf]
  %s584 = scalar_lea.vmem %s1, 192
  %v585 = vld [vmem:[%s584] sm:$0xf]
  %v586 = vld [vmem:[%s584 + $0x4] sm:$0xf]
  %v587 = vld [vmem:[%s584 + $0x8] sm:$0xf]
  %v588 = vld [vmem:[%s584 + $0xc] sm:$0xf]
  %v589 = vld [vmem:[%s584 + $0x10] sm:$0xf]
  %v590 = vld [vmem:[%s584 + $0x14] sm:$0xf]
  %v591 = vld [vmem:[%s584 + $0x18] sm:$0xf]
  %v592 = vld [vmem:[%s584 + $0x1c] sm:$0xf]
  %v593 = vld [vmem:[%s584 + $0x20] sm:$0xf]
  %v594 = vld [vmem:[%s584 + $0x24] sm:$0xf]
  %v595 = vld [vmem:[%s584 + $0x28] sm:$0xf]
  %v596 = vld [vmem:[%s584 + $0x2c] sm:$0xf]
  %v597 = vld [vmem:[%s584 + $0x30] sm:$0xf]
  %v598 = vld [vmem:[%s584 + $0x34] sm:$0xf]
  %v599 = vld [vmem:[%s584 + $0x38] sm:$0xf]
  %v600 = vld [vmem:[%s584 + $0x3c] sm:$0xf]
  %v617 = vunpack.c.l.b16 %v568
  %v618 = vunpack.c.l.b16 %v569
  %v619 = vunpack.c.l.b16 %v570
  %v620 = vunpack.c.l.b16 %v571
  %v621 = vunpack.c.l.b16 %v572
  %v622 = vunpack.c.l.b16 %v573
  %v623 = vunpack.c.l.b16 %v574
  %v624 = vunpack.c.l.b16 %v575
  %v625 = vunpack.c.l.b16 %v576
  %v626 = vunpack.c.l.b16 %v577
  %v627 = vunpack.c.l.b16 %v578
  %v628 = vunpack.c.l.b16 %v579
  %v629 = vunpack.c.l.b16 %v580
  %v630 = vunpack.c.l.b16 %v581
  %v631 = vunpack.c.l.b16 %v582
  %v632 = vunpack.c.l.b16 %v583
  %v633 = vpack.c.b16 %v618, %v617
  %v634 = vpack.c.b16 %v620, %v619
  %v635 = vpack.c.b16 %v622, %v621
  %v636 = vpack.c.b16 %v624, %v623
  %v637 = vpack.c.b16 %v626, %v625
  %v638 = vpack.c.b16 %v628, %v627
  %v639 = vpack.c.b16 %v630, %v629
  %v640 = vpack.c.b16 %v632, %v631
  %v665 = vunpack.c.l.b16 %v585
  %v666 = vunpack.c.l.b16 %v586
  %v667 = vunpack.c.l.b16 %v587
  %v668 = vunpack.c.l.b16 %v588
  %v669 = vunpack.c.l.b16 %v589
  %v670 = vunpack.c.l.b16 %v590
  %v671 = vunpack.c.l.b16 %v591
  %v672 = vunpack.c.l.b16 %v592
  %v673 = vunpack.c.l.b16 %v593
  %v674 = vunpack.c.l.b16 %v594
  %v675 = vunpack.c.l.b16 %v595
  %v676 = vunpack.c.l.b16 %v596
  %v677 = vunpack.c.l.b16 %v597
  %v678 = vunpack.c.l.b16 %v598
  %v679 = vunpack.c.l.b16 %v599
  %v680 = vunpack.c.l.b16 %v600
  %v681 = vpack.c.b16 %v666, %v665
  %v682 = vpack.c.b16 %v668, %v667
  %v683 = vpack.c.b16 %v670, %v669
  %v684 = vpack.c.b16 %v672, %v671
  %v685 = vpack.c.b16 %v674, %v673
  %v686 = vpack.c.b16 %v676, %v675
  %v687 = vpack.c.b16 %v678, %v677
  %v688 = vpack.c.b16 %v680, %v679
  %697 = vmatpush.bf16.msra.mxu0 %v688
  %698 = vmatpush.bf16.msra.mxu0 %v687
  %699 = vmatpush.bf16.msra.mxu0 %v686
  %700 = vmatpush.bf16.msra.mxu0 %v685
  %701 = vmatpush.bf16.msra.mxu0 %v684
  %702 = vmatpush.bf16.msra.mxu0 %v683
  %703 = vmatpush.bf16.msra.mxu0 %v682
  %704 = vmatpush.bf16.msra.mxu0 %v681
  %705 = vmatmul.bf16.gmra.mxu0 %v633
  %v706 = vpop.f32.mrf.mxu0
  %v707 = vadd.f32 0.0, %v706
  %v708 = vpop.f32.mrf.mxu0
  %v709 = vadd.f32 0.0, %v708
  %710 = vmatmul.bf16.gmra.mxu0 %v634
  %v711 = vpop.f32.mrf.mxu0
  %v712 = vadd.f32 0.0, %v711
  %v713 = vpop.f32.mrf.mxu0
  %v714 = vadd.f32 0.0, %v713
  %715 = vmatmul.bf16.gmra.mxu0 %v635
  %v716 = vpop.f32.mrf.mxu0
  %v717 = vadd.f32 0.0, %v716
  %v718 = vpop.f32.mrf.mxu0
  %v719 = vadd.f32 0.0, %v718
  %720 = vmatmul.bf16.gmra.mxu0 %v636
  %v721 = vpop.f32.mrf.mxu0
  %v722 = vadd.f32 0.0, %v721
  %v723 = vpop.f32.mrf.mxu0
  %v724 = vadd.f32 0.0, %v723
  %725 = vmatmul.bf16.gmra.mxu0 %v637
  %v726 = vpop.f32.mrf.mxu0
  %v727 = vadd.f32 0.0, %v726
  %v728 = vpop.f32.mrf.mxu0
  %v729 = vadd.f32 0.0, %v728
  %730 = vmatmul.bf16.gmra.mxu0 %v638
  %v731 = vpop.f32.mrf.mxu0
  %v732 = vadd.f32 0.0, %v731
  %v733 = vpop.f32.mrf.mxu0
  %v734 = vadd.f32 0.0, %v733
  %735 = vmatmul.bf16.gmra.mxu0 %v639
  %v736 = vpop.f32.mrf.mxu0
  %v737 = vadd.f32 0.0, %v736
  %v738 = vpop.f32.mrf.mxu0
  %v739 = vadd.f32 0.0, %v738
  %740 = vmatmul.bf16.gmra.mxu0 %v640
  %v741 = vpop.f32.mrf.mxu0
  %v742 = vadd.f32 0.0, %v741
  %v743 = vpop.f32.mrf.mxu0
  %v744 = vadd.f32 0.0, %v743
  %745 = vdwg.mxu0
  %v746 = vadd.f32 %v551, %v707
  %v747 = vadd.f32 %v552, %v709
  %v748 = vadd.f32 %v553, %v712
  %v749 = vadd.f32 %v554, %v714
  %v750 = vadd.f32 %v555, %v717
  %v751 = vadd.f32 %v556, %v719
  %v752 = vadd.f32 %v557, %v722
  %v753 = vadd.f32 %v558, %v724
  %v754 = vadd.f32 %v559, %v727
  %v755 = vadd.f32 %v560, %v729
  %v756 = vadd.f32 %v561, %v732
  %v757 = vadd.f32 %v562, %v734
  %v758 = vadd.f32 %v563, %v737
  %v759 = vadd.f32 %v564, %v739
  %v760 = vadd.f32 %v565, %v742
  %v761 = vadd.f32 %v566, %v744
  %s762 = scalar_lea.vmem %s0, 288
  %v763 = vld [vmem:[%s762] sm:$0xf]
  %v764 = vld [vmem:[%s762 + $0x4] sm:$0xf]
  %v765 = vld [vmem:[%s762 + $0x8] sm:$0xf]
  %v766 = vld [vmem:[%s762 + $0xc] sm:$0xf]
  %v767 = vld [vmem:[%s762 + $0x10] sm:$0xf]
  %v768 = vld [vmem:[%s762 + $0x14] sm:$0xf]
  %v769 = vld [vmem:[%s762 + $0x18] sm:$0xf]
  %v770 = vld [vmem:[%s762 + $0x1c] sm:$0xf]
  %v771 = vld [vmem:[%s762 + $0x24] sm:$0xf]
  %v772 = vld [vmem:[%s762 + $0x28] sm:$0xf]
  %v773 = vld [vmem:[%s762 + $0x2c] sm:$0xf]
  %v774 = vld [vmem:[%s762 + $0x30] sm:$0xf]
  %v775 = vld [vmem:[%s762 + $0x34] sm:$0xf]
  %v776 = vld [vmem:[%s762 + $0x38] sm:$0xf]
  %v777 = vld [vmem:[%s762 + $0x3c] sm:$0xf]
  %v778 = vld [vmem:[%s762 + $0x40] sm:$0xf]
  %s779 = scalar_lea.vmem %s1, 256
  %v780 = vld [vmem:[%s779] sm:$0xf]
  %v781 = vld [vmem:[%s779 + $0x4] sm:$0xf]
  %v782 = vld [vmem:[%s779 + $0x8] sm:$0xf]
  %v783 = vld [vmem:[%s779 + $0xc] sm:$0xf]
  %v784 = vld [vmem:[%s779 + $0x10] sm:$0xf]
  %v785 = vld [vmem:[%s779 + $0x14] sm:$0xf]
  %v786 = vld [vmem:[%s779 + $0x18] sm:$0xf]
  %v787 = vld [vmem:[%s779 + $0x1c] sm:$0xf]
  %v788 = vld [vmem:[%s779 + $0x20] sm:$0xf]
  %v789 = vld [vmem:[%s779 + $0x24] sm:$0xf]
  %v790 = vld [vmem:[%s779 + $0x28] sm:$0xf]
  %v791 = vld [vmem:[%s779 + $0x2c] sm:$0xf]
  %v792 = vld [vmem:[%s779 + $0x30] sm:$0xf]
  %v793 = vld [vmem:[%s779 + $0x34] sm:$0xf]
  %v794 = vld [vmem:[%s779 + $0x38] sm:$0xf]
  %v795 = vld [vmem:[%s779 + $0x3c] sm:$0xf]
  %v812 = vunpack.c.l.b16 %v763
  %v813 = vunpack.c.l.b16 %v764
  %v814 = vunpack.c.l.b16 %v765
  %v815 = vunpack.c.l.b16 %v766
  %v816 = vunpack.c.l.b16 %v767
  %v817 = vunpack.c.l.b16 %v768
  %v818 = vunpack.c.l.b16 %v769
  %v819 = vunpack.c.l.b16 %v770
  %v820 = vunpack.c.l.b16 %v771
  %v821 = vunpack.c.l.b16 %v772
  %v822 = vunpack.c.l.b16 %v773
  %v823 = vunpack.c.l.b16 %v774
  %v824 = vunpack.c.l.b16 %v775
  %v825 = vunpack.c.l.b16 %v776
  %v826 = vunpack.c.l.b16 %v777
  %v827 = vunpack.c.l.b16 %v778
  %v828 = vpack.c.b16 %v813, %v812
  %v829 = vpack.c.b16 %v815, %v814
  %v830 = vpack.c.b16 %v817, %v816
  %v831 = vpack.c.b16 %v819, %v818
  %v832 = vpack.c.b16 %v821, %v820
  %v833 = vpack.c.b16 %v823, %v822
  %v834 = vpack.c.b16 %v825, %v824
  %v835 = vpack.c.b16 %v827, %v826
  %v860 = vunpack.c.l.b16 %v780
  %v861 = vunpack.c.l.b16 %v781
  %v862 = vunpack.c.l.b16 %v782
  %v863 = vunpack.c.l.b16 %v783
  %v864 = vunpack.c.l.b16 %v784
  %v865 = vunpack.c.l.b16 %v785
  %v866 = vunpack.c.l.b16 %v786
  %v867 = vunpack.c.l.b16 %v787
  %v868 = vunpack.c.l.b16 %v788
  %v869 = vunpack.c.l.b16 %v789
  %v870 = vunpack.c.l.b16 %v790
  %v871 = vunpack.c.l.b16 %v791
  %v872 = vunpack.c.l.b16 %v792
  %v873 = vunpack.c.l.b16 %v793
  %v874 = vunpack.c.l.b16 %v794
  %v875 = vunpack.c.l.b16 %v795
  %v876 = vpack.c.b16 %v861, %v860
  %v877 = vpack.c.b16 %v863, %v862
  %v878 = vpack.c.b16 %v865, %v864
  %v879 = vpack.c.b16 %v867, %v866
  %v880 = vpack.c.b16 %v869, %v868
  %v881 = vpack.c.b16 %v871, %v870
  %v882 = vpack.c.b16 %v873, %v872
  %v883 = vpack.c.b16 %v875, %v874
  %892 = vmatpush.bf16.msra.mxu0 %v883
  %893 = vmatpush.bf16.msra.mxu0 %v882
  %894 = vmatpush.bf16.msra.mxu0 %v881
  %895 = vmatpush.bf16.msra.mxu0 %v880
  %896 = vmatpush.bf16.msra.mxu0 %v879
  %897 = vmatpush.bf16.msra.mxu0 %v878
  %898 = vmatpush.bf16.msra.mxu0 %v877
  %899 = vmatpush.bf16.msra.mxu0 %v876
  %900 = vmatmul.bf16.gmra.mxu0 %v828
  %v901 = vpop.f32.mrf.mxu0
  %v902 = vadd.f32 0.0, %v901
  %v903 = vpop.f32.mrf.mxu0
  %v904 = vadd.f32 0.0, %v903
  %905 = vmatmul.bf16.gmra.mxu0 %v829
  %v906 = vpop.f32.mrf.mxu0
  %v907 = vadd.f32 0.0, %v906
  %v908 = vpop.f32.mrf.mxu0
  %v909 = vadd.f32 0.0, %v908
  %910 = vmatmul.bf16.gmra.mxu0 %v830
  %v911 = vpop.f32.mrf.mxu0
  %v912 = vadd.f32 0.0, %v911
  %v913 = vpop.f32.mrf.mxu0
  %v914 = vadd.f32 0.0, %v913
  %915 = vmatmul.bf16.gmra.mxu0 %v831
  %v916 = vpop.f32.mrf.mxu0
  %v917 = vadd.f32 0.0, %v916
  %v918 = vpop.f32.mrf.mxu0
  %v919 = vadd.f32 0.0, %v918
  %920 = vmatmul.bf16.gmra.mxu0 %v832
  %v921 = vpop.f32.mrf.mxu0
  %v922 = vadd.f32 0.0, %v921
  %v923 = vpop.f32.mrf.mxu0
  %v924 = vadd.f32 0.0, %v923
  %925 = vmatmul.bf16.gmra.mxu0 %v833
  %v926 = vpop.f32.mrf.mxu0
  %v927 = vadd.f32 0.0, %v926
  %v928 = vpop.f32.mrf.mxu0
  %v929 = vadd.f32 0.0, %v928
  %930 = vmatmul.bf16.gmra.mxu0 %v834
  %v931 = vpop.f32.mrf.mxu0
  %v932 = vadd.f32 0.0, %v931
  %v933 = vpop.f32.mrf.mxu0
  %v934 = vadd.f32 0.0, %v933
  %935 = vmatmul.bf16.gmra.mxu0 %v835
  %v936 = vpop.f32.mrf.mxu0
  %v937 = vadd.f32 0.0, %v936
  %v938 = vpop.f32.mrf.mxu0
  %v939 = vadd.f32 0.0, %v938
  %940 = vdwg.mxu0
  %v941 = vadd.f32 %v746, %v902
  %v942 = vadd.f32 %v747, %v904
  %v943 = vadd.f32 %v748, %v907
  %v944 = vadd.f32 %v749, %v909
  %v945 = vadd.f32 %v750, %v912
  %v946 = vadd.f32 %v751, %v914
  %v947 = vadd.f32 %v752, %v917
  %v948 = vadd.f32 %v753, %v919
  %v949 = vadd.f32 %v754, %v922
  %v950 = vadd.f32 %v755, %v924
  %v951 = vadd.f32 %v756, %v927
  %v952 = vadd.f32 %v757, %v929
  %v953 = vadd.f32 %v758, %v932
  %v954 = vadd.f32 %v759, %v934
  %v955 = vadd.f32 %v760, %v937
  %v956 = vadd.f32 %v761, %v939
  %s957 = scalar_lea.vmem %s0, 360
  %v958 = vld [vmem:[%s957] sm:$0xf]
  %v959 = vld [vmem:[%s957 + $0x4] sm:$0xf]
  %v960 = vld [vmem:[%s957 + $0x8] sm:$0xf]
  %v961 = vld [vmem:[%s957 + $0xc] sm:$0xf]
  %v962 = vld [vmem:[%s957 + $0x10] sm:$0xf]
  %v963 = vld [vmem:[%s957 + $0x14] sm:$0xf]
  %v964 = vld [vmem:[%s957 + $0x18] sm:$0xf]
  %v965 = vld [vmem:[%s957 + $0x1c] sm:$0xf]
  %v966 = vld [vmem:[%s957 + $0x24] sm:$0xf]
  %v967 = vld [vmem:[%s957 + $0x28] sm:$0xf]
  %v968 = vld [vmem:[%s957 + $0x2c] sm:$0xf]
  %v969 = vld [vmem:[%s957 + $0x30] sm:$0xf]
  %v970 = vld [vmem:[%s957 + $0x34] sm:$0xf]
  %v971 = vld [vmem:[%s957 + $0x38] sm:$0xf]
  %v972 = vld [vmem:[%s957 + $0x3c] sm:$0xf]
  %v973 = vld [vmem:[%s957 + $0x40] sm:$0xf]
  %s974 = scalar_lea.vmem %s1, 320
  %v975 = vld [vmem:[%s974] sm:$0xf]
  %v976 = vld [vmem:[%s974 + $0x4] sm:$0xf]
  %v977 = vld [vmem:[%s974 + $0x8] sm:$0xf]
  %v978 = vld [vmem:[%s974 + $0xc] sm:$0xf]
  %v979 = vld [vmem:[%s974 + $0x10] sm:$0xf]
  %v980 = vld [vmem:[%s974 + $0x14] sm:$0xf]
  %v981 = vld [vmem:[%s974 + $0x18] sm:$0xf]
  %v982 = vld [vmem:[%s974 + $0x1c] sm:$0xf]
  %v983 = vld [vmem:[%s974 + $0x20] sm:$0xf]
  %v984 = vld [vmem:[%s974 + $0x24] sm:$0xf]
  %v985 = vld [vmem:[%s974 + $0x28] sm:$0xf]
  %v986 = vld [vmem:[%s974 + $0x2c] sm:$0xf]
  %v987 = vld [vmem:[%s974 + $0x30] sm:$0xf]
  %v988 = vld [vmem:[%s974 + $0x34] sm:$0xf]
  %v989 = vld [vmem:[%s974 + $0x38] sm:$0xf]
  %v990 = vld [vmem:[%s974 + $0x3c] sm:$0xf]
  %v1007 = vunpack.c.l.b16 %v958
  %v1008 = vunpack.c.l.b16 %v959
  %v1009 = vunpack.c.l.b16 %v960
  %v1010 = vunpack.c.l.b16 %v961
  %v1011 = vunpack.c.l.b16 %v962
  %v1012 = vunpack.c.l.b16 %v963
  %v1013 = vunpack.c.l.b16 %v964
  %v1014 = vunpack.c.l.b16 %v965
  %v1015 = vunpack.c.l.b16 %v966
  %v1016 = vunpack.c.l.b16 %v967
  %v1017 = vunpack.c.l.b16 %v968
  %v1018 = vunpack.c.l.b16 %v969
  %v1019 = vunpack.c.l.b16 %v970
  %v1020 = vunpack.c.l.b16 %v971
  %v1021 = vunpack.c.l.b16 %v972
  %v1022 = vunpack.c.l.b16 %v973
  %v1023 = vpack.c.b16 %v1008, %v1007
  %v1024 = vpack.c.b16 %v1010, %v1009
  %v1025 = vpack.c.b16 %v1012, %v1011
  %v1026 = vpack.c.b16 %v1014, %v1013
  %v1027 = vpack.c.b16 %v1016, %v1015
  %v1028 = vpack.c.b16 %v1018, %v1017
  %v1029 = vpack.c.b16 %v1020, %v1019
  %v1030 = vpack.c.b16 %v1022, %v1021
  %v1055 = vunpack.c.l.b16 %v975
  %v1056 = vunpack.c.l.b16 %v976
  %v1057 = vunpack.c.l.b16 %v977
  %v1058 = vunpack.c.l.b16 %v978
  %v1059 = vunpack.c.l.b16 %v979
  %v1060 = vunpack.c.l.b16 %v980
  %v1061 = vunpack.c.l.b16 %v981
  %v1062 = vunpack.c.l.b16 %v982
  %v1063 = vunpack.c.l.b16 %v983
  %v1064 = vunpack.c.l.b16 %v984
  %v1065 = vunpack.c.l.b16 %v985
  %v1066 = vunpack.c.l.b16 %v986
  %v1067 = vunpack.c.l.b16 %v987
  %v1068 = vunpack.c.l.b16 %v988
  %v1069 = vunpack.c.l.b16 %v989
  %v1070 = vunpack.c.l.b16 %v990
  %v1071 = vpack.c.b16 %v1056, %v1055
  %v1072 = vpack.c.b16 %v1058, %v1057
  %v1073 = vpack.c.b16 %v1060, %v1059
  %v1074 = vpack.c.b16 %v1062, %v1061
  %v1075 = vpack.c.b16 %v1064, %v1063
  %v1076 = vpack.c.b16 %v1066, %v1065
  %v1077 = vpack.c.b16 %v1068, %v1067
  %v1078 = vpack.c.b16 %v1070, %v1069
  %1087 = vmatpush.bf16.msra.mxu0 %v1078
  %1088 = vmatpush.bf16.msra.mxu0 %v1077
  %1089 = vmatpush.bf16.msra.mxu0 %v1076
  %1090 = vmatpush.bf16.msra.mxu0 %v1075
  %1091 = vmatpush.bf16.msra.mxu0 %v1074
  %1092 = vmatpush.bf16.msra.mxu0 %v1073
  %1093 = vmatpush.bf16.msra.mxu0 %v1072
  %1094 = vmatpush.bf16.msra.mxu0 %v1071
  %1095 = vmatmul.bf16.gmra.mxu0 %v1023
  %v1096 = vpop.f32.mrf.mxu0
  %v1097 = vadd.f32 0.0, %v1096
  %v1098 = vpop.f32.mrf.mxu0
  %v1099 = vadd.f32 0.0, %v1098
  %1100 = vmatmul.bf16.gmra.mxu0 %v1024
  %v1101 = vpop.f32.mrf.mxu0
  %v1102 = vadd.f32 0.0, %v1101
  %v1103 = vpop.f32.mrf.mxu0
  %v1104 = vadd.f32 0.0, %v1103
  %1105 = vmatmul.bf16.gmra.mxu0 %v1025
  %v1106 = vpop.f32.mrf.mxu0
  %v1107 = vadd.f32 0.0, %v1106
  %v1108 = vpop.f32.mrf.mxu0
  %v1109 = vadd.f32 0.0, %v1108
  %1110 = vmatmul.bf16.gmra.mxu0 %v1026
  %v1111 = vpop.f32.mrf.mxu0
  %v1112 = vadd.f32 0.0, %v1111
  %v1113 = vpop.f32.mrf.mxu0
  %v1114 = vadd.f32 0.0, %v1113
  %1115 = vmatmul.bf16.gmra.mxu0 %v1027
  %v1116 = vpop.f32.mrf.mxu0
  %v1117 = vadd.f32 0.0, %v1116
  %v1118 = vpop.f32.mrf.mxu0
  %v1119 = vadd.f32 0.0, %v1118
  %1120 = vmatmul.bf16.gmra.mxu0 %v1028
  %v1121 = vpop.f32.mrf.mxu0
  %v1122 = vadd.f32 0.0, %v1121
  %v1123 = vpop.f32.mrf.mxu0
  %v1124 = vadd.f32 0.0, %v1123
  %1125 = vmatmul.bf16.gmra.mxu0 %v1029
  %v1126 = vpop.f32.mrf.mxu0
  %v1127 = vadd.f32 0.0, %v1126
  %v1128 = vpop.f32.mrf.mxu0
  %v1129 = vadd.f32 0.0, %v1128
  %1130 = vmatmul.bf16.gmra.mxu0 %v1030
  %v1131 = vpop.f32.mrf.mxu0
  %v1132 = vadd.f32 0.0, %v1131
  %v1133 = vpop.f32.mrf.mxu0
  %v1134 = vadd.f32 0.0, %v1133
  %1135 = vdwg.mxu0
  %v1136 = vadd.f32 %v941, %v1097
  %v1137 = vadd.f32 %v942, %v1099
  %v1138 = vadd.f32 %v943, %v1102
  %v1139 = vadd.f32 %v944, %v1104
  %v1140 = vadd.f32 %v945, %v1107
  %v1141 = vadd.f32 %v946, %v1109
  %v1142 = vadd.f32 %v947, %v1112
  %v1143 = vadd.f32 %v948, %v1114
  %v1144 = vadd.f32 %v949, %v1117
  %v1145 = vadd.f32 %v950, %v1119
  %v1146 = vadd.f32 %v951, %v1122
  %v1147 = vadd.f32 %v952, %v1124
  %v1148 = vadd.f32 %v953, %v1127
  %v1149 = vadd.f32 %v954, %v1129
  %v1150 = vadd.f32 %v955, %v1132
  %v1151 = vadd.f32 %v956, %v1134
  %s1152 = scalar_lea.vmem %s0, 4
  %v1153 = vld [vmem:[%s1152] sm:$0xf]
  %v1154 = vld [vmem:[%s1152 + $0x4] sm:$0xf]
  %v1155 = vld [vmem:[%s1152 + $0x8] sm:$0xf]
  %v1156 = vld [vmem:[%s1152 + $0xc] sm:$0xf]
  %v1157 = vld [vmem:[%s1152 + $0x10] sm:$0xf]
  %v1158 = vld [vmem:[%s1152 + $0x14] sm:$0xf]
  %v1159 = vld [vmem:[%s1152 + $0x18] sm:$0xf]
  %v1160 = vld [vmem:[%s1152 + $0x1c] sm:$0xf]
  %v1161 = vld [vmem:[%s1152 + $0x24] sm:$0xf]
  %v1162 = vld [vmem:[%s1152 + $0x28] sm:$0xf]
  %v1163 = vld [vmem:[%s1152 + $0x2c] sm:$0xf]
  %v1164 = vld [vmem:[%s1152 + $0x30] sm:$0xf]
  %v1165 = vld [vmem:[%s1152 + $0x34] sm:$0xf]
  %v1166 = vld [vmem:[%s1152 + $0x38] sm:$0xf]
  %v1167 = vld [vmem:[%s1152 + $0x3c] sm:$0xf]
  %v1168 = vld [vmem:[%s1152 + $0x40] sm:$0xf]
  %s1169 = scalar_lea.vmem %s1, 384
  %v1170 = vld [vmem:[%s1169] sm:$0xf]
  %v1171 = vld [vmem:[%s1169 + $0x4] sm:$0xf]
  %v1172 = vld [vmem:[%s1169 + $0x8] sm:$0xf]
  %v1173 = vld [vmem:[%s1169 + $0xc] sm:$0xf]
  %v1174 = vld [vmem:[%s1169 + $0x10] sm:$0xf]
  %v1175 = vld [vmem:[%s1169 + $0x14] sm:$0xf]
  %v1176 = vld [vmem:[%s1169 + $0x18] sm:$0xf]
  %v1177 = vld [vmem:[%s1169 + $0x1c] sm:$0xf]
  %v1178 = vld [vmem:[%s1169 + $0x20] sm:$0xf]
  %v1179 = vld [vmem:[%s1169 + $0x24] sm:$0xf]
  %v1180 = vld [vmem:[%s1169 + $0x28] sm:$0xf]
  %v1181 = vld [vmem:[%s1169 + $0x2c] sm:$0xf]
  %v1182 = vld [vmem:[%s1169 + $0x30] sm:$0xf]
  %v1183 = vld [vmem:[%s1169 + $0x34] sm:$0xf]
  %v1184 = vld [vmem:[%s1169 + $0x38] sm:$0xf]
  %v1185 = vld [vmem:[%s1169 + $0x3c] sm:$0xf]
  %v1202 = vunpack.c.l.b16 %v1153
  %v1203 = vunpack.c.l.b16 %v1154
  %v1204 = vunpack.c.l.b16 %v1155
  %v1205 = vunpack.c.l.b16 %v1156
  %v1206 = vunpack.c.l.b16 %v1157
  %v1207 = vunpack.c.l.b16 %v1158
  %v1208 = vunpack.c.l.b16 %v1159
  %v1209 = vunpack.c.l.b16 %v1160
  %v1210 = vunpack.c.l.b16 %v1161
  %v1211 = vunpack.c.l.b16 %v1162
  %v1212 = vunpack.c.l.b16 %v1163
  %v1213 = vunpack.c.l.b16 %v1164
  %v1214 = vunpack.c.l.b16 %v1165
  %v1215 = vunpack.c.l.b16 %v1166
  %v1216 = vunpack.c.l.b16 %v1167
  %v1217 = vunpack.c.l.b16 %v1168
  %v1218 = vpack.c.b16 %v1203, %v1202
  %v1219 = vpack.c.b16 %v1205, %v1204
  %v1220 = vpack.c.b16 %v1207, %v1206
  %v1221 = vpack.c.b16 %v1209, %v1208
  %v1222 = vpack.c.b16 %v1211, %v1210
  %v1223 = vpack.c.b16 %v1213, %v1212
  %v1224 = vpack.c.b16 %v1215, %v1214
  %v1225 = vpack.c.b16 %v1217, %v1216
  %v1250 = vunpack.c.l.b16 %v1170
  %v1251 = vunpack.c.l.b16 %v1171
  %v1252 = vunpack.c.l.b16 %v1172
  %v1253 = vunpack.c.l.b16 %v1173
  %v1254 = vunpack.c.l.b16 %v1174
  %v1255 = vunpack.c.l.b16 %v1175
  %v1256 = vunpack.c.l.b16 %v1176
  %v1257 = vunpack.c.l.b16 %v1177
  %v1258 = vunpack.c.l.b16 %v1178
  %v1259 = vunpack.c.l.b16 %v1179
  %v1260 = vunpack.c.l.b16 %v1180
  %v1261 = vunpack.c.l.b16 %v1181
  %v1262 = vunpack.c.l.b16 %v1182
  %v1263 = vunpack.c.l.b16 %v1183
  %v1264 = vunpack.c.l.b16 %v1184
  %v1265 = vunpack.c.l.b16 %v1185
  %v1266 = vpack.c.b16 %v1251, %v1250
  %v1267 = vpack.c.b16 %v1253, %v1252
  %v1268 = vpack.c.b16 %v1255, %v1254
  %v1269 = vpack.c.b16 %v1257, %v1256
  %v1270 = vpack.c.b16 %v1259, %v1258
  %v1271 = vpack.c.b16 %v1261, %v1260
  %v1272 = vpack.c.b16 %v1263, %v1262
  %v1273 = vpack.c.b16 %v1265, %v1264
  %1282 = vmatpush.bf16.msra.mxu0 %v1273
  %1283 = vmatpush.bf16.msra.mxu0 %v1272
  %1284 = vmatpush.bf16.msra.mxu0 %v1271
  %1285 = vmatpush.bf16.msra.mxu0 %v1270
  %1286 = vmatpush.bf16.msra.mxu0 %v1269
  %1287 = vmatpush.bf16.msra.mxu0 %v1268
  %1288 = vmatpush.bf16.msra.mxu0 %v1267
  %1289 = vmatpush.bf16.msra.mxu0 %v1266
  %1290 = vmatmul.bf16.gmra.mxu0 %v1218
  %v1291 = vpop.f32.mrf.mxu0
  %v1292 = vadd.f32 0.0, %v1291
  %v1293 = vpop.f32.mrf.mxu0
  %v1294 = vadd.f32 0.0, %v1293
  %1295 = vmatmul.bf16.gmra.mxu0 %v1219
  %v1296 = vpop.f32.mrf.mxu0
  %v1297 = vadd.f32 0.0, %v1296
  %v1298 = vpop.f32.mrf.mxu0
  %v1299 = vadd.f32 0.0, %v1298
  %1300 = vmatmul.bf16.gmra.mxu0 %v1220
  %v1301 = vpop.f32.mrf.mxu0
  %v1302 = vadd.f32 0.0, %v1301
  %v1303 = vpop.f32.mrf.mxu0
  %v1304 = vadd.f32 0.0, %v1303
  %1305 = vmatmul.bf16.gmra.mxu0 %v1221
  %v1306 = vpop.f32.mrf.mxu0
  %v1307 = vadd.f32 0.0, %v1306
  %v1308 = vpop.f32.mrf.mxu0
  %v1309 = vadd.f32 0.0, %v1308
  %1310 = vmatmul.bf16.gmra.mxu0 %v1222
  %v1311 = vpop.f32.mrf.mxu0
  %v1312 = vadd.f32 0.0, %v1311
  %v1313 = vpop.f32.mrf.mxu0
  %v1314 = vadd.f32 0.0, %v1313
  %1315 = vmatmul.bf16.gmra.mxu0 %v1223
  %v1316 = vpop.f32.mrf.mxu0
  %v1317 = vadd.f32 0.0, %v1316
  %v1318 = vpop.f32.mrf.mxu0
  %v1319 = vadd.f32 0.0, %v1318
  %1320 = vmatmul.bf16.gmra.mxu0 %v1224
  %v1321 = vpop.f32.mrf.mxu0
  %v1322 = vadd.f32 0.0, %v1321
  %v1323 = vpop.f32.mrf.mxu0
  %v1324 = vadd.f32 0.0, %v1323
  %1325 = vmatmul.bf16.gmra.mxu0 %v1225
  %v1326 = vpop.f32.mrf.mxu0
  %v1327 = vadd.f32 0.0, %v1326
  %v1328 = vpop.f32.mrf.mxu0
  %v1329 = vadd.f32 0.0, %v1328
  %1330 = vdwg.mxu0
  %v1331 = vadd.f32 %v1136, %v1292
  %v1332 = vadd.f32 %v1137, %v1294
  %v1333 = vadd.f32 %v1138, %v1297
  %v1334 = vadd.f32 %v1139, %v1299
  %v1335 = vadd.f32 %v1140, %v1302
  %v1336 = vadd.f32 %v1141, %v1304
  %v1337 = vadd.f32 %v1142, %v1307
  %v1338 = vadd.f32 %v1143, %v1309
  %v1339 = vadd.f32 %v1144, %v1312
  %v1340 = vadd.f32 %v1145, %v1314
  %v1341 = vadd.f32 %v1146, %v1317
  %v1342 = vadd.f32 %v1147, %v1319
  %v1343 = vadd.f32 %v1148, %v1322
  %v1344 = vadd.f32 %v1149, %v1324
  %v1345 = vadd.f32 %v1150, %v1327
  %v1346 = vadd.f32 %v1151, %v1329
  %s1347 = scalar_lea.vmem %s0, 76
  %v1348 = vld [vmem:[%s1347] sm:$0xf]
  %v1349 = vld [vmem:[%s1347 + $0x4] sm:$0xf]
  %v1350 = vld [vmem:[%s1347 + $0x8] sm:$0xf]
  %v1351 = vld [vmem:[%s1347 + $0xc] sm:$0xf]
  %v1352 = vld [vmem:[%s1347 + $0x10] sm:$0xf]
  %v1353 = vld [vmem:[%s1347 + $0x14] sm:$0xf]
  %v1354 = vld [vmem:[%s1347 + $0x18] sm:$0xf]
  %v1355 = vld [vmem:[%s1347 + $0x1c] sm:$0xf]
  %v1356 = vld [vmem:[%s1347 + $0x24] sm:$0xf]
  %v1357 = vld [vmem:[%s1347 + $0x28] sm:$0xf]
  %v1358 = vld [vmem:[%s1347 + $0x2c] sm:$0xf]
  %v1359 = vld [vmem:[%s1347 + $0x30] sm:$0xf]
  %v1360 = vld [vmem:[%s1347 + $0x34] sm:$0xf]
  %v1361 = vld [vmem:[%s1347 + $0x38] sm:$0xf]
  %v1362 = vld [vmem:[%s1347 + $0x3c] sm:$0xf]
  %v1363 = vld [vmem:[%s1347 + $0x40] sm:$0xf]
  %s1364 = scalar_lea.vmem %s1, 448
  %v1365 = vld [vmem:[%s1364] sm:$0xf]
  %v1366 = vld [vmem:[%s1364 + $0x4] sm:$0xf]
  %v1367 = vld [vmem:[%s1364 + $0x8] sm:$0xf]
  %v1368 = vld [vmem:[%s1364 + $0xc] sm:$0xf]
  %v1369 = vld [vmem:[%s1364 + $0x10] sm:$0xf]
  %v1370 = vld [vmem:[%s1364 + $0x14] sm:$0xf]
  %v1371 = vld [vmem:[%s1364 + $0x18] sm:$0xf]
  %v1372 = vld [vmem:[%s1364 + $0x1c] sm:$0xf]
  %v1373 = vld [vmem:[%s1364 + $0x20] sm:$0xf]
  %v1374 = vld [vmem:[%s1364 + $0x24] sm:$0xf]
  %v1375 = vld [vmem:[%s1364 + $0x28] sm:$0xf]
  %v1376 = vld [vmem:[%s1364 + $0x2c] sm:$0xf]
  %v1377 = vld [vmem:[%s1364 + $0x30] sm:$0xf]
  %v1378 = vld [vmem:[%s1364 + $0x34] sm:$0xf]
  %v1379 = vld [vmem:[%s1364 + $0x38] sm:$0xf]
  %v1380 = vld [vmem:[%s1364 + $0x3c] sm:$0xf]
  %v1397 = vunpack.c.l.b16 %v1348
  %v1398 = vunpack.c.l.b16 %v1349
  %v1399 = vunpack.c.l.b16 %v1350
  %v1400 = vunpack.c.l.b16 %v1351
  %v1401 = vunpack.c.l.b16 %v1352
  %v1402 = vunpack.c.l.b16 %v1353
  %v1403 = vunpack.c.l.b16 %v1354
  %v1404 = vunpack.c.l.b16 %v1355
  %v1405 = vunpack.c.l.b16 %v1356
  %v1406 = vunpack.c.l.b16 %v1357
  %v1407 = vunpack.c.l.b16 %v1358
  %v1408 = vunpack.c.l.b16 %v1359
  %v1409 = vunpack.c.l.b16 %v1360
  %v1410 = vunpack.c.l.b16 %v1361
  %v1411 = vunpack.c.l.b16 %v1362
  %v1412 = vunpack.c.l.b16 %v1363
  %v1413 = vpack.c.b16 %v1398, %v1397
  %v1414 = vpack.c.b16 %v1400, %v1399
  %v1415 = vpack.c.b16 %v1402, %v1401
  %v1416 = vpack.c.b16 %v1404, %v1403
  %v1417 = vpack.c.b16 %v1406, %v1405
  %v1418 = vpack.c.b16 %v1408, %v1407
  %v1419 = vpack.c.b16 %v1410, %v1409
  %v1420 = vpack.c.b16 %v1412, %v1411
  %v1445 = vunpack.c.l.b16 %v1365
  %v1446 = vunpack.c.l.b16 %v1366
  %v1447 = vunpack.c.l.b16 %v1367
  %v1448 = vunpack.c.l.b16 %v1368
  %v1449 = vunpack.c.l.b16 %v1369
  %v1450 = vunpack.c.l.b16 %v1370
  %v1451 = vunpack.c.l.b16 %v1371
  %v1452 = vunpack.c.l.b16 %v1372
  %v1453 = vunpack.c.l.b16 %v1373
  %v1454 = vunpack.c.l.b16 %v1374
  %v1455 = vunpack.c.l.b16 %v1375
  %v1456 = vunpack.c.l.b16 %v1376
  %v1457 = vunpack.c.l.b16 %v1377
  %v1458 = vunpack.c.l.b16 %v1378
  %v1459 = vunpack.c.l.b16 %v1379
  %v1460 = vunpack.c.l.b16 %v1380
  %v1461 = vpack.c.b16 %v1446, %v1445
  %v1462 = vpack.c.b16 %v1448, %v1447
  %v1463 = vpack.c.b16 %v1450, %v1449
  %v1464 = vpack.c.b16 %v1452, %v1451
  %v1465 = vpack.c.b16 %v1454, %v1453
  %v1466 = vpack.c.b16 %v1456, %v1455
  %v1467 = vpack.c.b16 %v1458, %v1457
  %v1468 = vpack.c.b16 %v1460, %v1459
  %1477 = vmatpush.bf16.msra.mxu0 %v1468
  %1478 = vmatpush.bf16.msra.mxu0 %v1467
  %1479 = vmatpush.bf16.msra.mxu0 %v1466
  %1480 = vmatpush.bf16.msra.mxu0 %v1465
  %1481 = vmatpush.bf16.msra.mxu0 %v1464
  %1482 = vmatpush.bf16.msra.mxu0 %v1463
  %1483 = vmatpush.bf16.msra.mxu0 %v1462
  %1484 = vmatpush.bf16.msra.mxu0 %v1461
  %1485 = vmatmul.bf16.gmra.mxu0 %v1413
  %v1486 = vpop.f32.mrf.mxu0
  %v1487 = vadd.f32 0.0, %v1486
  %v1488 = vpop.f32.mrf.mxu0
  %v1489 = vadd.f32 0.0, %v1488
  %1490 = vmatmul.bf16.gmra.mxu0 %v1414
  %v1491 = vpop.f32.mrf.mxu0
  %v1492 = vadd.f32 0.0, %v1491
  %v1493 = vpop.f32.mrf.mxu0
  %v1494 = vadd.f32 0.0, %v1493
  %1495 = vmatmul.bf16.gmra.mxu0 %v1415
  %v1496 = vpop.f32.mrf.mxu0
  %v1497 = vadd.f32 0.0, %v1496
  %v1498 = vpop.f32.mrf.mxu0
  %v1499 = vadd.f32 0.0, %v1498
  %1500 = vmatmul.bf16.gmra.mxu0 %v1416
  %v1501 = vpop.f32.mrf.mxu0
  %v1502 = vadd.f32 0.0, %v1501
  %v1503 = vpop.f32.mrf.mxu0
  %v1504 = vadd.f32 0.0, %v1503
  %1505 = vmatmul.bf16.gmra.mxu0 %v1417
  %v1506 = vpop.f32.mrf.mxu0
  %v1507 = vadd.f32 0.0, %v1506
  %v1508 = vpop.f32.mrf.mxu0
  %v1509 = vadd.f32 0.0, %v1508
  %1510 = vmatmul.bf16.gmra.mxu0 %v1418
  %v1511 = vpop.f32.mrf.mxu0
  %v1512 = vadd.f32 0.0, %v1511
  %v1513 = vpop.f32.mrf.mxu0
  %v1514 = vadd.f32 0.0, %v1513
  %1515 = vmatmul.bf16.gmra.mxu0 %v1419
  %v1516 = vpop.f32.mrf.mxu0
  %v1517 = vadd.f32 0.0, %v1516
  %v1518 = vpop.f32.mrf.mxu0
  %v1519 = vadd.f32 0.0, %v1518
  %1520 = vmatmul.bf16.gmra.mxu0 %v1420
  %v1521 = vpop.f32.mrf.mxu0
  %v1522 = vadd.f32 0.0, %v1521
  %v1523 = vpop.f32.mrf.mxu0
  %v1524 = vadd.f32 0.0, %v1523
  %1525 = vdwg.mxu0
  %v1526 = vadd.f32 %v1331, %v1487
  %v1527 = vadd.f32 %v1332, %v1489
  %v1528 = vadd.f32 %v1333, %v1492
  %v1529 = vadd.f32 %v1334, %v1494
  %v1530 = vadd.f32 %v1335, %v1497
  %v1531 = vadd.f32 %v1336, %v1499
  %v1532 = vadd.f32 %v1337, %v1502
  %v1533 = vadd.f32 %v1338, %v1504
  %v1534 = vadd.f32 %v1339, %v1507
  %v1535 = vadd.f32 %v1340, %v1509
  %v1536 = vadd.f32 %v1341, %v1512
  %v1537 = vadd.f32 %v1342, %v1514
  %v1538 = vadd.f32 %v1343, %v1517
  %v1539 = vadd.f32 %v1344, %v1519
  %v1540 = vadd.f32 %v1345, %v1522
  %v1541 = vadd.f32 %v1346, %v1524
  %s1542 = scalar_lea.vmem %s0, 148
  %v1543 = vld [vmem:[%s1542] sm:$0xf]
  %v1544 = vld [vmem:[%s1542 + $0x4] sm:$0xf]
  %v1545 = vld [vmem:[%s1542 + $0x8] sm:$0xf]
  %v1546 = vld [vmem:[%s1542 + $0xc] sm:$0xf]
  %v1547 = vld [vmem:[%s1542 + $0x10] sm:$0xf]
  %v1548 = vld [vmem:[%s1542 + $0x14] sm:$0xf]
  %v1549 = vld [vmem:[%s1542 + $0x18] sm:$0xf]
  %v1550 = vld [vmem:[%s1542 + $0x1c] sm:$0xf]
  %v1551 = vld [vmem:[%s1542 + $0x24] sm:$0xf]
  %v1552 = vld [vmem:[%s1542 + $0x28] sm:$0xf]
  %v1553 = vld [vmem:[%s1542 + $0x2c] sm:$0xf]
  %v1554 = vld [vmem:[%s1542 + $0x30] sm:$0xf]
  %v1555 = vld [vmem:[%s1542 + $0x34] sm:$0xf]
  %v1556 = vld [vmem:[%s1542 + $0x38] sm:$0xf]
  %v1557 = vld [vmem:[%s1542 + $0x3c] sm:$0xf]
  %v1558 = vld [vmem:[%s1542 + $0x40] sm:$0xf]
  %s1559 = scalar_lea.vmem %s1, 512
  %v1560 = vld [vmem:[%s1559] sm:$0xf]
  %v1561 = vld [vmem:[%s1559 + $0x4] sm:$0xf]
  %v1562 = vld [vmem:[%s1559 + $0x8] sm:$0xf]
  %v1563 = vld [vmem:[%s1559 + $0xc] sm:$0xf]
  %v1564 = vld [vmem:[%s1559 + $0x10] sm:$0xf]
  %v1565 = vld [vmem:[%s1559 + $0x14] sm:$0xf]
  %v1566 = vld [vmem:[%s1559 + $0x18] sm:$0xf]
  %v1567 = vld [vmem:[%s1559 + $0x1c] sm:$0xf]
  %v1568 = vld [vmem:[%s1559 + $0x20] sm:$0xf]
  %v1569 = vld [vmem:[%s1559 + $0x24] sm:$0xf]
  %v1570 = vld [vmem:[%s1559 + $0x28] sm:$0xf]
  %v1571 = vld [vmem:[%s1559 + $0x2c] sm:$0xf]
  %v1572 = vld [vmem:[%s1559 + $0x30] sm:$0xf]
  %v1573 = vld [vmem:[%s1559 + $0x34] sm:$0xf]
  %v1574 = vld [vmem:[%s1559 + $0x38] sm:$0xf]
  %v1575 = vld [vmem:[%s1559 + $0x3c] sm:$0xf]
  %v1592 = vunpack.c.l.b16 %v1543
  %v1593 = vunpack.c.l.b16 %v1544
  %v1594 = vunpack.c.l.b16 %v1545
  %v1595 = vunpack.c.l.b16 %v1546
  %v1596 = vunpack.c.l.b16 %v1547
  %v1597 = vunpack.c.l.b16 %v1548
  %v1598 = vunpack.c.l.b16 %v1549
  %v1599 = vunpack.c.l.b16 %v1550
  %v1600 = vunpack.c.l.b16 %v1551
  %v1601 = vunpack.c.l.b16 %v1552
  %v1602 = vunpack.c.l.b16 %v1553
  %v1603 = vunpack.c.l.b16 %v1554
  %v1604 = vunpack.c.l.b16 %v1555
  %v1605 = vunpack.c.l.b16 %v1556
  %v1606 = vunpack.c.l.b16 %v1557
  %v1607 = vunpack.c.l.b16 %v1558
  %v1608 = vpack.c.b16 %v1593, %v1592
  %v1609 = vpack.c.b16 %v1595, %v1594
  %v1610 = vpack.c.b16 %v1597, %v1596
  %v1611 = vpack.c.b16 %v1599, %v1598
  %v1612 = vpack.c.b16 %v1601, %v1600
  %v1613 = vpack.c.b16 %v1603, %v1602
  %v1614 = vpack.c.b16 %v1605, %v1604
  %v1615 = vpack.c.b16 %v1607, %v1606
  %v1640 = vunpack.c.l.b16 %v1560
  %v1641 = vunpack.c.l.b16 %v1561
  %v1642 = vunpack.c.l.b16 %v1562
  %v1643 = vunpack.c.l.b16 %v1563
  %v1644 = vunpack.c.l.b16 %v1564
  %v1645 = vunpack.c.l.b16 %v1565
  %v1646 = vunpack.c.l.b16 %v1566
  %v1647 = vunpack.c.l.b16 %v1567
  %v1648 = vunpack.c.l.b16 %v1568
  %v1649 = vunpack.c.l.b16 %v1569
  %v1650 = vunpack.c.l.b16 %v1570
  %v1651 = vunpack.c.l.b16 %v1571
  %v1652 = vunpack.c.l.b16 %v1572
  %v1653 = vunpack.c.l.b16 %v1573
  %v1654 = vunpack.c.l.b16 %v1574
  %v1655 = vunpack.c.l.b16 %v1575
  %v1656 = vpack.c.b16 %v1641, %v1640
  %v1657 = vpack.c.b16 %v1643, %v1642
  %v1658 = vpack.c.b16 %v1645, %v1644
  %v1659 = vpack.c.b16 %v1647, %v1646
  %v1660 = vpack.c.b16 %v1649, %v1648
  %v1661 = vpack.c.b16 %v1651, %v1650
  %v1662 = vpack.c.b16 %v1653, %v1652
  %v1663 = vpack.c.b16 %v1655, %v1654
  %1672 = vmatpush.bf16.msra.mxu0 %v1663
  %1673 = vmatpush.bf16.msra.mxu0 %v1662
  %1674 = vmatpush.bf16.msra.mxu0 %v1661
  %1675 = vmatpush.bf16.msra.mxu0 %v1660
  %1676 = vmatpush.bf16.msra.mxu0 %v1659
  %1677 = vmatpush.bf16.msra.mxu0 %v1658
  %1678 = vmatpush.bf16.msra.mxu0 %v1657
  %1679 = vmatpush.bf16.msra.mxu0 %v1656
  %1680 = vmatmul.bf16.gmra.mxu0 %v1608
  %v1681 = vpop.f32.mrf.mxu0
  %v1682 = vadd.f32 0.0, %v1681
  %v1683 = vpop.f32.mrf.mxu0
  %v1684 = vadd.f32 0.0, %v1683
  %1685 = vmatmul.bf16.gmra.mxu0 %v1609
  %v1686 = vpop.f32.mrf.mxu0
  %v1687 = vadd.f32 0.0, %v1686
  %v1688 = vpop.f32.mrf.mxu0
  %v1689 = vadd.f32 0.0, %v1688
  %1690 = vmatmul.bf16.gmra.mxu0 %v1610
  %v1691 = vpop.f32.mrf.mxu0
  %v1692 = vadd.f32 0.0, %v1691
  %v1693 = vpop.f32.mrf.mxu0
  %v1694 = vadd.f32 0.0, %v1693
  %1695 = vmatmul.bf16.gmra.mxu0 %v1611
  %v1696 = vpop.f32.mrf.mxu0
  %v1697 = vadd.f32 0.0, %v1696
  %v1698 = vpop.f32.mrf.mxu0
  %v1699 = vadd.f32 0.0, %v1698
  %1700 = vmatmul.bf16.gmra.mxu0 %v1612
  %v1701 = vpop.f32.mrf.mxu0
  %v1702 = vadd.f32 0.0, %v1701
  %v1703 = vpop.f32.mrf.mxu0
  %v1704 = vadd.f32 0.0, %v1703
  %1705 = vmatmul.bf16.gmra.mxu0 %v1613
  %v1706 = vpop.f32.mrf.mxu0
  %v1707 = vadd.f32 0.0, %v1706
  %v1708 = vpop.f32.mrf.mxu0
  %v1709 = vadd.f32 0.0, %v1708
  %1710 = vmatmul.bf16.gmra.mxu0 %v1614
  %v1711 = vpop.f32.mrf.mxu0
  %v1712 = vadd.f32 0.0, %v1711
  %v1713 = vpop.f32.mrf.mxu0
  %v1714 = vadd.f32 0.0, %v1713
  %1715 = vmatmul.bf16.gmra.mxu0 %v1615
  %v1716 = vpop.f32.mrf.mxu0
  %v1717 = vadd.f32 0.0, %v1716
  %v1718 = vpop.f32.mrf.mxu0
  %v1719 = vadd.f32 0.0, %v1718
  %1720 = vdwg.mxu0
  %v1721 = vadd.f32 %v1526, %v1682
  %v1722 = vadd.f32 %v1527, %v1684
  %v1723 = vadd.f32 %v1528, %v1687
  %v1724 = vadd.f32 %v1529, %v1689
  %v1725 = vadd.f32 %v1530, %v1692
  %v1726 = vadd.f32 %v1531, %v1694
  %v1727 = vadd.f32 %v1532, %v1697
  %v1728 = vadd.f32 %v1533, %v1699
  %v1729 = vadd.f32 %v1534, %v1702
  %v1730 = vadd.f32 %v1535, %v1704
  %v1731 = vadd.f32 %v1536, %v1707
  %v1732 = vadd.f32 %v1537, %v1709
  %v1733 = vadd.f32 %v1538, %v1712
  %v1734 = vadd.f32 %v1539, %v1714
  %v1735 = vadd.f32 %v1540, %v1717
  %v1736 = vadd.f32 %v1541, %v1719
  %v1737 = vpack.c.bf16 %v1721, %v1721
  %v1738 = vpack.c.bf16 %v1722, %v1722
  %v1739 = vpack.c.bf16 %v1723, %v1723
  %v1740 = vpack.c.bf16 %v1724, %v1724
  %v1741 = vpack.c.bf16 %v1725, %v1725
  %v1742 = vpack.c.bf16 %v1726, %v1726
  %v1743 = vpack.c.bf16 %v1727, %v1727
  %v1744 = vpack.c.bf16 %v1728, %v1728
  %v1745 = vpack.c.bf16 %v1729, %v1729
  %v1746 = vpack.c.bf16 %v1730, %v1730
  %v1747 = vpack.c.bf16 %v1731, %v1731
  %v1748 = vpack.c.bf16 %v1732, %v1732
  %v1749 = vpack.c.bf16 %v1733, %v1733
  %v1750 = vpack.c.bf16 %v1734, %v1734
  %v1751 = vpack.c.bf16 %v1735, %v1735
  %v1752 = vpack.c.bf16 %v1736, %v1736
  %1753 = vst [vmem:[%s3] sm:$0xf] %v1737
  %1754 = vst [vmem:[%s3 + $0x4] sm:$0xf] %v1738
  %1755 = vst [vmem:[%s3 + $0x8] sm:$0xf] %v1739
  %1756 = vst [vmem:[%s3 + $0xc] sm:$0xf] %v1740
  %1757 = vst [vmem:[%s3 + $0x10] sm:$0xf] %v1741
  %1758 = vst [vmem:[%s3 + $0x14] sm:$0xf] %v1742
  %1759 = vst [vmem:[%s3 + $0x18] sm:$0xf] %v1743
  %1760 = vst [vmem:[%s3 + $0x1c] sm:$0xf] %v1744
  %1761 = vst [vmem:[%s3 + $0x20] sm:$0xf] %v1745
  %1762 = vst [vmem:[%s3 + $0x24] sm:$0xf] %v1746
  %1763 = vst [vmem:[%s3 + $0x28] sm:$0xf] %v1747
  %1764 = vst [vmem:[%s3 + $0x2c] sm:$0xf] %v1748
  %1765 = vst [vmem:[%s3 + $0x30] sm:$0xf] %v1749
  %1766 = vst [vmem:[%s3 + $0x34] sm:$0xf] %v1750
  %1767 = vst [vmem:[%s3 + $0x38] sm:$0xf] %v1751
  %1768 = vst [vmem:[%s3 + $0x3c] sm:$0xf] %v1752
  %v1769 = vld [vmem:[%s762] sm:$0xf]
  %v1770 = vld [vmem:[%s762 + $0x4] sm:$0xf]
  %v1771 = vld [vmem:[%s762 + $0x8] sm:$0xf]
  %v1772 = vld [vmem:[%s762 + $0xc] sm:$0xf]
  %v1773 = vld [vmem:[%s762 + $0x10] sm:$0xf]
  %v1774 = vld [vmem:[%s762 + $0x14] sm:$0xf]
  %v1775 = vld [vmem:[%s762 + $0x18] sm:$0xf]
  %v1776 = vld [vmem:[%s762 + $0x1c] sm:$0xf]
  %v1777 = vld [vmem:[%s762 + $0x24] sm:$0xf]
  %v1778 = vld [vmem:[%s762 + $0x28] sm:$0xf]
  %v1779 = vld [vmem:[%s762 + $0x2c] sm:$0xf]
  %v1780 = vld [vmem:[%s762 + $0x30] sm:$0xf]
  %v1781 = vld [vmem:[%s762 + $0x34] sm:$0xf]
  %v1782 = vld [vmem:[%s762 + $0x38] sm:$0xf]
  %v1783 = vld [vmem:[%s762 + $0x3c] sm:$0xf]
  %v1784 = vld [vmem:[%s762 + $0x40] sm:$0xf]
  %v1785 = vld [vmem:[%s2] sm:$0xf]
  %v1786 = vld [vmem:[%s2 + $0x4] sm:$0xf]
  %v1787 = vld [vmem:[%s2 + $0x8] sm:$0xf]
  %v1788 = vld [vmem:[%s2 + $0xc] sm:$0xf]
  %v1789 = vld [vmem:[%s2 + $0x10] sm:$0xf]
  %v1790 = vld [vmem:[%s2 + $0x14] sm:$0xf]
  %v1791 = vld [vmem:[%s2 + $0x18] sm:$0xf]
  %v1792 = vld [vmem:[%s2 + $0x1c] sm:$0xf]
  %v1793 = vld [vmem:[%s2 + $0x20] sm:$0xf]
  %v1794 = vld [vmem:[%s2 + $0x24] sm:$0xf]
  %v1795 = vld [vmem:[%s2 + $0x28] sm:$0xf]
  %v1796 = vld [vmem:[%s2 + $0x2c] sm:$0xf]
  %v1797 = vld [vmem:[%s2 + $0x30] sm:$0xf]
  %v1798 = vld [vmem:[%s2 + $0x34] sm:$0xf]
  %v1799 = vld [vmem:[%s2 + $0x38] sm:$0xf]
  %v1800 = vld [vmem:[%s2 + $0x3c] sm:$0xf]
  %v1817 = vunpack.c.l.b16 %v1769
  %v1818 = vunpack.c.l.b16 %v1770
  %v1819 = vunpack.c.l.b16 %v1771
  %v1820 = vunpack.c.l.b16 %v1772
  %v1821 = vunpack.c.l.b16 %v1773
  %v1822 = vunpack.c.l.b16 %v1774
  %v1823 = vunpack.c.l.b16 %v1775
  %v1824 = vunpack.c.l.b16 %v1776
  %v1825 = vunpack.c.l.b16 %v1777
  %v1826 = vunpack.c.l.b16 %v1778
  %v1827 = vunpack.c.l.b16 %v1779
  %v1828 = vunpack.c.l.b16 %v1780
  %v1829 = vunpack.c.l.b16 %v1781
  %v1830 = vunpack.c.l.b16 %v1782
  %v1831 = vunpack.c.l.b16 %v1783
  %v1832 = vunpack.c.l.b16 %v1784
  %v1833 = vpack.c.b16 %v1818, %v1817
  %v1834 = vpack.c.b16 %v1820, %v1819
  %v1835 = vpack.c.b16 %v1822, %v1821
  %v1836 = vpack.c.b16 %v1824, %v1823
  %v1837 = vpack.c.b16 %v1826, %v1825
  %v1838 = vpack.c.b16 %v1828, %v1827
  %v1839 = vpack.c.b16 %v1830, %v1829
  %v1840 = vpack.c.b16 %v1832, %v1831
  %v1865 = vunpack.c.l.b16 %v1785
  %v1866 = vunpack.c.l.b16 %v1786
  %v1867 = vunpack.c.l.b16 %v1787
  %v1868 = vunpack.c.l.b16 %v1788
  %v1869 = vunpack.c.l.b16 %v1789
  %v1870 = vunpack.c.l.b16 %v1790
  %v1871 = vunpack.c.l.b16 %v1791
  %v1872 = vunpack.c.l.b16 %v1792
  %v1873 = vunpack.c.l.b16 %v1793
  %v1874 = vunpack.c.l.b16 %v1794
  %v1875 = vunpack.c.l.b16 %v1795
  %v1876 = vunpack.c.l.b16 %v1796
  %v1877 = vunpack.c.l.b16 %v1797
  %v1878 = vunpack.c.l.b16 %v1798
  %v1879 = vunpack.c.l.b16 %v1799
  %v1880 = vunpack.c.l.b16 %v1800
  %v1881 = vpack.c.b16 %v1866, %v1865
  %v1882 = vpack.c.b16 %v1868, %v1867
  %v1883 = vpack.c.b16 %v1870, %v1869
  %v1884 = vpack.c.b16 %v1872, %v1871
  %v1885 = vpack.c.b16 %v1874, %v1873
  %v1886 = vpack.c.b16 %v1876, %v1875
  %v1887 = vpack.c.b16 %v1878, %v1877
  %v1888 = vpack.c.b16 %v1880, %v1879
  %1897 = vmatpush.bf16.msra.mxu0 %v1888
  %1898 = vmatpush.bf16.msra.mxu0 %v1887
  %1899 = vmatpush.bf16.msra.mxu0 %v1886
  %1900 = vmatpush.bf16.msra.mxu0 %v1885
  %1901 = vmatpush.bf16.msra.mxu0 %v1884
  %1902 = vmatpush.bf16.msra.mxu0 %v1883
  %1903 = vmatpush.bf16.msra.mxu0 %v1882
  %1904 = vmatpush.bf16.msra.mxu0 %v1881
  %1905 = vmatmul.bf16.gmra.mxu0 %v1833
  %v1906 = vpop.f32.mrf.mxu0
  %v1907 = vadd.f32 0.0, %v1906
  %v1908 = vpop.f32.mrf.mxu0
  %v1909 = vadd.f32 0.0, %v1908
  %1910 = vmatmul.bf16.gmra.mxu0 %v1834
  %v1911 = vpop.f32.mrf.mxu0
  %v1912 = vadd.f32 0.0, %v1911
  %v1913 = vpop.f32.mrf.mxu0
  %v1914 = vadd.f32 0.0, %v1913
  %1915 = vmatmul.bf16.gmra.mxu0 %v1835
  %v1916 = vpop.f32.mrf.mxu0
  %v1917 = vadd.f32 0.0, %v1916
  %v1918 = vpop.f32.mrf.mxu0
  %v1919 = vadd.f32 0.0, %v1918
  %1920 = vmatmul.bf16.gmra.mxu0 %v1836
  %v1921 = vpop.f32.mrf.mxu0
  %v1922 = vadd.f32 0.0, %v1921
  %v1923 = vpop.f32.mrf.mxu0
  %v1924 = vadd.f32 0.0, %v1923
  %1925 = vmatmul.bf16.gmra.mxu0 %v1837
  %v1926 = vpop.f32.mrf.mxu0
  %v1927 = vadd.f32 0.0, %v1926
  %v1928 = vpop.f32.mrf.mxu0
  %v1929 = vadd.f32 0.0, %v1928
  %1930 = vmatmul.bf16.gmra.mxu0 %v1838
  %v1931 = vpop.f32.mrf.mxu0
  %v1932 = vadd.f32 0.0, %v1931
  %v1933 = vpop.f32.mrf.mxu0
  %v1934 = vadd.f32 0.0, %v1933
  %1935 = vmatmul.bf16.gmra.mxu0 %v1839
  %v1936 = vpop.f32.mrf.mxu0
  %v1937 = vadd.f32 0.0, %v1936
  %v1938 = vpop.f32.mrf.mxu0
  %v1939 = vadd.f32 0.0, %v1938
  %1940 = vmatmul.bf16.gmra.mxu0 %v1840
  %v1941 = vpop.f32.mrf.mxu0
  %v1942 = vadd.f32 0.0, %v1941
  %v1943 = vpop.f32.mrf.mxu0
  %v1944 = vadd.f32 0.0, %v1943
  %1945 = vdwg.mxu0
  %v1946 = vpack.c.bf16 %v1907, %v1907
  %v1947 = vpack.c.bf16 %v1909, %v1909
  %v1948 = vpack.c.bf16 %v1912, %v1912
  %v1949 = vpack.c.bf16 %v1914, %v1914
  %v1950 = vpack.c.bf16 %v1917, %v1917
  %v1951 = vpack.c.bf16 %v1919, %v1919
  %v1952 = vpack.c.bf16 %v1922, %v1922
  %v1953 = vpack.c.bf16 %v1924, %v1924
  %v1954 = vpack.c.bf16 %v1927, %v1927
  %v1955 = vpack.c.bf16 %v1929, %v1929
  %v1956 = vpack.c.bf16 %v1932, %v1932
  %v1957 = vpack.c.bf16 %v1934, %v1934
  %v1958 = vpack.c.bf16 %v1937, %v1937
  %v1959 = vpack.c.bf16 %v1939, %v1939
  %v1960 = vpack.c.bf16 %v1942, %v1942
  %v1961 = vpack.c.bf16 %v1944, %v1944
  %1962 = vst [vmem:[%s4] sm:$0xf] %v1946
  %1963 = vst [vmem:[%s4 + $0x4] sm:$0xf] %v1947
  %1964 = vst [vmem:[%s4 + $0x8] sm:$0xf] %v1948
  %1965 = vst [vmem:[%s4 + $0xc] sm:$0xf] %v1949
  %1966 = vst [vmem:[%s4 + $0x10] sm:$0xf] %v1950
  %1967 = vst [vmem:[%s4 + $0x14] sm:$0xf] %v1951
  %1968 = vst [vmem:[%s4 + $0x18] sm:$0xf] %v1952
  %1969 = vst [vmem:[%s4 + $0x1c] sm:$0xf] %v1953
  %1970 = vst [vmem:[%s4 + $0x20] sm:$0xf] %v1954
  %1971 = vst [vmem:[%s4 + $0x24] sm:$0xf] %v1955
  %1972 = vst [vmem:[%s4 + $0x28] sm:$0xf] %v1956
  %1973 = vst [vmem:[%s4 + $0x2c] sm:$0xf] %v1957
  %1974 = vst [vmem:[%s4 + $0x30] sm:$0xf] %v1958
  %1975 = vst [vmem:[%s4 + $0x34] sm:$0xf] %v1959
  %1976 = vst [vmem:[%s4 + $0x38] sm:$0xf] %v1960
  %1977 = vst [vmem:[%s4 + $0x3c] sm:$0xf] %v1961
  // Predicated region
  $region14: #{basic_block_forward.2} parent=0 // pred_check
    _
  $region15: #{basic_block_forward.2} parent=0 // pred_check_branch
    %1979 = sbr.rel (0) target = $region17
  $region16: #{basic_block_forward.2} parent=0 // pred_region
    _
  $region17: #{basic_block_forward.2} parent=0 // pred_fallthru
    _
  // Predicated region
  $region18: #{basic_block_forward.2} parent=0 // pred_check
    _
  $region19: #{basic_block_forward.2} parent=0 // pred_check_branch
    %1981 = sbr.rel (0) target = $region21
  $region20: #{basic_block_forward.2} parent=0 // pred_region
    _
  $region21: #{basic_block_forward.2} parent=0 // pred_fallthru
    _
  // Predicated region
  $region22: #{basic_block_forward.2} parent=0 // pred_check
    _
  $region23: #{basic_block_forward.2} parent=0 // pred_check_branch
    %1983 = sbr.rel (0) target = $region25
  $region24: #{basic_block_forward.2} parent=0 // pred_region
    _
  $region25: #{basic_block_forward.2} parent=0 // pred_fallthru
    _
  // Predicated region
  $region26: #{basic_block_forward.2} parent=0 // pred_check
    _
  $region27: #{basic_block_forward.2} parent=0 // pred_check_branch
    %1985 = sbr.rel (0) target = $region29
  $region28: #{basic_block_forward.2} parent=0 // pred_region
    _
  $region29: #{basic_block_forward.2} parent=0 // pred_fallthru
    _

// kernel: basic_block_forward.3
$region0: #{basic_block_forward.3}
  #allocation0 [shape = 'u32[]', space=smem, size = 0x4, offset = 0x4, fixed_abs, tag = 'smem constant byte address 0x4 - core index']
  #allocation1 [shape = 'u32[72,128]{1,0:T(1,128)}', space=vmem, size = 0x9000, scoped, tag = 'internal scratch']
  %s0 = inlined_call_operand.vmem [shape: bf16[3,2,10,8,128], index: 0, kind: input, shape index: {}]
  %s1 = inlined_call_operand.vmem [shape: bf16[9,128,128], index: 1, kind: input, shape index: {}]
  %s2 = inlined_call_operand.vmem [shape: bf16[2,8,8,128], index: 2, kind: input, shape index: {}]
  %s3 = inlined_call_operand.hbm [shape: f32[2,8,8,128], index: 3, kind: output, shape index: {}]
  %s4 = sld [smem:[#allocation0]]
  $region22: #{basic_block_forward.3} parent=0
    _
  %s6 = ssub.s32 1, %s4
  %s7 = scalar_select 0, %s6, %s4
  $region1: #{basic_block_forward.3} parent=0
    #allocation2 [shape = 'u8[65536]{0}', space=vmem, size = 0x10000, scoped, tag = 'output window, operand 0, single buffered']
    #allocation3 [shape = 's32[1]{0}', space=sflag, size = 0x4, scoped, tag = 'scoped memory for basic_block_forward.3']
    %8 = vsyncpa [#allocation3], 0
    // Predicated region
    $region2: #{basic_block_forward.3} parent=1 // pred_check
      _
    $region3: #{basic_block_forward.3} parent=1 // pred_check_branch
      %10 = sbr.rel (0) target = $region5
    $region4: #{basic_block_forward.3} parent=1 // pred_region
      _
    $region5: #{basic_block_forward.3} parent=1 // pred_fallthru
      _
    // Predicated region
    $region6: #{basic_block_forward.3} parent=1 // pred_check
      _
    $region7: #{basic_block_forward.3} parent=1 // pred_check_branch
      %12 = sbr.rel (0) target = $region9
    $region8: #{basic_block_forward.3} parent=1 // pred_region
      _
    $region9: #{basic_block_forward.3} parent=1 // pred_fallthru
      _
    // Predicated region
    $region10: #{basic_block_forward.3} parent=1 // pred_check
      _
    $region11: #{basic_block_forward.3} parent=1 // pred_check_branch
      %14 = sbr.rel (0) target = $region13
    $region12: #{basic_block_forward.3} parent=1 // pred_region
      _
    $region13: #{basic_block_forward.3} parent=1 // pred_fallthru
      _
    %v15 = vld [vmem:[%s0] sm:$0xf]
    %v16 = vld [vmem:[%s0 + $0x4] sm:$0xf]
    %v17 = vld [vmem:[%s0 + $0x8] sm:$0xf]
    %v18 = vld [vmem:[%s0 + $0xc] sm:$0xf]
    %v19 = vld [vmem:[%s0 + $0x10] sm:$0xf]
    %v20 = vld [vmem:[%s0 + $0x14] sm:$0xf]
    %v21 = vld [vmem:[%s0 + $0x18] sm:$0xf]
    %v22 = vld [vmem:[%s0 + $0x1c] sm:$0xf]
    %v23 = vld [vmem:[%s0 + $0x28] sm:$0xf]
    %v24 = vld [vmem:[%s0 + $0x2c] sm:$0xf]
    %v25 = vld [vmem:[%s0 + $0x30] sm:$0xf]
    %v26 = vld [vmem:[%s0 + $0x34] sm:$0xf]
    %v27 = vld [vmem:[%s0 + $0x38] sm:$0xf]
    %v28 = vld [vmem:[%s0 + $0x3c] sm:$0xf]
    %v29 = vld [vmem:[%s0 + $0x40] sm:$0xf]
    %v30 = vld [vmem:[%s0 + $0x44] sm:$0xf]
    %v31 = vld [vmem:[%s1] sm:$0xf]
    %v32 = vld [vmem:[%s1 + $0x4] sm:$0xf]
    %v33 = vld [vmem:[%s1 + $0x8] sm:$0xf]
    %v34 = vld [vmem:[%s1 + $0xc] sm:$0xf]
    %v35 = vld [vmem:[%s1 + $0x10] sm:$0xf]
    %v36 = vld [vmem:[%s1 + $0x14] sm:$0xf]
    %v37 = vld [vmem:[%s1 + $0x18] sm:$0xf]
    %v38 = vld [vmem:[%s1 + $0x1c] sm:$0xf]
    %v39 = vld [vmem:[%s1 + $0x20] sm:$0xf]
    %v40 = vld [vmem:[%s1 + $0x24] sm:$0xf]
    %v41 = vld [vmem:[%s1 + $0x28] sm:$0xf]
    %v42 = vld [vmem:[%s1 + $0x2c] sm:$0xf]
    %v43 = vld [vmem:[%s1 + $0x30] sm:$0xf]
    %v44 = vld [vmem:[%s1 + $0x34] sm:$0xf]
    %v45 = vld [vmem:[%s1 + $0x38] sm:$0xf]
    %v46 = vld [vmem:[%s1 + $0x3c] sm:$0xf]
    %s47 = scalar_lea.vmem %s0, 80
    %v48 = vld [vmem:[%s47] sm:$0xf]
    %v49 = vld [vmem:[%s47 + $0x4] sm:$0xf]
    %v50 = vld [vmem:[%s47 + $0x8] sm:$0xf]
    %v51 = vld [vmem:[%s47 + $0xc] sm:$0xf]
    %v52 = vld [vmem:[%s47 + $0x10] sm:$0xf]
    %v53 = vld [vmem:[%s47 + $0x14] sm:$0xf]
    %v54 = vld [vmem:[%s47 + $0x18] sm:$0xf]
    %v55 = vld [vmem:[%s47 + $0x1c] sm:$0xf]
    %v56 = vld [vmem:[%s47 + $0x28] sm:$0xf]
    %v57 = vld [vmem:[%s47 + $0x2c] sm:$0xf]
    %v58 = vld [vmem:[%s47 + $0x30] sm:$0xf]
    %v59 = vld [vmem:[%s47 + $0x34] sm:$0xf]
    %v60 = vld [vmem:[%s47 + $0x38] sm:$0xf]
    %v61 = vld [vmem:[%s47 + $0x3c] sm:$0xf]
    %v62 = vld [vmem:[%s47 + $0x40] sm:$0xf]
    %v63 = vld [vmem:[%s47 + $0x44] sm:$0xf]
    %s64 = scalar_lea.vmem %s1, 64
    %v65 = vld [vmem:[%s64] sm:$0xf]
    %v66 = vld [vmem:[%s64 + $0x4] sm:$0xf]
    %v67 = vld [vmem:[%s64 + $0x8] sm:$0xf]
    %v68 = vld [vmem:[%s64 + $0xc] sm:$0xf]
    %v69 = vld [vmem:[%s64 + $0x10] sm:$0xf]
    %v70 = vld [vmem:[%s64 + $0x14] sm:$0xf]
    %v71 = vld [vmem:[%s64 + $0x18] sm:$0xf]
    %v72 = vld [vmem:[%s64 + $0x1c] sm:$0xf]
    %v73 = vld [vmem:[%s64 + $0x20] sm:$0xf]
    %v74 = vld [vmem:[%s64 + $0x24] sm:$0xf]
    %v75 = vld [vmem:[%s64 + $0x28] sm:$0xf]
    %v76 = vld [vmem:[%s64 + $0x2c] sm:$0xf]
    %v77 = vld [vmem:[%s64 + $0x30] sm:$0xf]
    %v78 = vld [vmem:[%s64 + $0x34] sm:$0xf]
    %v79 = vld [vmem:[%s64 + $0x38] sm:$0xf]
    %v80 = vld [vmem:[%s64 + $0x3c] sm:$0xf]
    %v97 = vunpack.c.l.b16 %v48
    %v98 = vunpack.c.l.b16 %v49
    %v99 = vunpack.c.l.b16 %v50
    %v100 = vunpack.c.l.b16 %v51
    %v101 = vunpack.c.l.b16 %v52
    %v102 = vunpack.c.l.b16 %v53
    %v103 = vunpack.c.l.b16 %v54
    %v104 = vunpack.c.l.b16 %v55
    %v105 = vunpack.c.l.b16 %v56
    %v106 = vunpack.c.l.b16 %v57
    %v107 = vunpack.c.l.b16 %v58
    %v108 = vunpack.c.l.b16 %v59
    %v109 = vunpack.c.l.b16 %v60
    %v110 = vunpack.c.l.b16 %v61
    %v111 = vunpack.c.l.b16 %v62
    %v112 = vunpack.c.l.b16 %v63
    %v113 = vpack.c.b16 %v98, %v97
    %v114 = vpack.c.b16 %v100, %v99
    %v115 = vpack.c.b16 %v102, %v101
    %v116 = vpack.c.b16 %v104, %v103
    %v117 = vpack.c.b16 %v106, %v105
    %v118 = vpack.c.b16 %v108, %v107
    %v119 = vpack.c.b16 %v110, %v109
    %v120 = vpack.c.b16 %v112, %v111
    %v145 = vunpack.c.l.b16 %v65
    %v146 = vunpack.c.l.b16 %v66
    %v147 = vunpack.c.l.b16 %v67
    %v148 = vunpack.c.l.b16 %v68
    %v149 = vunpack.c.l.b16 %v69
    %v150 = vunpack.c.l.b16 %v70
    %v151 = vunpack.c.l.b16 %v71
    %v152 = vunpack.c.l.b16 %v72
    %v153 = vunpack.c.l.b16 %v73
    %v154 = vunpack.c.l.b16 %v74
    %v155 = vunpack.c.l.b16 %v75
    %v156 = vunpack.c.l.b16 %v76
    %v157 = vunpack.c.l.b16 %v77
    %v158 = vunpack.c.l.b16 %v78
    %v159 = vunpack.c.l.b16 %v79
    %v160 = vunpack.c.l.b16 %v80
    %v161 = vpack.c.b16 %v146, %v145
    %v162 = vpack.c.b16 %v148, %v147
    %v163 = vpack.c.b16 %v150, %v149
    %v164 = vpack.c.b16 %v152, %v151
    %v165 = vpack.c.b16 %v154, %v153
    %v166 = vpack.c.b16 %v156, %v155
    %v167 = vpack.c.b16 %v158, %v157
    %v168 = vpack.c.b16 %v160, %v159
    %177 = vmatpush.bf16.msra.mxu0 %v168
    %178 = vmatpush.bf16.msra.mxu0 %v167
    %179 = vmatpush.bf16.msra.mxu0 %v166
    %180 = vmatpush.bf16.msra.mxu0 %v165
    %181 = vmatpush.bf16.msra.mxu0 %v164
    %182 = vmatpush.bf16.msra.mxu0 %v163
    %183 = vmatpush.bf16.msra.mxu0 %v162
    %184 = vmatpush.bf16.msra.mxu0 %v161
    %185 = vmatmul.bf16.gmra.mxu0 %v113
    %v186 = vpop.f32.mrf.mxu0
    %v187 = vadd.f32 0.0, %v186
    %v188 = vpop.f32.mrf.mxu0
    %v189 = vadd.f32 0.0, %v188
    %190 = vmatmul.bf16.gmra.mxu0 %v114
    %v191 = vpop.f32.mrf.mxu0
    %v192 = vadd.f32 0.0, %v191
    %v193 = vpop.f32.mrf.mxu0
    %v194 = vadd.f32 0.0, %v193
    %195 = vmatmul.bf16.gmra.mxu0 %v115
    %v196 = vpop.f32.mrf.mxu0
    %v197 = vadd.f32 0.0, %v196
    %v198 = vpop.f32.mrf.mxu0
    %v199 = vadd.f32 0.0, %v198
    %200 = vmatmul.bf16.gmra.mxu0 %v116
    %v201 = vpop.f32.mrf.mxu0
    %v202 = vadd.f32 0.0, %v201
    %v203 = vpop.f32.mrf.mxu0
    %v204 = vadd.f32 0.0, %v203
    %205 = vmatmul.bf16.gmra.mxu0 %v117
    %v206 = vpop.f32.mrf.mxu0
    %v207 = vadd.f32 0.0, %v206
    %v208 = vpop.f32.mrf.mxu0
    %v209 = vadd.f32 0.0, %v208
    %210 = vmatmul.bf16.gmra.mxu0 %v118
    %v211 = vpop.f32.mrf.mxu0
    %v212 = vadd.f32 0.0, %v211
    %v213 = vpop.f32.mrf.mxu0
    %v214 = vadd.f32 0.0, %v213
    %215 = vmatmul.bf16.gmra.mxu0 %v119
    %v216 = vpop.f32.mrf.mxu0
    %v217 = vadd.f32 0.0, %v216
    %v218 = vpop.f32.mrf.mxu0
    %v219 = vadd.f32 0.0, %v218
    %220 = vmatmul.bf16.gmra.mxu0 %v120
    %v221 = vpop.f32.mrf.mxu0
    %v222 = vadd.f32 0.0, %v221
    %v223 = vpop.f32.mrf.mxu0
    %v224 = vadd.f32 0.0, %v223
    %225 = vdwg.mxu0
    %v242 = vunpack.c.l.b16 %v15
    %v243 = vunpack.c.l.b16 %v16
    %v244 = vunpack.c.l.b16 %v17
    %v245 = vunpack.c.l.b16 %v18
    %v246 = vunpack.c.l.b16 %v19
    %v247 = vunpack.c.l.b16 %v20
    %v248 = vunpack.c.l.b16 %v21
    %v249 = vunpack.c.l.b16 %v22
    %v250 = vunpack.c.l.b16 %v23
    %v251 = vunpack.c.l.b16 %v24
    %v252 = vunpack.c.l.b16 %v25
    %v253 = vunpack.c.l.b16 %v26
    %v254 = vunpack.c.l.b16 %v27
    %v255 = vunpack.c.l.b16 %v28
    %v256 = vunpack.c.l.b16 %v29
    %v257 = vunpack.c.l.b16 %v30
    %v258 = vpack.c.b16 %v243, %v242
    %v259 = vpack.c.b16 %v245, %v244
    %v260 = vpack.c.b16 %v247, %v246
    %v261 = vpack.c.b16 %v249, %v248
    %v262 = vpack.c.b16 %v251, %v250
    %v263 = vpack.c.b16 %v253, %v252
    %v264 = vpack.c.b16 %v255, %v254
    %v265 = vpack.c.b16 %v257, %v256
    %v290 = vunpack.c.l.b16 %v31
    %v291 = vunpack.c.l.b16 %v32
    %v292 = vunpack.c.l.b16 %v33
    %v293 = vunpack.c.l.b16 %v34
    %v294 = vunpack.c.l.b16 %v35
    %v295 = vunpack.c.l.b16 %v36
    %v296 = vunpack.c.l.b16 %v37
    %v297 = vunpack.c.l.b16 %v38
    %v298 = vunpack.c.l.b16 %v39
    %v299 = vunpack.c.l.b16 %v40
    %v300 = vunpack.c.l.b16 %v41
    %v301 = vunpack.c.l.b16 %v42
    %v302 = vunpack.c.l.b16 %v43
    %v303 = vunpack.c.l.b16 %v44
    %v304 = vunpack.c.l.b16 %v45
    %v305 = vunpack.c.l.b16 %v46
    %v306 = vpack.c.b16 %v291, %v290
    %v307 = vpack.c.b16 %v293, %v292
    %v308 = vpack.c.b16 %v295, %v294
    %v309 = vpack.c.b16 %v297, %v296
    %v310 = vpack.c.b16 %v299, %v298
    %v311 = vpack.c.b16 %v301, %v300
    %v312 = vpack.c.b16 %v303, %v302
    %v313 = vpack.c.b16 %v305, %v304
    %322 = vmatpush.bf16.msra.mxu0 %v313
    %323 = vmatpush.bf16.msra.mxu0 %v312
    %324 = vmatpush.bf16.msra.mxu0 %v311
    %325 = vmatpush.bf16.msra.mxu0 %v310
    %326 = vmatpush.bf16.msra.mxu0 %v309
    %327 = vmatpush.bf16.msra.mxu0 %v308
    %328 = vmatpush.bf16.msra.mxu0 %v307
    %329 = vmatpush.bf16.msra.mxu0 %v306
    %330 = vmatmul.bf16.gmra.mxu0 %v258
    %v331 = vpop.f32.mrf.mxu0
    %v332 = vadd.f32 %v187, %v331
    %v333 = vpop.f32.mrf.mxu0
    %v334 = vadd.f32 %v189, %v333
    %335 = vmatmul.bf16.gmra.mxu0 %v259
    %v336 = vpop.f32.mrf.mxu0
    %v337 = vadd.f32 %v192, %v336
    %v338 = vpop.f32.mrf.mxu0
    %v339 = vadd.f32 %v194, %v338
    %340 = vmatmul.bf16.gmra.mxu0 %v260
    %v341 = vpop.f32.mrf.mxu0
    %v342 = vadd.f32 %v197, %v341
    %v343 = vpop.f32.mrf.mxu0
    %v344 = vadd.f32 %v199, %v343
    %345 = vmatmul.bf16.gmra.mxu0 %v261
    %v346 = vpop.f32.mrf.mxu0
    %v347 = vadd.f32 %v202, %v346
    %v348 = vpop.f32.mrf.mxu0
    %v349 = vadd.f32 %v204, %v348
    %350 = vmatmul.bf16.gmra.mxu0 %v262
    %v351 = vpop.f32.mrf.mxu0
    %v352 = vadd.f32 %v207, %v351
    %v353 = vpop.f32.mrf.mxu0
    %v354 = vadd.f32 %v209, %v353
    %355 = vmatmul.bf16.gmra.mxu0 %v263
    %v356 = vpop.f32.mrf.mxu0
    %v357 = vadd.f32 %v212, %v356
    %v358 = vpop.f32.mrf.mxu0
    %v359 = vadd.f32 %v214, %v358
    %360 = vmatmul.bf16.gmra.mxu0 %v264
    %v361 = vpop.f32.mrf.mxu0
    %v362 = vadd.f32 %v217, %v361
    %v363 = vpop.f32.mrf.mxu0
    %v364 = vadd.f32 %v219, %v363
    %365 = vmatmul.bf16.gmra.mxu0 %v265
    %v366 = vpop.f32.mrf.mxu0
    %v367 = vadd.f32 %v222, %v366
    %v368 = vpop.f32.mrf.mxu0
    %v369 = vadd.f32 %v224, %v368
    %370 = vdwg.mxu0
    %s371 = scalar_lea.vmem %s0, 160
    %v372 = vld [vmem:[%s371] sm:$0xf]
    %v373 = vld [vmem:[%s371 + $0x4] sm:$0xf]
    %v374 = vld [vmem:[%s371 + $0x8] sm:$0xf]
    %v375 = vld [vmem:[%s371 + $0xc] sm:$0xf]
    %v376 = vld [vmem:[%s371 + $0x10] sm:$0xf]
    %v377 = vld [vmem:[%s371 + $0x14] sm:$0xf]
    %v378 = vld [vmem:[%s371 + $0x18] sm:$0xf]
    %v379 = vld [vmem:[%s371 + $0x1c] sm:$0xf]
    %v380 = vld [vmem:[%s371 + $0x28] sm:$0xf]
    %v381 = vld [vmem:[%s371 + $0x2c] sm:$0xf]
    %v382 = vld [vmem:[%s371 + $0x30] sm:$0xf]
    %v383 = vld [vmem:[%s371 + $0x34] sm:$0xf]
    %v384 = vld [vmem:[%s371 + $0x38] sm:$0xf]
    %v385 = vld [vmem:[%s371 + $0x3c] sm:$0xf]
    %v386 = vld [vmem:[%s371 + $0x40] sm:$0xf]
    %v387 = vld [vmem:[%s371 + $0x44] sm:$0xf]
    %s388 = scalar_lea.vmem %s1, 128
    %v389 = vld [vmem:[%s388] sm:$0xf]
    %v390 = vld [vmem:[%s388 + $0x4] sm:$0xf]
    %v391 = vld [vmem:[%s388 + $0x8] sm:$0xf]
    %v392 = vld [vmem:[%s388 + $0xc] sm:$0xf]
    %v393 = vld [vmem:[%s388 + $0x10] sm:$0xf]
    %v394 = vld [vmem:[%s388 + $0x14] sm:$0xf]
    %v395 = vld [vmem:[%s388 + $0x18] sm:$0xf]
    %v396 = vld [vmem:[%s388 + $0x1c] sm:$0xf]
    %v397 = vld [vmem:[%s388 + $0x20] sm:$0xf]
    %v398 = vld [vmem:[%s388 + $0x24] sm:$0xf]
    %v399 = vld [vmem:[%s388 + $0x28] sm:$0xf]
    %v400 = vld [vmem:[%s388 + $0x2c] sm:$0xf]
    %v401 = vld [vmem:[%s388 + $0x30] sm:$0xf]
    %v402 = vld [vmem:[%s388 + $0x34] sm:$0xf]
    %v403 = vld [vmem:[%s388 + $0x38] sm:$0xf]
    %v404 = vld [vmem:[%s388 + $0x3c] sm:$0xf]
    %v421 = vunpack.c.l.b16 %v372
    %v422 = vunpack.c.l.b16 %v373
    %v423 = vunpack.c.l.b16 %v374
    %v424 = vunpack.c.l.b16 %v375
    %v425 = vunpack.c.l.b16 %v376
    %v426 = vunpack.c.l.b16 %v377
    %v427 = vunpack.c.l.b16 %v378
    %v428 = vunpack.c.l.b16 %v379
    %v429 = vunpack.c.l.b16 %v380
    %v430 = vunpack.c.l.b16 %v381
    %v431 = vunpack.c.l.b16 %v382
    %v432 = vunpack.c.l.b16 %v383
    %v433 = vunpack.c.l.b16 %v384
    %v434 = vunpack.c.l.b16 %v385
    %v435 = vunpack.c.l.b16 %v386
    %v436 = vunpack.c.l.b16 %v387
    %v437 = vpack.c.b16 %v422, %v421
    %v438 = vpack.c.b16 %v424, %v423
    %v439 = vpack.c.b16 %v426, %v425
    %v440 = vpack.c.b16 %v428, %v427
    %v441 = vpack.c.b16 %v430, %v429
    %v442 = vpack.c.b16 %v432, %v431
    %v443 = vpack.c.b16 %v434, %v433
    %v444 = vpack.c.b16 %v436, %v435
    %v469 = vunpack.c.l.b16 %v389
    %v470 = vunpack.c.l.b16 %v390
    %v471 = vunpack.c.l.b16 %v391
    %v472 = vunpack.c.l.b16 %v392
    %v473 = vunpack.c.l.b16 %v393
    %v474 = vunpack.c.l.b16 %v394
    %v475 = vunpack.c.l.b16 %v395
    %v476 = vunpack.c.l.b16 %v396
    %v477 = vunpack.c.l.b16 %v397
    %v478 = vunpack.c.l.b16 %v398
    %v479 = vunpack.c.l.b16 %v399
    %v480 = vunpack.c.l.b16 %v400
    %v481 = vunpack.c.l.b16 %v401
    %v482 = vunpack.c.l.b16 %v402
    %v483 = vunpack.c.l.b16 %v403
    %v484 = vunpack.c.l.b16 %v404
    %v485 = vpack.c.b16 %v470, %v469
    %v486 = vpack.c.b16 %v472, %v471
    %v487 = vpack.c.b16 %v474, %v473
    %v488 = vpack.c.b16 %v476, %v475
    %v489 = vpack.c.b16 %v478, %v477
    %v490 = vpack.c.b16 %v480, %v479
    %v491 = vpack.c.b16 %v482, %v481
    %v492 = vpack.c.b16 %v484, %v483
    %501 = vmatpush.bf16.msra.mxu0 %v492
    %502 = vmatpush.bf16.msra.mxu0 %v491
    %503 = vmatpush.bf16.msra.mxu0 %v490
    %504 = vmatpush.bf16.msra.mxu0 %v489
    %505 = vmatpush.bf16.msra.mxu0 %v488
    %506 = vmatpush.bf16.msra.mxu0 %v487
    %507 = vmatpush.bf16.msra.mxu0 %v486
    %508 = vmatpush.bf16.msra.mxu0 %v485
    %509 = vmatmul.bf16.gmra.mxu0 %v437
    %v510 = vpop.f32.mrf.mxu0
    %v511 = vadd.f32 0.0, %v510
    %v512 = vpop.f32.mrf.mxu0
    %v513 = vadd.f32 0.0, %v512
    %514 = vmatmul.bf16.gmra.mxu0 %v438
    %v515 = vpop.f32.mrf.mxu0
    %v516 = vadd.f32 0.0, %v515
    %v517 = vpop.f32.mrf.mxu0
    %v518 = vadd.f32 0.0, %v517
    %519 = vmatmul.bf16.gmra.mxu0 %v439
    %v520 = vpop.f32.mrf.mxu0
    %v521 = vadd.f32 0.0, %v520
    %v522 = vpop.f32.mrf.mxu0
    %v523 = vadd.f32 0.0, %v522
    %524 = vmatmul.bf16.gmra.mxu0 %v440
    %v525 = vpop.f32.mrf.mxu0
    %v526 = vadd.f32 0.0, %v525
    %v527 = vpop.f32.mrf.mxu0
    %v528 = vadd.f32 0.0, %v527
    %529 = vmatmul.bf16.gmra.mxu0 %v441
    %v530 = vpop.f32.mrf.mxu0
    %v531 = vadd.f32 0.0, %v530
    %v532 = vpop.f32.mrf.mxu0
    %v533 = vadd.f32 0.0, %v532
    %534 = vmatmul.bf16.gmra.mxu0 %v442
    %v535 = vpop.f32.mrf.mxu0
    %v536 = vadd.f32 0.0, %v535
    %v537 = vpop.f32.mrf.mxu0
    %v538 = vadd.f32 0.0, %v537
    %539 = vmatmul.bf16.gmra.mxu0 %v443
    %v540 = vpop.f32.mrf.mxu0
    %v541 = vadd.f32 0.0, %v540
    %v542 = vpop.f32.mrf.mxu0
    %v543 = vadd.f32 0.0, %v542
    %544 = vmatmul.bf16.gmra.mxu0 %v444
    %v545 = vpop.f32.mrf.mxu0
    %v546 = vadd.f32 0.0, %v545
    %v547 = vpop.f32.mrf.mxu0
    %v548 = vadd.f32 0.0, %v547
    %549 = vdwg.mxu0
    %v550 = vadd.f32 %v332, %v511
    %v551 = vadd.f32 %v334, %v513
    %v552 = vadd.f32 %v337, %v516
    %v553 = vadd.f32 %v339, %v518
    %v554 = vadd.f32 %v342, %v521
    %v555 = vadd.f32 %v344, %v523
    %v556 = vadd.f32 %v347, %v526
    %v557 = vadd.f32 %v349, %v528
    %v558 = vadd.f32 %v352, %v531
    %v559 = vadd.f32 %v354, %v533
    %v560 = vadd.f32 %v357, %v536
    %v561 = vadd.f32 %v359, %v538
    %v562 = vadd.f32 %v362, %v541
    %v563 = vadd.f32 %v364, %v543
    %v564 = vadd.f32 %v367, %v546
    %v565 = vadd.f32 %v369, %v548
    %s566 = scalar_lea.vmem %s0, 4
    %v567 = vld [vmem:[%s566] sm:$0xf]
    %v568 = vld [vmem:[%s566 + $0x4] sm:$0xf]
    %v569 = vld [vmem:[%s566 + $0x8] sm:$0xf]
    %v570 = vld [vmem:[%s566 + $0xc] sm:$0xf]
    %v571 = vld [vmem:[%s566 + $0x10] sm:$0xf]
    %v572 = vld [vmem:[%s566 + $0x14] sm:$0xf]
    %v573 = vld [vmem:[%s566 + $0x18] sm:$0xf]
    %v574 = vld [vmem:[%s566 + $0x1c] sm:$0xf]
    %v575 = vld [vmem:[%s566 + $0x28] sm:$0xf]
    %v576 = vld [vmem:[%s566 + $0x2c] sm:$0xf]
    %v577 = vld [vmem:[%s566 + $0x30] sm:$0xf]
    %v578 = vld [vmem:[%s566 + $0x34] sm:$0xf]
    %v579 = vld [vmem:[%s566 + $0x38] sm:$0xf]
    %v580 = vld [vmem:[%s566 + $0x3c] sm:$0xf]
    %v581 = vld [vmem:[%s566 + $0x40] sm:$0xf]
    %v582 = vld [vmem:[%s566 + $0x44] sm:$0xf]
    %s583 = scalar_lea.vmem %s1, 192
    %v584 = vld [vmem:[%s583] sm:$0xf]
    %v585 = vld [vmem:[%s583 + $0x4] sm:$0xf]
    %v586 = vld [vmem:[%s583 + $0x8] sm:$0xf]
    %v587 = vld [vmem:[%s583 + $0xc] sm:$0xf]
    %v588 = vld [vmem:[%s583 + $0x10] sm:$0xf]
    %v589 = vld [vmem:[%s583 + $0x14] sm:$0xf]
    %v590 = vld [vmem:[%s583 + $0x18] sm:$0xf]
    %v591 = vld [vmem:[%s583 + $0x1c] sm:$0xf]
    %v592 = vld [vmem:[%s583 + $0x20] sm:$0xf]
    %v593 = vld [vmem:[%s583 + $0x24] sm:$0xf]
    %v594 = vld [vmem:[%s583 + $0x28] sm:$0xf]
    %v595 = vld [vmem:[%s583 + $0x2c] sm:$0xf]
    %v596 = vld [vmem:[%s583 + $0x30] sm:$0xf]
    %v597 = vld [vmem:[%s583 + $0x34] sm:$0xf]
    %v598 = vld [vmem:[%s583 + $0x38] sm:$0xf]
    %v599 = vld [vmem:[%s583 + $0x3c] sm:$0xf]
    %v616 = vunpack.c.l.b16 %v567
    %v617 = vunpack.c.l.b16 %v568
    %v618 = vunpack.c.l.b16 %v569
    %v619 = vunpack.c.l.b16 %v570
    %v620 = vunpack.c.l.b16 %v571
    %v621 = vunpack.c.l.b16 %v572
    %v622 = vunpack.c.l.b16 %v573
    %v623 = vunpack.c.l.b16 %v574
    %v624 = vunpack.c.l.b16 %v575
    %v625 = vunpack.c.l.b16 %v576
    %v626 = vunpack.c.l.b16 %v577
    %v627 = vunpack.c.l.b16 %v578
    %v628 = vunpack.c.l.b16 %v579
    %v629 = vunpack.c.l.b16 %v580
    %v630 = vunpack.c.l.b16 %v581
    %v631 = vunpack.c.l.b16 %v582
    %v632 = vpack.c.b16 %v617, %v616
    %v633 = vpack.c.b16 %v619, %v618
    %v634 = vpack.c.b16 %v621, %v620
    %v635 = vpack.c.b16 %v623, %v622
    %v636 = vpack.c.b16 %v625, %v624
    %v637 = vpack.c.b16 %v627, %v626
    %v638 = vpack.c.b16 %v629, %v628
    %v639 = vpack.c.b16 %v631, %v630
    %v664 = vunpack.c.l.b16 %v584
    %v665 = vunpack.c.l.b16 %v585
    %v666 = vunpack.c.l.b16 %v586
    %v667 = vunpack.c.l.b16 %v587
    %v668 = vunpack.c.l.b16 %v588
    %v669 = vunpack.c.l.b16 %v589
    %v670 = vunpack.c.l.b16 %v590
    %v671 = vunpack.c.l.b16 %v591
    %v672 = vunpack.c.l.b16 %v592
    %v673 = vunpack.c.l.b16 %v593
    %v674 = vunpack.c.l.b16 %v594
    %v675 = vunpack.c.l.b16 %v595
    %v676 = vunpack.c.l.b16 %v596
    %v677 = vunpack.c.l.b16 %v597
    %v678 = vunpack.c.l.b16 %v598
    %v679 = vunpack.c.l.b16 %v599
    %v680 = vpack.c.b16 %v665, %v664
    %v681 = vpack.c.b16 %v667, %v666
    %v682 = vpack.c.b16 %v669, %v668
    %v683 = vpack.c.b16 %v671, %v670
    %v684 = vpack.c.b16 %v673, %v672
    %v685 = vpack.c.b16 %v675, %v674
    %v686 = vpack.c.b16 %v677, %v676
    %v687 = vpack.c.b16 %v679, %v678
    %696 = vmatpush.bf16.msra.mxu0 %v687
    %697 = vmatpush.bf16.msra.mxu0 %v686
    %698 = vmatpush.bf16.msra.mxu0 %v685
    %699 = vmatpush.bf16.msra.mxu0 %v684
    %700 = vmatpush.bf16.msra.mxu0 %v683
    %701 = vmatpush.bf16.msra.mxu0 %v682
    %702 = vmatpush.bf16.msra.mxu0 %v681
    %703 = vmatpush.bf16.msra.mxu0 %v680
    %704 = vmatmul.bf16.gmra.mxu0 %v632
    %v705 = vpop.f32.mrf.mxu0
    %v706 = vadd.f32 0.0, %v705
    %v707 = vpop.f32.mrf.mxu0
    %v708 = vadd.f32 0.0, %v707
    %709 = vmatmul.bf16.gmra.mxu0 %v633
    %v710 = vpop.f32.mrf.mxu0
    %v711 = vadd.f32 0.0, %v710
    %v712 = vpop.f32.mrf.mxu0
    %v713 = vadd.f32 0.0, %v712
    %714 = vmatmul.bf16.gmra.mxu0 %v634
    %v715 = vpop.f32.mrf.mxu0
    %v716 = vadd.f32 0.0, %v715
    %v717 = vpop.f32.mrf.mxu0
    %v718 = vadd.f32 0.0, %v717
    %719 = vmatmul.bf16.gmra.mxu0 %v635
    %v720 = vpop.f32.mrf.mxu0
    %v721 = vadd.f32 0.0, %v720
    %v722 = vpop.f32.mrf.mxu0
    %v723 = vadd.f32 0.0, %v722
    %724 = vmatmul.bf16.gmra.mxu0 %v636
    %v725 = vpop.f32.mrf.mxu0
    %v726 = vadd.f32 0.0, %v725
    %v727 = vpop.f32.mrf.mxu0
    %v728 = vadd.f32 0.0, %v727
    %729 = vmatmul.bf16.gmra.mxu0 %v637
    %v730 = vpop.f32.mrf.mxu0
    %v731 = vadd.f32 0.0, %v730
    %v732 = vpop.f32.mrf.mxu0
    %v733 = vadd.f32 0.0, %v732
    %734 = vmatmul.bf16.gmra.mxu0 %v638
    %v735 = vpop.f32.mrf.mxu0
    %v736 = vadd.f32 0.0, %v735
    %v737 = vpop.f32.mrf.mxu0
    %v738 = vadd.f32 0.0, %v737
    %739 = vmatmul.bf16.gmra.mxu0 %v639
    %v740 = vpop.f32.mrf.mxu0
    %v741 = vadd.f32 0.0, %v740
    %v742 = vpop.f32.mrf.mxu0
    %v743 = vadd.f32 0.0, %v742
    %744 = vdwg.mxu0
    %v745 = vadd.f32 %v550, %v706
    %v746 = vadd.f32 %v551, %v708
    %v747 = vadd.f32 %v552, %v711
    %v748 = vadd.f32 %v553, %v713
    %v749 = vadd.f32 %v554, %v716
    %v750 = vadd.f32 %v555, %v718
    %v751 = vadd.f32 %v556, %v721
    %v752 = vadd.f32 %v557, %v723
    %v753 = vadd.f32 %v558, %v726
    %v754 = vadd.f32 %v559, %v728
    %v755 = vadd.f32 %v560, %v731
    %v756 = vadd.f32 %v561, %v733
    %v757 = vadd.f32 %v562, %v736
    %v758 = vadd.f32 %v563, %v738
    %v759 = vadd.f32 %v564, %v741
    %v760 = vadd.f32 %v565, %v743
    %s761 = scalar_lea.vmem %s0, 84
    %v762 = vld [vmem:[%s761] sm:$0xf]
    %v763 = vld [vmem:[%s761 + $0x4] sm:$0xf]
    %v764 = vld [vmem:[%s761 + $0x8] sm:$0xf]
    %v765 = vld [vmem:[%s761 + $0xc] sm:$0xf]
    %v766 = vld [vmem:[%s761 + $0x10] sm:$0xf]
    %v767 = vld [vmem:[%s761 + $0x14] sm:$0xf]
    %v768 = vld [vmem:[%s761 + $0x18] sm:$0xf]
    %v769 = vld [vmem:[%s761 + $0x1c] sm:$0xf]
    %v770 = vld [vmem:[%s761 + $0x28] sm:$0xf]
    %v771 = vld [vmem:[%s761 + $0x2c] sm:$0xf]
    %v772 = vld [vmem:[%s761 + $0x30] sm:$0xf]
    %v773 = vld [vmem:[%s761 + $0x34] sm:$0xf]
    %v774 = vld [vmem:[%s761 + $0x38] sm:$0xf]
    %v775 = vld [vmem:[%s761 + $0x3c] sm:$0xf]
    %v776 = vld [vmem:[%s761 + $0x40] sm:$0xf]
    %v777 = vld [vmem:[%s761 + $0x44] sm:$0xf]
    %s778 = scalar_lea.vmem %s1, 256
    %v779 = vld [vmem:[%s778] sm:$0xf]
    %v780 = vld [vmem:[%s778 + $0x4] sm:$0xf]
    %v781 = vld [vmem:[%s778 + $0x8] sm:$0xf]
    %v782 = vld [vmem:[%s778 + $0xc] sm:$0xf]
    %v783 = vld [vmem:[%s778 + $0x10] sm:$0xf]
    %v784 = vld [vmem:[%s778 + $0x14] sm:$0xf]
    %v785 = vld [vmem:[%s778 + $0x18] sm:$0xf]
    %v786 = vld [vmem:[%s778 + $0x1c] sm:$0xf]
    %v787 = vld [vmem:[%s778 + $0x20] sm:$0xf]
    %v788 = vld [vmem:[%s778 + $0x24] sm:$0xf]
    %v789 = vld [vmem:[%s778 + $0x28] sm:$0xf]
    %v790 = vld [vmem:[%s778 + $0x2c] sm:$0xf]
    %v791 = vld [vmem:[%s778 + $0x30] sm:$0xf]
    %v792 = vld [vmem:[%s778 + $0x34] sm:$0xf]
    %v793 = vld [vmem:[%s778 + $0x38] sm:$0xf]
    %v794 = vld [vmem:[%s778 + $0x3c] sm:$0xf]
    %v811 = vunpack.c.l.b16 %v762
    %v812 = vunpack.c.l.b16 %v763
    %v813 = vunpack.c.l.b16 %v764
    %v814 = vunpack.c.l.b16 %v765
    %v815 = vunpack.c.l.b16 %v766
    %v816 = vunpack.c.l.b16 %v767
    %v817 = vunpack.c.l.b16 %v768
    %v818 = vunpack.c.l.b16 %v769
    %v819 = vunpack.c.l.b16 %v770
    %v820 = vunpack.c.l.b16 %v771
    %v821 = vunpack.c.l.b16 %v772
    %v822 = vunpack.c.l.b16 %v773
    %v823 = vunpack.c.l.b16 %v774
    %v824 = vunpack.c.l.b16 %v775
    %v825 = vunpack.c.l.b16 %v776
    %v826 = vunpack.c.l.b16 %v777
    %v827 = vpack.c.b16 %v812, %v811
    %v828 = vpack.c.b16 %v814, %v813
    %v829 = vpack.c.b16 %v816, %v815
    %v830 = vpack.c.b16 %v818, %v817
    %v831 = vpack.c.b16 %v820, %v819
    %v832 = vpack.c.b16 %v822, %v821
    %v833 = vpack.c.b16 %v824, %v823
    %v834 = vpack.c.b16 %v826, %v825
    %v859 = vunpack.c.l.b16 %v779
    %v860 = vunpack.c.l.b16 %v780
    %v861 = vunpack.c.l.b16 %v781
    %v862 = vunpack.c.l.b16 %v782
    %v863 = vunpack.c.l.b16 %v783
    %v864 = vunpack.c.l.b16 %v784
    %v865 = vunpack.c.l.b16 %v785
    %v866 = vunpack.c.l.b16 %v786
    %v867 = vunpack.c.l.b16 %v787
    %v868 = vunpack.c.l.b16 %v788
    %v869 = vunpack.c.l.b16 %v789
    %v870 = vunpack.c.l.b16 %v790
    %v871 = vunpack.c.l.b16 %v791
    %v872 = vunpack.c.l.b16 %v792
    %v873 = vunpack.c.l.b16 %v793
    %v874 = vunpack.c.l.b16 %v794
    %v875 = vpack.c.b16 %v860, %v859
    %v876 = vpack.c.b16 %v862, %v861
    %v877 = vpack.c.b16 %v864, %v863
    %v878 = vpack.c.b16 %v866, %v865
    %v879 = vpack.c.b16 %v868, %v867
    %v880 = vpack.c.b16 %v870, %v869
    %v881 = vpack.c.b16 %v872, %v871
    %v882 = vpack.c.b16 %v874, %v873
    %891 = vmatpush.bf16.msra.mxu0 %v882
    %892 = vmatpush.bf16.msra.mxu0 %v881
    %893 = vmatpush.bf16.msra.mxu0 %v880
    %894 = vmatpush.bf16.msra.mxu0 %v879
    %895 = vmatpush.bf16.msra.mxu0 %v878
    %896 = vmatpush.bf16.msra.mxu0 %v877
    %897 = vmatpush.bf16.msra.mxu0 %v876
    %898 = vmatpush.bf16.msra.mxu0 %v875
    %899 = vmatmul.bf16.gmra.mxu0 %v827
    %v900 = vpop.f32.mrf.mxu0
    %v901 = vadd.f32 0.0, %v900
    %v902 = vpop.f32.mrf.mxu0
    %v903 = vadd.f32 0.0, %v902
    %904 = vmatmul.bf16.gmra.mxu0 %v828
    %v905 = vpop.f32.mrf.mxu0
    %v906 = vadd.f32 0.0, %v905
    %v907 = vpop.f32.mrf.mxu0
    %v908 = vadd.f32 0.0, %v907
    %909 = vmatmul.bf16.gmra.mxu0 %v829
    %v910 = vpop.f32.mrf.mxu0
    %v911 = vadd.f32 0.0, %v910
    %v912 = vpop.f32.mrf.mxu0
    %v913 = vadd.f32 0.0, %v912
    %914 = vmatmul.bf16.gmra.mxu0 %v830
    %v915 = vpop.f32.mrf.mxu0
    %v916 = vadd.f32 0.0, %v915
    %v917 = vpop.f32.mrf.mxu0
    %v918 = vadd.f32 0.0, %v917
    %919 = vmatmul.bf16.gmra.mxu0 %v831
    %v920 = vpop.f32.mrf.mxu0
    %v921 = vadd.f32 0.0, %v920
    %v922 = vpop.f32.mrf.mxu0
    %v923 = vadd.f32 0.0, %v922
    %924 = vmatmul.bf16.gmra.mxu0 %v832
    %v925 = vpop.f32.mrf.mxu0
    %v926 = vadd.f32 0.0, %v925
    %v927 = vpop.f32.mrf.mxu0
    %v928 = vadd.f32 0.0, %v927
    %929 = vmatmul.bf16.gmra.mxu0 %v833
    %v930 = vpop.f32.mrf.mxu0
    %v931 = vadd.f32 0.0, %v930
    %v932 = vpop.f32.mrf.mxu0
    %v933 = vadd.f32 0.0, %v932
    %934 = vmatmul.bf16.gmra.mxu0 %v834
    %v935 = vpop.f32.mrf.mxu0
    %v936 = vadd.f32 0.0, %v935
    %v937 = vpop.f32.mrf.mxu0
    %v938 = vadd.f32 0.0, %v937
    %939 = vdwg.mxu0
    %v940 = vadd.f32 %v745, %v901
    %v941 = vadd.f32 %v746, %v903
    %v942 = vadd.f32 %v747, %v906
    %v943 = vadd.f32 %v748, %v908
    %v944 = vadd.f32 %v749, %v911
    %v945 = vadd.f32 %v750, %v913
    %v946 = vadd.f32 %v751, %v916
    %v947 = vadd.f32 %v752, %v918
    %v948 = vadd.f32 %v753, %v921
    %v949 = vadd.f32 %v754, %v923
    %v950 = vadd.f32 %v755, %v926
    %v951 = vadd.f32 %v756, %v928
    %v952 = vadd.f32 %v757, %v931
    %v953 = vadd.f32 %v758, %v933
    %v954 = vadd.f32 %v759, %v936
    %v955 = vadd.f32 %v760, %v938
    %s956 = scalar_lea.vmem %s0, 164
    %v957 = vld [vmem:[%s956] sm:$0xf]
    %v958 = vld [vmem:[%s956 + $0x4] sm:$0xf]
    %v959 = vld [vmem:[%s956 + $0x8] sm:$0xf]
    %v960 = vld [vmem:[%s956 + $0xc] sm:$0xf]
    %v961 = vld [vmem:[%s956 + $0x10] sm:$0xf]
    %v962 = vld [vmem:[%s956 + $0x14] sm:$0xf]
    %v963 = vld [vmem:[%s956 + $0x18] sm:$0xf]
    %v964 = vld [vmem:[%s956 + $0x1c] sm:$0xf]
    %v965 = vld [vmem:[%s956 + $0x28] sm:$0xf]
    %v966 = vld [vmem:[%s956 + $0x2c] sm:$0xf]
    %v967 = vld [vmem:[%s956 + $0x30] sm:$0xf]
    %v968 = vld [vmem:[%s956 + $0x34] sm:$0xf]
    %v969 = vld [vmem:[%s956 + $0x38] sm:$0xf]
    %v970 = vld [vmem:[%s956 + $0x3c] sm:$0xf]
    %v971 = vld [vmem:[%s956 + $0x40] sm:$0xf]
    %v972 = vld [vmem:[%s956 + $0x44] sm:$0xf]
    %s973 = scalar_lea.vmem %s1, 320
    %v974 = vld [vmem:[%s973] sm:$0xf]
    %v975 = vld [vmem:[%s973 + $0x4] sm:$0xf]
    %v976 = vld [vmem:[%s973 + $0x8] sm:$0xf]
    %v977 = vld [vmem:[%s973 + $0xc] sm:$0xf]
    %v978 = vld [vmem:[%s973 + $0x10] sm:$0xf]
    %v979 = vld [vmem:[%s973 + $0x14] sm:$0xf]
    %v980 = vld [vmem:[%s973 + $0x18] sm:$0xf]
    %v981 = vld [vmem:[%s973 + $0x1c] sm:$0xf]
    %v982 = vld [vmem:[%s973 + $0x20] sm:$0xf]
    %v983 = vld [vmem:[%s973 + $0x24] sm:$0xf]
    %v984 = vld [vmem:[%s973 + $0x28] sm:$0xf]
    %v985 = vld [vmem:[%s973 + $0x2c] sm:$0xf]
    %v986 = vld [vmem:[%s973 + $0x30] sm:$0xf]
    %v987 = vld [vmem:[%s973 + $0x34] sm:$0xf]
    %v988 = vld [vmem:[%s973 + $0x38] sm:$0xf]
    %v989 = vld [vmem:[%s973 + $0x3c] sm:$0xf]
    %v1006 = vunpack.c.l.b16 %v957
    %v1007 = vunpack.c.l.b16 %v958
    %v1008 = vunpack.c.l.b16 %v959
    %v1009 = vunpack.c.l.b16 %v960
    %v1010 = vunpack.c.l.b16 %v961
    %v1011 = vunpack.c.l.b16 %v962
    %v1012 = vunpack.c.l.b16 %v963
    %v1013 = vunpack.c.l.b16 %v964
    %v1014 = vunpack.c.l.b16 %v965
    %v1015 = vunpack.c.l.b16 %v966
    %v1016 = vunpack.c.l.b16 %v967
    %v1017 = vunpack.c.l.b16 %v968
    %v1018 = vunpack.c.l.b16 %v969
    %v1019 = vunpack.c.l.b16 %v970
    %v1020 = vunpack.c.l.b16 %v971
    %v1021 = vunpack.c.l.b16 %v972
    %v1022 = vpack.c.b16 %v1007, %v1006
    %v1023 = vpack.c.b16 %v1009, %v1008
    %v1024 = vpack.c.b16 %v1011, %v1010
    %v1025 = vpack.c.b16 %v1013, %v1012
    %v1026 = vpack.c.b16 %v1015, %v1014
    %v1027 = vpack.c.b16 %v1017, %v1016
    %v1028 = vpack.c.b16 %v1019, %v1018
    %v1029 = vpack.c.b16 %v1021, %v1020
    %v1054 = vunpack.c.l.b16 %v974
    %v1055 = vunpack.c.l.b16 %v975
    %v1056 = vunpack.c.l.b16 %v976
    %v1057 = vunpack.c.l.b16 %v977
    %v1058 = vunpack.c.l.b16 %v978
    %v1059 = vunpack.c.l.b16 %v979
    %v1060 = vunpack.c.l.b16 %v980
    %v1061 = vunpack.c.l.b16 %v981
    %v1062 = vunpack.c.l.b16 %v982
    %v1063 = vunpack.c.l.b16 %v983
    %v1064 = vunpack.c.l.b16 %v984
    %v1065 = vunpack.c.l.b16 %v985
    %v1066 = vunpack.c.l.b16 %v986
    %v1067 = vunpack.c.l.b16 %v987
    %v1068 = vunpack.c.l.b16 %v988
    %v1069 = vunpack.c.l.b16 %v989
    %v1070 = vpack.c.b16 %v1055, %v1054
    %v1071 = vpack.c.b16 %v1057, %v1056
    %v1072 = vpack.c.b16 %v1059, %v1058
    %v1073 = vpack.c.b16 %v1061, %v1060
    %v1074 = vpack.c.b16 %v1063, %v1062
    %v1075 = vpack.c.b16 %v1065, %v1064
    %v1076 = vpack.c.b16 %v1067, %v1066
    %v1077 = vpack.c.b16 %v1069, %v1068
    %1086 = vmatpush.bf16.msra.mxu0 %v1077
    %1087 = vmatpush.bf16.msra.mxu0 %v1076
    %1088 = vmatpush.bf16.msra.mxu0 %v1075
    %1089 = vmatpush.bf16.msra.mxu0 %v1074
    %1090 = vmatpush.bf16.msra.mxu0 %v1073
    %1091 = vmatpush.bf16.msra.mxu0 %v1072
    %1092 = vmatpush.bf16.msra.mxu0 %v1071
    %1093 = vmatpush.bf16.msra.mxu0 %v1070
    %1094 = vmatmul.bf16.gmra.mxu0 %v1022
    %v1095 = vpop.f32.mrf.mxu0
    %v1096 = vadd.f32 0.0, %v1095
    %v1097 = vpop.f32.mrf.mxu0
    %v1098 = vadd.f32 0.0, %v1097
    %1099 = vmatmul.bf16.gmra.mxu0 %v1023
    %v1100 = vpop.f32.mrf.mxu0
    %v1101 = vadd.f32 0.0, %v1100
    %v1102 = vpop.f32.mrf.mxu0
    %v1103 = vadd.f32 0.0, %v1102
    %1104 = vmatmul.bf16.gmra.mxu0 %v1024
    %v1105 = vpop.f32.mrf.mxu0
    %v1106 = vadd.f32 0.0, %v1105
    %v1107 = vpop.f32.mrf.mxu0
    %v1108 = vadd.f32 0.0, %v1107
    %1109 = vmatmul.bf16.gmra.mxu0 %v1025
    %v1110 = vpop.f32.mrf.mxu0
    %v1111 = vadd.f32 0.0, %v1110
    %v1112 = vpop.f32.mrf.mxu0
    %v1113 = vadd.f32 0.0, %v1112
    %1114 = vmatmul.bf16.gmra.mxu0 %v1026
    %v1115 = vpop.f32.mrf.mxu0
    %v1116 = vadd.f32 0.0, %v1115
    %v1117 = vpop.f32.mrf.mxu0
    %v1118 = vadd.f32 0.0, %v1117
    %1119 = vmatmul.bf16.gmra.mxu0 %v1027
    %v1120 = vpop.f32.mrf.mxu0
    %v1121 = vadd.f32 0.0, %v1120
    %v1122 = vpop.f32.mrf.mxu0
    %v1123 = vadd.f32 0.0, %v1122
    %1124 = vmatmul.bf16.gmra.mxu0 %v1028
    %v1125 = vpop.f32.mrf.mxu0
    %v1126 = vadd.f32 0.0, %v1125
    %v1127 = vpop.f32.mrf.mxu0
    %v1128 = vadd.f32 0.0, %v1127
    %1129 = vmatmul.bf16.gmra.mxu0 %v1029
    %v1130 = vpop.f32.mrf.mxu0
    %v1131 = vadd.f32 0.0, %v1130
    %v1132 = vpop.f32.mrf.mxu0
    %v1133 = vadd.f32 0.0, %v1132
    %1134 = vdwg.mxu0
    %v1135 = vadd.f32 %v940, %v1096
    %v1136 = vadd.f32 %v941, %v1098
    %v1137 = vadd.f32 %v942, %v1101
    %v1138 = vadd.f32 %v943, %v1103
    %v1139 = vadd.f32 %v944, %v1106
    %v1140 = vadd.f32 %v945, %v1108
    %v1141 = vadd.f32 %v946, %v1111
    %v1142 = vadd.f32 %v947, %v1113
    %v1143 = vadd.f32 %v948, %v1116
    %v1144 = vadd.f32 %v949, %v1118
    %v1145 = vadd.f32 %v950, %v1121
    %v1146 = vadd.f32 %v951, %v1123
    %v1147 = vadd.f32 %v952, %v1126
    %v1148 = vadd.f32 %v953, %v1128
    %v1149 = vadd.f32 %v954, %v1131
    %v1150 = vadd.f32 %v955, %v1133
    %s1151 = scalar_lea.vmem %s0, 8
    %v1152 = vld [vmem:[%s1151] sm:$0xf]
    %v1153 = vld [vmem:[%s1151 + $0x4] sm:$0xf]
    %v1154 = vld [vmem:[%s1151 + $0x8] sm:$0xf]
    %v1155 = vld [vmem:[%s1151 + $0xc] sm:$0xf]
    %v1156 = vld [vmem:[%s1151 + $0x10] sm:$0xf]
    %v1157 = vld [vmem:[%s1151 + $0x14] sm:$0xf]
    %v1158 = vld [vmem:[%s1151 + $0x18] sm:$0xf]
    %v1159 = vld [vmem:[%s1151 + $0x1c] sm:$0xf]
    %v1160 = vld [vmem:[%s1151 + $0x28] sm:$0xf]
    %v1161 = vld [vmem:[%s1151 + $0x2c] sm:$0xf]
    %v1162 = vld [vmem:[%s1151 + $0x30] sm:$0xf]
    %v1163 = vld [vmem:[%s1151 + $0x34] sm:$0xf]
    %v1164 = vld [vmem:[%s1151 + $0x38] sm:$0xf]
    %v1165 = vld [vmem:[%s1151 + $0x3c] sm:$0xf]
    %v1166 = vld [vmem:[%s1151 + $0x40] sm:$0xf]
    %v1167 = vld [vmem:[%s1151 + $0x44] sm:$0xf]
    %s1168 = scalar_lea.vmem %s1, 384
    %v1169 = vld [vmem:[%s1168] sm:$0xf]
    %v1170 = vld [vmem:[%s1168 + $0x4] sm:$0xf]
    %v1171 = vld [vmem:[%s1168 + $0x8] sm:$0xf]
    %v1172 = vld [vmem:[%s1168 + $0xc] sm:$0xf]
    %v1173 = vld [vmem:[%s1168 + $0x10] sm:$0xf]
    %v1174 = vld [vmem:[%s1168 + $0x14] sm:$0xf]
    %v1175 = vld [vmem:[%s1168 + $0x18] sm:$0xf]
    %v1176 = vld [vmem:[%s1168 + $0x1c] sm:$0xf]
    %v1177 = vld [vmem:[%s1168 + $0x20] sm:$0xf]
    %v1178 = vld [vmem:[%s1168 + $0x24] sm:$0xf]
    %v1179 = vld [vmem:[%s1168 + $0x28] sm:$0xf]
    %v1180 = vld [vmem:[%s1168 + $0x2c] sm:$0xf]
    %v1181 = vld [vmem:[%s1168 + $0x30] sm:$0xf]
    %v1182 = vld [vmem:[%s1168 + $0x34] sm:$0xf]
    %v1183 = vld [vmem:[%s1168 + $0x38] sm:$0xf]
    %v1184 = vld [vmem:[%s1168 + $0x3c] sm:$0xf]
    %v1201 = vunpack.c.l.b16 %v1152
    %v1202 = vunpack.c.l.b16 %v1153
    %v1203 = vunpack.c.l.b16 %v1154
    %v1204 = vunpack.c.l.b16 %v1155
    %v1205 = vunpack.c.l.b16 %v1156
    %v1206 = vunpack.c.l.b16 %v1157
    %v1207 = vunpack.c.l.b16 %v1158
    %v1208 = vunpack.c.l.b16 %v1159
    %v1209 = vunpack.c.l.b16 %v1160
    %v1210 = vunpack.c.l.b16 %v1161
    %v1211 = vunpack.c.l.b16 %v1162
    %v1212 = vunpack.c.l.b16 %v1163
    %v1213 = vunpack.c.l.b16 %v1164
    %v1214 = vunpack.c.l.b16 %v1165
    %v1215 = vunpack.c.l.b16 %v1166
    %v1216 = vunpack.c.l.b16 %v1167
    %v1217 = vpack.c.b16 %v1202, %v1201
    %v1218 = vpack.c.b16 %v1204, %v1203
    %v1219 = vpack.c.b16 %v1206, %v1205
    %v1220 = vpack.c.b16 %v1208, %v1207
    %v1221 = vpack.c.b16 %v1210, %v1209
    %v1222 = vpack.c.b16 %v1212, %v1211
    %v1223 = vpack.c.b16 %v1214, %v1213
    %v1224 = vpack.c.b16 %v1216, %v1215
    %v1249 = vunpack.c.l.b16 %v1169
    %v1250 = vunpack.c.l.b16 %v1170
    %v1251 = vunpack.c.l.b16 %v1171
    %v1252 = vunpack.c.l.b16 %v1172
    %v1253 = vunpack.c.l.b16 %v1173
    %v1254 = vunpack.c.l.b16 %v1174
    %v1255 = vunpack.c.l.b16 %v1175
    %v1256 = vunpack.c.l.b16 %v1176
    %v1257 = vunpack.c.l.b16 %v1177
    %v1258 = vunpack.c.l.b16 %v1178
    %v1259 = vunpack.c.l.b16 %v1179
    %v1260 = vunpack.c.l.b16 %v1180
    %v1261 = vunpack.c.l.b16 %v1181
    %v1262 = vunpack.c.l.b16 %v1182
    %v1263 = vunpack.c.l.b16 %v1183
    %v1264 = vunpack.c.l.b16 %v1184
    %v1265 = vpack.c.b16 %v1250, %v1249
    %v1266 = vpack.c.b16 %v1252, %v1251
    %v1267 = vpack.c.b16 %v1254, %v1253
    %v1268 = vpack.c.b16 %v1256, %v1255
    %v1269 = vpack.c.b16 %v1258, %v1257
    %v1270 = vpack.c.b16 %v1260, %v1259
    %v1271 = vpack.c.b16 %v1262, %v1261
    %v1272 = vpack.c.b16 %v1264, %v1263
    %1281 = vmatpush.bf16.msra.mxu0 %v1272
    %1282 = vmatpush.bf16.msra.mxu0 %v1271
    %1283 = vmatpush.bf16.msra.mxu0 %v1270
    %1284 = vmatpush.bf16.msra.mxu0 %v1269
    %1285 = vmatpush.bf16.msra.mxu0 %v1268
    %1286 = vmatpush.bf16.msra.mxu0 %v1267
    %1287 = vmatpush.bf16.msra.mxu0 %v1266
    %1288 = vmatpush.bf16.msra.mxu0 %v1265
    %1289 = vmatmul.bf16.gmra.mxu0 %v1217
    %v1290 = vpop.f32.mrf.mxu0
    %v1291 = vadd.f32 0.0, %v1290
    %v1292 = vpop.f32.mrf.mxu0
    %v1293 = vadd.f32 0.0, %v1292
    %1294 = vmatmul.bf16.gmra.mxu0 %v1218
    %v1295 = vpop.f32.mrf.mxu0
    %v1296 = vadd.f32 0.0, %v1295
    %v1297 = vpop.f32.mrf.mxu0
    %v1298 = vadd.f32 0.0, %v1297
    %1299 = vmatmul.bf16.gmra.mxu0 %v1219
    %v1300 = vpop.f32.mrf.mxu0
    %v1301 = vadd.f32 0.0, %v1300
    %v1302 = vpop.f32.mrf.mxu0
    %v1303 = vadd.f32 0.0, %v1302
    %1304 = vmatmul.bf16.gmra.mxu0 %v1220
    %v1305 = vpop.f32.mrf.mxu0
    %v1306 = vadd.f32 0.0, %v1305
    %v1307 = vpop.f32.mrf.mxu0
    %v1308 = vadd.f32 0.0, %v1307
    %1309 = vmatmul.bf16.gmra.mxu0 %v1221
    %v1310 = vpop.f32.mrf.mxu0
    %v1311 = vadd.f32 0.0, %v1310
    %v1312 = vpop.f32.mrf.mxu0
    %v1313 = vadd.f32 0.0, %v1312
    %1314 = vmatmul.bf16.gmra.mxu0 %v1222
    %v1315 = vpop.f32.mrf.mxu0
    %v1316 = vadd.f32 0.0, %v1315
    %v1317 = vpop.f32.mrf.mxu0
    %v1318 = vadd.f32 0.0, %v1317
    %1319 = vmatmul.bf16.gmra.mxu0 %v1223
    %v1320 = vpop.f32.mrf.mxu0
    %v1321 = vadd.f32 0.0, %v1320
    %v1322 = vpop.f32.mrf.mxu0
    %v1323 = vadd.f32 0.0, %v1322
    %1324 = vmatmul.bf16.gmra.mxu0 %v1224
    %v1325 = vpop.f32.mrf.mxu0
    %v1326 = vadd.f32 0.0, %v1325
    %v1327 = vpop.f32.mrf.mxu0
    %v1328 = vadd.f32 0.0, %v1327
    %1329 = vdwg.mxu0
    %v1330 = vadd.f32 %v1135, %v1291
    %v1331 = vadd.f32 %v1136, %v1293
    %v1332 = vadd.f32 %v1137, %v1296
    %v1333 = vadd.f32 %v1138, %v1298
    %v1334 = vadd.f32 %v1139, %v1301
    %v1335 = vadd.f32 %v1140, %v1303
    %v1336 = vadd.f32 %v1141, %v1306
    %v1337 = vadd.f32 %v1142, %v1308
    %v1338 = vadd.f32 %v1143, %v1311
    %v1339 = vadd.f32 %v1144, %v1313
    %v1340 = vadd.f32 %v1145, %v1316
    %v1341 = vadd.f32 %v1146, %v1318
    %v1342 = vadd.f32 %v1147, %v1321
    %v1343 = vadd.f32 %v1148, %v1323
    %v1344 = vadd.f32 %v1149, %v1326
    %v1345 = vadd.f32 %v1150, %v1328
    %s1346 = scalar_lea.vmem %s0, 88
    %v1347 = vld [vmem:[%s1346] sm:$0xf]
    %v1348 = vld [vmem:[%s1346 + $0x4] sm:$0xf]
    %v1349 = vld [vmem:[%s1346 + $0x8] sm:$0xf]
    %v1350 = vld [vmem:[%s1346 + $0xc] sm:$0xf]
    %v1351 = vld [vmem:[%s1346 + $0x10] sm:$0xf]
    %v1352 = vld [vmem:[%s1346 + $0x14] sm:$0xf]
    %v1353 = vld [vmem:[%s1346 + $0x18] sm:$0xf]
    %v1354 = vld [vmem:[%s1346 + $0x1c] sm:$0xf]
    %v1355 = vld [vmem:[%s1346 + $0x28] sm:$0xf]
    %v1356 = vld [vmem:[%s1346 + $0x2c] sm:$0xf]
    %v1357 = vld [vmem:[%s1346 + $0x30] sm:$0xf]
    %v1358 = vld [vmem:[%s1346 + $0x34] sm:$0xf]
    %v1359 = vld [vmem:[%s1346 + $0x38] sm:$0xf]
    %v1360 = vld [vmem:[%s1346 + $0x3c] sm:$0xf]
    %v1361 = vld [vmem:[%s1346 + $0x40] sm:$0xf]
    %v1362 = vld [vmem:[%s1346 + $0x44] sm:$0xf]
    %s1363 = scalar_lea.vmem %s1, 448
    %v1364 = vld [vmem:[%s1363] sm:$0xf]
    %v1365 = vld [vmem:[%s1363 + $0x4] sm:$0xf]
    %v1366 = vld [vmem:[%s1363 + $0x8] sm:$0xf]
    %v1367 = vld [vmem:[%s1363 + $0xc] sm:$0xf]
    %v1368 = vld [vmem:[%s1363 + $0x10] sm:$0xf]
    %v1369 = vld [vmem:[%s1363 + $0x14] sm:$0xf]
    %v1370 = vld [vmem:[%s1363 + $0x18] sm:$0xf]
    %v1371 = vld [vmem:[%s1363 + $0x1c] sm:$0xf]
    %v1372 = vld [vmem:[%s1363 + $0x20] sm:$0xf]
    %v1373 = vld [vmem:[%s1363 + $0x24] sm:$0xf]
    %v1374 = vld [vmem:[%s1363 + $0x28] sm:$0xf]
    %v1375 = vld [vmem:[%s1363 + $0x2c] sm:$0xf]
    %v1376 = vld [vmem:[%s1363 + $0x30] sm:$0xf]
    %v1377 = vld [vmem:[%s1363 + $0x34] sm:$0xf]
    %v1378 = vld [vmem:[%s1363 + $0x38] sm:$0xf]
    %v1379 = vld [vmem:[%s1363 + $0x3c] sm:$0xf]
    %v1396 = vunpack.c.l.b16 %v1347
    %v1397 = vunpack.c.l.b16 %v1348
    %v1398 = vunpack.c.l.b16 %v1349
    %v1399 = vunpack.c.l.b16 %v1350
    %v1400 = vunpack.c.l.b16 %v1351
    %v1401 = vunpack.c.l.b16 %v1352
    %v1402 = vunpack.c.l.b16 %v1353
    %v1403 = vunpack.c.l.b16 %v1354
    %v1404 = vunpack.c.l.b16 %v1355
    %v1405 = vunpack.c.l.b16 %v1356
    %v1406 = vunpack.c.l.b16 %v1357
    %v1407 = vunpack.c.l.b16 %v1358
    %v1408 = vunpack.c.l.b16 %v1359
    %v1409 = vunpack.c.l.b16 %v1360
    %v1410 = vunpack.c.l.b16 %v1361
    %v1411 = vunpack.c.l.b16 %v1362
    %v1412 = vpack.c.b16 %v1397, %v1396
    %v1413 = vpack.c.b16 %v1399, %v1398
    %v1414 = vpack.c.b16 %v1401, %v1400
    %v1415 = vpack.c.b16 %v1403, %v1402
    %v1416 = vpack.c.b16 %v1405, %v1404
    %v1417 = vpack.c.b16 %v1407, %v1406
    %v1418 = vpack.c.b16 %v1409, %v1408
    %v1419 = vpack.c.b16 %v1411, %v1410
    %v1444 = vunpack.c.l.b16 %v1364
    %v1445 = vunpack.c.l.b16 %v1365
    %v1446 = vunpack.c.l.b16 %v1366
    %v1447 = vunpack.c.l.b16 %v1367
    %v1448 = vunpack.c.l.b16 %v1368
    %v1449 = vunpack.c.l.b16 %v1369
    %v1450 = vunpack.c.l.b16 %v1370
    %v1451 = vunpack.c.l.b16 %v1371
    %v1452 = vunpack.c.l.b16 %v1372
    %v1453 = vunpack.c.l.b16 %v1373
    %v1454 = vunpack.c.l.b16 %v1374
    %v1455 = vunpack.c.l.b16 %v1375
    %v1456 = vunpack.c.l.b16 %v1376
    %v1457 = vunpack.c.l.b16 %v1377
    %v1458 = vunpack.c.l.b16 %v1378
    %v1459 = vunpack.c.l.b16 %v1379
    %v1460 = vpack.c.b16 %v1445, %v1444
    %v1461 = vpack.c.b16 %v1447, %v1446
    %v1462 = vpack.c.b16 %v1449, %v1448
    %v1463 = vpack.c.b16 %v1451, %v1450
    %v1464 = vpack.c.b16 %v1453, %v1452
    %v1465 = vpack.c.b16 %v1455, %v1454
    %v1466 = vpack.c.b16 %v1457, %v1456
    %v1467 = vpack.c.b16 %v1459, %v1458
    %1476 = vmatpush.bf16.msra.mxu0 %v1467
    %1477 = vmatpush.bf16.msra.mxu0 %v1466
    %1478 = vmatpush.bf16.msra.mxu0 %v1465
    %1479 = vmatpush.bf16.msra.mxu0 %v1464
    %1480 = vmatpush.bf16.msra.mxu0 %v1463
    %1481 = vmatpush.bf16.msra.mxu0 %v1462
    %1482 = vmatpush.bf16.msra.mxu0 %v1461
    %1483 = vmatpush.bf16.msra.mxu0 %v1460
    %1484 = vmatmul.bf16.gmra.mxu0 %v1412
    %v1485 = vpop.f32.mrf.mxu0
    %v1486 = vadd.f32 0.0, %v1485
    %v1487 = vpop.f32.mrf.mxu0
    %v1488 = vadd.f32 0.0, %v1487
    %1489 = vmatmul.bf16.gmra.mxu0 %v1413
    %v1490 = vpop.f32.mrf.mxu0
    %v1491 = vadd.f32 0.0, %v1490
    %v1492 = vpop.f32.mrf.mxu0
    %v1493 = vadd.f32 0.0, %v1492
    %1494 = vmatmul.bf16.gmra.mxu0 %v1414
    %v1495 = vpop.f32.mrf.mxu0
    %v1496 = vadd.f32 0.0, %v1495
    %v1497 = vpop.f32.mrf.mxu0
    %v1498 = vadd.f32 0.0, %v1497
    %1499 = vmatmul.bf16.gmra.mxu0 %v1415
    %v1500 = vpop.f32.mrf.mxu0
    %v1501 = vadd.f32 0.0, %v1500
    %v1502 = vpop.f32.mrf.mxu0
    %v1503 = vadd.f32 0.0, %v1502
    %1504 = vmatmul.bf16.gmra.mxu0 %v1416
    %v1505 = vpop.f32.mrf.mxu0
    %v1506 = vadd.f32 0.0, %v1505
    %v1507 = vpop.f32.mrf.mxu0
    %v1508 = vadd.f32 0.0, %v1507
    %1509 = vmatmul.bf16.gmra.mxu0 %v1417
    %v1510 = vpop.f32.mrf.mxu0
    %v1511 = vadd.f32 0.0, %v1510
    %v1512 = vpop.f32.mrf.mxu0
    %v1513 = vadd.f32 0.0, %v1512
    %1514 = vmatmul.bf16.gmra.mxu0 %v1418
    %v1515 = vpop.f32.mrf.mxu0
    %v1516 = vadd.f32 0.0, %v1515
    %v1517 = vpop.f32.mrf.mxu0
    %v1518 = vadd.f32 0.0, %v1517
    %1519 = vmatmul.bf16.gmra.mxu0 %v1419
    %v1520 = vpop.f32.mrf.mxu0
    %v1521 = vadd.f32 0.0, %v1520
    %v1522 = vpop.f32.mrf.mxu0
    %v1523 = vadd.f32 0.0, %v1522
    %1524 = vdwg.mxu0
    %v1525 = vadd.f32 %v1330, %v1486
    %v1526 = vadd.f32 %v1331, %v1488
    %v1527 = vadd.f32 %v1332, %v1491
    %v1528 = vadd.f32 %v1333, %v1493
    %v1529 = vadd.f32 %v1334, %v1496
    %v1530 = vadd.f32 %v1335, %v1498
    %v1531 = vadd.f32 %v1336, %v1501
    %v1532 = vadd.f32 %v1337, %v1503
    %v1533 = vadd.f32 %v1338, %v1506
    %v1534 = vadd.f32 %v1339, %v1508
    %v1535 = vadd.f32 %v1340, %v1511
    %v1536 = vadd.f32 %v1341, %v1513
    %v1537 = vadd.f32 %v1342, %v1516
    %v1538 = vadd.f32 %v1343, %v1518
    %v1539 = vadd.f32 %v1344, %v1521
    %v1540 = vadd.f32 %v1345, %v1523
    %s1541 = scalar_lea.vmem %s0, 168
    %v1542 = vld [vmem:[%s1541] sm:$0xf]
    %v1543 = vld [vmem:[%s1541 + $0x4] sm:$0xf]
    %v1544 = vld [vmem:[%s1541 + $0x8] sm:$0xf]
    %v1545 = vld [vmem:[%s1541 + $0xc] sm:$0xf]
    %v1546 = vld [vmem:[%s1541 + $0x10] sm:$0xf]
    %v1547 = vld [vmem:[%s1541 + $0x14] sm:$0xf]
    %v1548 = vld [vmem:[%s1541 + $0x18] sm:$0xf]
    %v1549 = vld [vmem:[%s1541 + $0x1c] sm:$0xf]
    %v1550 = vld [vmem:[%s1541 + $0x28] sm:$0xf]
    %v1551 = vld [vmem:[%s1541 + $0x2c] sm:$0xf]
    %v1552 = vld [vmem:[%s1541 + $0x30] sm:$0xf]
    %v1553 = vld [vmem:[%s1541 + $0x34] sm:$0xf]
    %v1554 = vld [vmem:[%s1541 + $0x38] sm:$0xf]
    %v1555 = vld [vmem:[%s1541 + $0x3c] sm:$0xf]
    %v1556 = vld [vmem:[%s1541 + $0x40] sm:$0xf]
    %v1557 = vld [vmem:[%s1541 + $0x44] sm:$0xf]
    %s1558 = scalar_lea.vmem %s1, 512
    %v1559 = vld [vmem:[%s1558] sm:$0xf]
    %v1560 = vld [vmem:[%s1558 + $0x4] sm:$0xf]
    %v1561 = vld [vmem:[%s1558 + $0x8] sm:$0xf]
    %v1562 = vld [vmem:[%s1558 + $0xc] sm:$0xf]
    %v1563 = vld [vmem:[%s1558 + $0x10] sm:$0xf]
    %v1564 = vld [vmem:[%s1558 + $0x14] sm:$0xf]
    %v1565 = vld [vmem:[%s1558 + $0x18] sm:$0xf]
    %v1566 = vld [vmem:[%s1558 + $0x1c] sm:$0xf]
    %v1567 = vld [vmem:[%s1558 + $0x20] sm:$0xf]
    %v1568 = vld [vmem:[%s1558 + $0x24] sm:$0xf]
    %v1569 = vld [vmem:[%s1558 + $0x28] sm:$0xf]
    %v1570 = vld [vmem:[%s1558 + $0x2c] sm:$0xf]
    %v1571 = vld [vmem:[%s1558 + $0x30] sm:$0xf]
    %v1572 = vld [vmem:[%s1558 + $0x34] sm:$0xf]
    %v1573 = vld [vmem:[%s1558 + $0x38] sm:$0xf]
    %v1574 = vld [vmem:[%s1558 + $0x3c] sm:$0xf]
    %v1591 = vunpack.c.l.b16 %v1542
    %v1592 = vunpack.c.l.b16 %v1543
    %v1593 = vunpack.c.l.b16 %v1544
    %v1594 = vunpack.c.l.b16 %v1545
    %v1595 = vunpack.c.l.b16 %v1546
    %v1596 = vunpack.c.l.b16 %v1547
    %v1597 = vunpack.c.l.b16 %v1548
    %v1598 = vunpack.c.l.b16 %v1549
    %v1599 = vunpack.c.l.b16 %v1550
    %v1600 = vunpack.c.l.b16 %v1551
    %v1601 = vunpack.c.l.b16 %v1552
    %v1602 = vunpack.c.l.b16 %v1553
    %v1603 = vunpack.c.l.b16 %v1554
    %v1604 = vunpack.c.l.b16 %v1555
    %v1605 = vunpack.c.l.b16 %v1556
    %v1606 = vunpack.c.l.b16 %v1557
    %v1607 = vpack.c.b16 %v1592, %v1591
    %v1608 = vpack.c.b16 %v1594, %v1593
    %v1609 = vpack.c.b16 %v1596, %v1595
    %v1610 = vpack.c.b16 %v1598, %v1597
    %v1611 = vpack.c.b16 %v1600, %v1599
    %v1612 = vpack.c.b16 %v1602, %v1601
    %v1613 = vpack.c.b16 %v1604, %v1603
    %v1614 = vpack.c.b16 %v1606, %v1605
    %v1639 = vunpack.c.l.b16 %v1559
    %v1640 = vunpack.c.l.b16 %v1560
    %v1641 = vunpack.c.l.b16 %v1561
    %v1642 = vunpack.c.l.b16 %v1562
    %v1643 = vunpack.c.l.b16 %v1563
    %v1644 = vunpack.c.l.b16 %v1564
    %v1645 = vunpack.c.l.b16 %v1565
    %v1646 = vunpack.c.l.b16 %v1566
    %v1647 = vunpack.c.l.b16 %v1567
    %v1648 = vunpack.c.l.b16 %v1568
    %v1649 = vunpack.c.l.b16 %v1569
    %v1650 = vunpack.c.l.b16 %v1570
    %v1651 = vunpack.c.l.b16 %v1571
    %v1652 = vunpack.c.l.b16 %v1572
    %v1653 = vunpack.c.l.b16 %v1573
    %v1654 = vunpack.c.l.b16 %v1574
    %v1655 = vpack.c.b16 %v1640, %v1639
    %v1656 = vpack.c.b16 %v1642, %v1641
    %v1657 = vpack.c.b16 %v1644, %v1643
    %v1658 = vpack.c.b16 %v1646, %v1645
    %v1659 = vpack.c.b16 %v1648, %v1647
    %v1660 = vpack.c.b16 %v1650, %v1649
    %v1661 = vpack.c.b16 %v1652, %v1651
    %v1662 = vpack.c.b16 %v1654, %v1653
    %1671 = vmatpush.bf16.msra.mxu0 %v1662
    %1672 = vmatpush.bf16.msra.mxu0 %v1661
    %1673 = vmatpush.bf16.msra.mxu0 %v1660
    %1674 = vmatpush.bf16.msra.mxu0 %v1659
    %1675 = vmatpush.bf16.msra.mxu0 %v1658
    %1676 = vmatpush.bf16.msra.mxu0 %v1657
    %1677 = vmatpush.bf16.msra.mxu0 %v1656
    %1678 = vmatpush.bf16.msra.mxu0 %v1655
    %1679 = vmatmul.bf16.gmra.mxu0 %v1607
    %v1680 = vpop.f32.mrf.mxu0
    %v1681 = vadd.f32 0.0, %v1680
    %v1682 = vpop.f32.mrf.mxu0
    %v1683 = vadd.f32 0.0, %v1682
    %1684 = vmatmul.bf16.gmra.mxu0 %v1608
    %v1685 = vpop.f32.mrf.mxu0
    %v1686 = vadd.f32 0.0, %v1685
    %v1687 = vpop.f32.mrf.mxu0
    %v1688 = vadd.f32 0.0, %v1687
    %1689 = vmatmul.bf16.gmra.mxu0 %v1609
    %v1690 = vpop.f32.mrf.mxu0
    %v1691 = vadd.f32 0.0, %v1690
    %v1692 = vpop.f32.mrf.mxu0
    %v1693 = vadd.f32 0.0, %v1692
    %1694 = vmatmul.bf16.gmra.mxu0 %v1610
    %v1695 = vpop.f32.mrf.mxu0
    %v1696 = vadd.f32 0.0, %v1695
    %v1697 = vpop.f32.mrf.mxu0
    %v1698 = vadd.f32 0.0, %v1697
    %1699 = vmatmul.bf16.gmra.mxu0 %v1611
    %v1700 = vpop.f32.mrf.mxu0
    %v1701 = vadd.f32 0.0, %v1700
    %v1702 = vpop.f32.mrf.mxu0
    %v1703 = vadd.f32 0.0, %v1702
    %1704 = vmatmul.bf16.gmra.mxu0 %v1612
    %v1705 = vpop.f32.mrf.mxu0
    %v1706 = vadd.f32 0.0, %v1705
    %v1707 = vpop.f32.mrf.mxu0
    %v1708 = vadd.f32 0.0, %v1707
    %1709 = vmatmul.bf16.gmra.mxu0 %v1613
    %v1710 = vpop.f32.mrf.mxu0
    %v1711 = vadd.f32 0.0, %v1710
    %v1712 = vpop.f32.mrf.mxu0
    %v1713 = vadd.f32 0.0, %v1712
    %1714 = vmatmul.bf16.gmra.mxu0 %v1614
    %v1715 = vpop.f32.mrf.mxu0
    %v1716 = vadd.f32 0.0, %v1715
    %v1717 = vpop.f32.mrf.mxu0
    %v1718 = vadd.f32 0.0, %v1717
    %1719 = vdwg.mxu0
    %v1720 = vadd.f32 %v1525, %v1681
    %v1721 = vadd.f32 %v1526, %v1683
    %v1722 = vadd.f32 %v1527, %v1686
    %v1723 = vadd.f32 %v1528, %v1688
    %v1724 = vadd.f32 %v1529, %v1691
    %v1725 = vadd.f32 %v1530, %v1693
    %v1726 = vadd.f32 %v1531, %v1696
    %v1727 = vadd.f32 %v1532, %v1698
    %v1728 = vadd.f32 %v1533, %v1701
    %v1729 = vadd.f32 %v1534, %v1703
    %v1730 = vadd.f32 %v1535, %v1706
    %v1731 = vadd.f32 %v1536, %v1708
    %v1732 = vadd.f32 %v1537, %v1711
    %v1733 = vadd.f32 %v1538, %v1713
    %v1734 = vadd.f32 %v1539, %v1716
    %v1735 = vadd.f32 %v1540, %v1718
    %v1736 = vld [vmem:[%s2] sm:$0xf]
    %v1737 = vld [vmem:[%s2 + $0x4] sm:$0xf]
    %v1738 = vld [vmem:[%s2 + $0x8] sm:$0xf]
    %v1739 = vld [vmem:[%s2 + $0xc] sm:$0xf]
    %v1740 = vld [vmem:[%s2 + $0x10] sm:$0xf]
    %v1741 = vld [vmem:[%s2 + $0x14] sm:$0xf]
    %v1742 = vld [vmem:[%s2 + $0x18] sm:$0xf]
    %v1743 = vld [vmem:[%s2 + $0x1c] sm:$0xf]
    %v1744 = vld [vmem:[%s2 + $0x20] sm:$0xf]
    %v1745 = vld [vmem:[%s2 + $0x24] sm:$0xf]
    %v1746 = vld [vmem:[%s2 + $0x28] sm:$0xf]
    %v1747 = vld [vmem:[%s2 + $0x2c] sm:$0xf]
    %v1748 = vld [vmem:[%s2 + $0x30] sm:$0xf]
    %v1749 = vld [vmem:[%s2 + $0x34] sm:$0xf]
    %v1750 = vld [vmem:[%s2 + $0x38] sm:$0xf]
    %v1751 = vld [vmem:[%s2 + $0x3c] sm:$0xf]
    %v1752 = vunpack.c.l.bf16 %v1736
    %v1753 = vunpack.c.l.bf16 %v1737
    %v1754 = vunpack.c.l.bf16 %v1738
    %v1755 = vunpack.c.l.bf16 %v1739
    %v1756 = vunpack.c.l.bf16 %v1740
    %v1757 = vunpack.c.l.bf16 %v1741
    %v1758 = vunpack.c.l.bf16 %v1742
    %v1759 = vunpack.c.l.bf16 %v1743
    %v1760 = vunpack.c.l.bf16 %v1744
    %v1761 = vunpack.c.l.bf16 %v1745
    %v1762 = vunpack.c.l.bf16 %v1746
    %v1763 = vunpack.c.l.bf16 %v1747
    %v1764 = vunpack.c.l.bf16 %v1748
    %v1765 = vunpack.c.l.bf16 %v1749
    %v1766 = vunpack.c.l.bf16 %v1750
    %v1767 = vunpack.c.l.bf16 %v1751
    %v1768 = vmul.f32 %v1720, 0.8
    %v1769 = vmul.f32 %v1721, 0.8
    %v1770 = vmul.f32 %v1722, 0.8
    %v1771 = vmul.f32 %v1723, 0.8
    %v1772 = vmul.f32 %v1724, 0.8
    %v1773 = vmul.f32 %v1725, 0.8
    %v1774 = vmul.f32 %v1726, 0.8
    %v1775 = vmul.f32 %v1727, 0.8
    %v1776 = vmul.f32 %v1728, 0.8
    %v1777 = vmul.f32 %v1729, 0.8
    %v1778 = vmul.f32 %v1730, 0.8
    %v1779 = vmul.f32 %v1731, 0.8
    %v1780 = vmul.f32 %v1732, 0.8
    %v1781 = vmul.f32 %v1733, 0.8
    %v1782 = vmul.f32 %v1734, 0.8
    %v1783 = vmul.f32 %v1735, 0.8
    %v1784 = vmul.f32 %v1752, 0.2
    %v1785 = vmul.f32 %v1753, 0.2
    %v1786 = vmul.f32 %v1754, 0.2
    %v1787 = vmul.f32 %v1755, 0.2
    %v1788 = vmul.f32 %v1756, 0.2
    %v1789 = vmul.f32 %v1757, 0.2
    %v1790 = vmul.f32 %v1758, 0.2
    %v1791 = vmul.f32 %v1759, 0.2
    %v1792 = vmul.f32 %v1760, 0.2
    %v1793 = vmul.f32 %v1761, 0.2
    %v1794 = vmul.f32 %v1762, 0.2
    %v1795 = vmul.f32 %v1763, 0.2
    %v1796 = vmul.f32 %v1764, 0.2
    %v1797 = vmul.f32 %v1765, 0.2
    %v1798 = vmul.f32 %v1766, 0.2
    %v1799 = vmul.f32 %v1767, 0.2
    %v1800 = vadd.f32 %v1768, %v1784
    %v1801 = vadd.f32 %v1769, %v1785
    %v1802 = vadd.f32 %v1770, %v1786
    %v1803 = vadd.f32 %v1771, %v1787
    %v1804 = vadd.f32 %v1772, %v1788
    %v1805 = vadd.f32 %v1773, %v1789
    %v1806 = vadd.f32 %v1774, %v1790
    %v1807 = vadd.f32 %v1775, %v1791
    %v1808 = vadd.f32 %v1776, %v1792
    %v1809 = vadd.f32 %v1777, %v1793
    %v1810 = vadd.f32 %v1778, %v1794
    %v1811 = vadd.f32 %v1779, %v1795
    %v1812 = vadd.f32 %v1780, %v1796
    %v1813 = vadd.f32 %v1781, %v1797
    %v1814 = vadd.f32 %v1782, %v1798
    %v1815 = vadd.f32 %v1783, %v1799
    %1816 = vst [vmem:[#allocation2] sm:$0xff] %v1800
    %1817 = vst [vmem:[#allocation2 + $0x8] sm:$0xff] %v1801
    %1818 = vst [vmem:[#allocation2 + $0x10] sm:$0xff] %v1802
    %1819 = vst [vmem:[#allocation2 + $0x18] sm:$0xff] %v1803
    %1820 = vst [vmem:[#allocation2 + $0x20] sm:$0xff] %v1804
    %1821 = vst [vmem:[#allocation2 + $0x28] sm:$0xff] %v1805
    %1822 = vst [vmem:[#allocation2 + $0x30] sm:$0xff] %v1806
    %1823 = vst [vmem:[#allocation2 + $0x38] sm:$0xff] %v1807
    %1824 = vst [vmem:[#allocation2 + $0x40] sm:$0xff] %v1808
    %1825 = vst [vmem:[#allocation2 + $0x48] sm:$0xff] %v1809
    %1826 = vst [vmem:[#allocation2 + $0x50] sm:$0xff] %v1810
    %1827 = vst [vmem:[#allocation2 + $0x58] sm:$0xff] %v1811
    %1828 = vst [vmem:[#allocation2 + $0x60] sm:$0xff] %v1812
    %1829 = vst [vmem:[#allocation2 + $0x68] sm:$0xff] %v1813
    %1830 = vst [vmem:[#allocation2 + $0x70] sm:$0xff] %v1814
    %1831 = vst [vmem:[#allocation2 + $0x78] sm:$0xff] %v1815
    // Predicated region
    $region14: #{basic_block_forward.3} parent=1 // pred_check
      _
    $region15: #{basic_block_forward.3} parent=1 // pred_check_branch
      %1833 = sbr.rel (0) target = $region17
    $region16: #{basic_block_forward.3} parent=1 // pred_region
      %1835 = vsyncadd [#allocation3], 0
      %s1836 = sshll.u32 [#allocation2], 4
      %s1837 = int_to_ptr.vmem [resolvable:$true] %s1836
      %s1838 = sshll.u32 %s3, 4
      %s1839 = int_to_ptr.hbm [resolvable:$true] %s1838
      %1844 = dma.vmem_to_hbm [thread:$0]  %s1837, 2048, %s1839, [#allocation3], 128, 128, 8
    $region17: #{basic_block_forward.3} parent=1 // pred_fallthru
      _
    // Predicated region
    $region18: #{basic_block_forward.3} parent=1 // pred_check
      _
    $region19: #{basic_block_forward.3} parent=1 // pred_check_branch
      %1846 = sbr.rel (0) target = $region21
    $region20: #{basic_block_forward.3} parent=1 // pred_region
      %1848 = dma.done [#allocation3], 2048
    $region21: #{basic_block_forward.3} parent=1 // pred_fallthru
      _
    %1849 = vsyncpa [#allocation3], 1

</llo_original>
